<compile_context>
chip_gen: v7x
topology: tpu7x:2x2x1
jax: 0.10.0
libtpu: 0.0.40
codegen_flags: <defaults>
</compile_context>

<pallas_src>
import numpy as np
import jax
import jax.numpy as jnp
from jax.experimental import pallas as pl
from jax.experimental.pallas import tpu as pltpu

_LANE = 128  # hardware lane width (minimum wavelength tile)


def _cores_per_chip():
    """v7x exposes 2 TensorCores per chip; v5e/v6e have 1."""
    try:
        kind = jax.devices()[0].device_kind.lower()
    except Exception:
        return 1
    return 2 if "v7" in kind else 1


def _pick_lane_tile(num_lam, target_steps):
    """Largest multiple-of-128 tile (<=512) that still yields >= target_steps
    grid steps when possible; otherwise the largest divisor (fewest steps).

    Rationale: the grid is a serial loop on single-TC chips (each extra step
    costs ~0.35us + a constants DMA), so fewer, wider, lane-dense steps win
    there; on v7x two balanced steps feed both TensorCores.  The 512 cap keeps
    the live vreg set of the unrolled layer loop inside the 64-vreg file."""
    best = None
    for cand in (512, 384, 256, 128):
        if num_lam % cand != 0:
            continue
        if best is None:
            best = cand
        if num_lam // cand >= target_steps:
            return cand
    if best is None:
        raise ValueError("num_lam must be a multiple of 128")
    return best


def _make_tmm_kernel(num_interior):
    """Kernel over refs:
         d_ref : (num_f, num_interior)            float32 thicknesses
         c_ref : (8*(num_interior+1), lane_tile)  packed per-wavelength constants
                 rows 8*l .. 8*l+5  (l = 0..num_interior-1, physical layer l+1):
                   [kz_re, kz_im, (1/t)_re, (1/t)_im, (r/t)_re, (r/t)_im, 0, 0]
                 rows 8*num_interior .. +4:
                   [(1/t0)_re, (1/t0)_im, (r0/t0)_re, (r0/t0)_im, Re(n_last/n_first)]
         out_ref: (num_f, lane_tile)              float32 transmission T
    """

    def kernel(d_ref, c_ref, out_ref):
        num_f = d_ref.shape[0]
        tl = out_ref.shape[1]

        def bc(row):  # hoisted sublane broadcast: (1, tl) -> (num_f, tl)
            return jnp.broadcast_to(row, (num_f, tl))

        def cmul(ar, ai, br, bi):  # complex multiply on (re, im) plane pairs
            return ar * br - ai * bi, ar * bi + ai * br

        zeros = jnp.zeros((num_f, tl), jnp.float32)
        ones = jnp.ones((num_f, tl), jnp.float32)

        # Only Mfull[0,0] is needed, so accumulate just the FIRST COLUMN of the
        # interior product right-to-left:  v <- m_l @ v,  starting at v = (1, 0).
        v0r, v0i = ones, zeros
        v1r, v1i = zeros, zeros

        # TODO(synk): for deep stacks (num_interior >> 16), switch this static
        # unroll to lax.fori_loop(..., unroll=2..4) with aligned pl.ds(8*l, 8)
        # layer-block loads, and tile num_f on a second "parallel" grid axis.
        for l in range(num_interior - 1, -1, -1):
            base = 8 * l
            kzr = bc(c_ref[base + 0:base + 1, :])
            kzi = bc(c_ref[base + 1:base + 2, :])
            itr = bc(c_ref[base + 2:base + 3, :])
            iti = bc(c_ref[base + 3:base + 4, :])
            rtr = bc(c_ref[base + 4:base + 5, :])
            rti = bc(c_ref[base + 5:base + 6, :])

            dcol = jnp.broadcast_to(d_ref[:, l:l + 1], (num_f, tl))
            dre = dcol * kzr                     # Re(delta)
            dim = dcol * kzi                     # Im(delta)

            # P = exp(-i*delta) = e^{+Im}(cos - i sin)
            # Q = exp(+i*delta) = e^{-Im}(cos + i sin)
            ep = jnp.exp(dim)
            em = jnp.exp(-dim)                   # second EUP exp (EUP has slack)
            c = jnp.cos(dre)
            s = jnp.sin(dre)
            Pr, Pi = ep * c, -(ep * s)
            Qr, Qi = em * c, em * s

            # m_l = [[P*it, P*rt], [Q*rt, Q*it]]   (it = 1/t, rt = r/t)
            # v0' = P*(it*v0 + rt*v1) ;  v1' = Q*(rt*v0 + it*v1)
            a0r, a0i = cmul(itr, iti, v0r, v0i)
            a1r, a1i = cmul(rtr, rti, v1r, v1i)
            ar, ai = a0r + a1r, a0i + a1i
            b0r, b0i = cmul(rtr, rti, v0r, v0i)
            b1r, b1i = cmul(itr, iti, v1r, v1i)
            br, bi = b0r + b1r, b0i + b1i
            v0r, v0i = cmul(Pr, Pi, ar, ai)
            v1r, v1i = cmul(Qr, Qi, br, bi)

        # Prepend interface 0; only the (0,0) entry of the full product matters:
        #   Mf00 = (1/t0)*v0 + (r0/t0)*v1
        b0 = 8 * num_interior
        it0r = bc(c_ref[b0 + 0:b0 + 1, :])
        it0i = bc(c_ref[b0 + 1:b0 + 2, :])
        rt0r = bc(c_ref[b0 + 2:b0 + 3, :])
        rt0i = bc(c_ref[b0 + 3:b0 + 4, :])
        ratio = bc(c_ref[b0 + 4:b0 + 5, :])

        f0r, f0i = cmul(it0r, it0i, v0r, v0i)
        f1r, f1i = cmul(rt0r, rt0i, v1r, v1i)
        fr, fi = f0r + f1r, f0i + f1i

        # T = |1/Mf00|^2 * Re(n_last/n_first); exact reciprocal keeps rtol=1e-3.
        mag2 = fr * fr + fi * fi
        out_ref[...] = ratio * pl.reciprocal(mag2, approx=False)

    return kernel


def make_tmm_predictor(lambda_list, n_array):
    """Returns forward(d) -> T of shape (num_f, num_lam), float32."""
    lam = np.asarray(lambda_list, dtype=np.complex128)
    n = np.asarray(n_array, dtype=np.complex128)
    num_lam, num_layers = n.shape
    num_interior = num_layers - 2
    assert num_lam % _LANE == 0, "num_lam must be a multiple of 128 here"

    # ---- host-side parameter precompute (per-instantiation constants) ----
    kz = 2.0 * np.pi * n / lam.reshape(-1, 1)                   # (num_lam, L)
    t = 2.0 * n[:, :-1] / (n[:, :-1] + n[:, 1:])                # (num_lam, L-1)
    r = (n[:, :-1] - n[:, 1:]) / (n[:, :-1] + n[:, 1:])
    it = 1.0 / t                                                # 1/t
    rt = r / t                                                  # r/t
    ratio_re = np.real(n[:, -1] / n[:, 0])                      # (num_lam,)

    # Pack everything into one (8*(num_interior+1), num_lam) float32 table:
    # 8 aligned rows per interior layer, plus one 8-row block for interface 0.
    C_pad = 8 * (num_interior + 1)
    packed_np = np.zeros((C_pad, num_lam), np.float32)
    for li, l in enumerate(range(1, num_layers - 1)):
        base = 8 * li
        packed_np[base + 0] = np.real(kz[:, l])
        packed_np[base + 1] = np.imag(kz[:, l])
        packed_np[base + 2] = np.real(it[:, l])
        packed_np[base + 3] = np.imag(it[:, l])
        packed_np[base + 4] = np.real(rt[:, l])
        packed_np[base + 5] = np.imag(rt[:, l])
    b0 = 8 * num_interior
    packed_np[b0 + 0] = np.real(it[:, 0])
    packed_np[b0 + 1] = np.imag(it[:, 0])
    packed_np[b0 + 2] = np.real(rt[:, 0])
    packed_np[b0 + 3] = np.imag(rt[:, 0])
    packed_np[b0 + 4] = ratio_re
    packed = jnp.asarray(packed_np)

    lane_tile = _pick_lane_tile(num_lam, target_steps=_cores_per_chip())
    n_tiles = num_lam // lane_tile
    kernel = _make_tmm_kernel(num_interior)

    def forward(d):
        # d: (num_f, num_layers-2) real thicknesses (imag of the torch cast is 0)
        d = jnp.asarray(d, jnp.float32)
        num_f = d.shape[0]

        # Blocks are tiny (<1 MiB double-buffered); flat 8 MiB is plenty and is
        # safe on every generation (including v7x's 64 MiB physical VMEM).
        vmem_bytes = 8 << 20

        # Advisory cost estimate (pure VPU/EUP elementwise kernel; ~46 real
        # mul/adds + 4 transcendentals per interior layer per element).
        flops = num_f * num_lam * (num_interior * 46 + 18)
        transcendentals = num_f * num_lam * (num_interior * 4 + 1)
        bytes_accessed = 4 * (num_f * num_interior
                              + C_pad * num_lam
                              + num_f * num_lam)

        return pl.pallas_call(
            kernel,
            out_shape=jax.ShapeDtypeStruct((num_f, num_lam), jnp.float32),
            grid=(n_tiles,),
            in_specs=[
                pl.BlockSpec((num_f, num_interior), lambda j: (0, 0)),   # d
                pl.BlockSpec((C_pad, lane_tile), lambda j: (0, j)),      # packed consts
            ],
            out_specs=pl.BlockSpec((num_f, lane_tile), lambda j: (0, j)),
            compiler_params=pltpu.CompilerParams(
                dimension_semantics=("parallel",),
                vmem_limit_bytes=vmem_bytes),
            cost_estimate=pl.CostEstimate(
                flops=flops,
                transcendentals=transcendentals,
                bytes_accessed=bytes_accessed),
        )(d, packed)

    return forward


def tmm_reference(d, lam, n):
    """Straight numpy port of the PyTorch forward (complex128 for accuracy)."""
    d = np.asarray(d, np.float64)
    lam = np.asarray(lam, np.complex128)
    n = np.asarray(n, np.complex128)
    num_f = d.shape[0]
    num_lam, num_layers = n.shape
    kz = 2.0 * np.pi * n / lam.reshape(-1, 1)
    t = np.zeros((num_lam, num_layers), np.complex128)
    r = np.zeros((num_lam, num_layers), np.complex128)
    for i in range(num_layers - 1):
        t[:, i] = 2 * n[:, i] / (n[:, i] + n[:, i + 1])
        r[:, i] = (n[:, i] - n[:, i + 1]) / (n[:, i] + n[:, i + 1])
    T = np.zeros((num_f, num_lam), np.float64)
    for f in range(num_f):
        for w in range(num_lam):
            M = np.eye(2, dtype=np.complex128)
            for l in range(1, num_layers - 1):
                delta = d[f, l - 1] * kz[w, l]
                P = np.array([[np.exp(-1j * delta), 0], [0, np.exp(1j * delta)]])
                R = np.array([[1, r[w, l]], [r[w, l], 1]])
                M = M @ ((1.0 / t[w, l]) * (P @ R))
            A = (1.0 / t[w, 0]) * np.array([[1, r[w, 0]], [r[w, 0], 1]])
            M = A @ M
            tl = 1.0 / M[0, 0]
            T[f, w] = (np.abs(tl ** 2) * (n[w, -1] / n[w, 0])).real
    return T


if __name__ == "__main__":
    num_f, num_lam, num_layers = 8, 256, 8
    num_interior = num_layers - 2

    key = jax.random.PRNGKey(0)
    k_d, k_n = jax.random.split(key)

    # wavelengths (nm) and a multilayer stack refractive-index table
    lambda_list = np.linspace(400.0, 700.0, num_lam)
    base_n = np.array([1.0, 1.45, 2.10, 1.45, 2.10, 1.45, 2.10, 1.52])
    base_k = np.array([0.0, 0.005, 0.010, 0.005, 0.010, 0.005, 0.010, 0.0])
    disp = 0.02 * np.asarray(
        jax.random.normal(k_n, (num_lam, num_layers)), np.float64)
    n_array = (base_n[None, :] + disp) + 1j * base_k[None, :]

    # thicknesses of the interior layers (nm)
    d_np = np.asarray(
        50.0 + 150.0 * jax.random.uniform(k_d, (num_f, num_interior)), np.float32)

    forward = make_tmm_predictor(lambda_list, n_array)
    T = jax.block_until_ready(forward(jnp.asarray(d_np)))

    T_ref = tmm_reference(d_np, lambda_list, n_array)
    assert T.shape == (num_f, num_lam) and T.dtype == jnp.float32
    np.testing.assert_allclose(np.asarray(T), T_ref, rtol=1e-3, atol=1e-4)
    print("KERNEL_OK")
</pallas_src>

<mosaic_0001>
module attributes {stable_mosaic.version = 11 : i64} {
  func.func @kernel(%arg0: i32, %arg1: memref<8x6xf32, #tpu.memory_space<vmem>>, %arg2: memref<56x256xf32, #tpu.memory_space<vmem>>, %arg3: memref<8x256xf32, #tpu.memory_space<vmem>>) attributes {dimension_semantics = [#tpu.dimension_semantics<parallel>], iteration_bounds = array<i64: 1>, scalar_prefetch = 0 : i64, scratch_operands = 0 : i64, tpu.core_type = #tpu.core_type<tc>, window_params = [{pipeline_mode = #tpu.pipeline_mode<synchronous>, transform_indices = @transform_0, window_bounds = array<i64: 8, 6>}, {transform_indices = @transform_1, window_bounds = array<i64: 56, 256>}, {transform_indices = @transform_2, window_bounds = array<i64: 8, 256>}]} {
    %cst = arith.constant 0.000000e+00 : f32
    %0 = vector.broadcast %cst : f32 to vector<8x256xf32>
    %cst_0 = arith.constant 1.000000e+00 : f32
    %1 = vector.broadcast %cst_0 : f32 to vector<8x256xf32>
    %c40 = arith.constant 40 : index
    %c0 = arith.constant 0 : index
    %2 = vector.load %arg2[%c40, %c0] : memref<56x256xf32, #tpu.memory_space<vmem>>, vector<1x256xf32>
    %3 = vector.shape_cast %2 : vector<1x256xf32> to vector<1x256xf32>
    %4 = vector.broadcast %3 : vector<1x256xf32> to vector<8x256xf32>
    %c41 = arith.constant 41 : index
    %c0_1 = arith.constant 0 : index
    %5 = vector.load %arg2[%c41, %c0_1] : memref<56x256xf32, #tpu.memory_space<vmem>>, vector<1x256xf32>
    %6 = vector.shape_cast %5 : vector<1x256xf32> to vector<1x256xf32>
    %7 = vector.broadcast %6 : vector<1x256xf32> to vector<8x256xf32>
    %c42 = arith.constant 42 : index
    %c0_2 = arith.constant 0 : index
    %8 = vector.load %arg2[%c42, %c0_2] : memref<56x256xf32, #tpu.memory_space<vmem>>, vector<1x256xf32>
    %9 = vector.shape_cast %8 : vector<1x256xf32> to vector<1x256xf32>
    %10 = vector.broadcast %9 : vector<1x256xf32> to vector<8x256xf32>
    %c43 = arith.constant 43 : index
    %c0_3 = arith.constant 0 : index
    %11 = vector.load %arg2[%c43, %c0_3] : memref<56x256xf32, #tpu.memory_space<vmem>>, vector<1x256xf32>
    %12 = vector.shape_cast %11 : vector<1x256xf32> to vector<1x256xf32>
    %13 = vector.broadcast %12 : vector<1x256xf32> to vector<8x256xf32>
    %c44 = arith.constant 44 : index
    %c0_4 = arith.constant 0 : index
    %14 = vector.load %arg2[%c44, %c0_4] : memref<56x256xf32, #tpu.memory_space<vmem>>, vector<1x256xf32>
    %15 = vector.shape_cast %14 : vector<1x256xf32> to vector<1x256xf32>
    %16 = vector.broadcast %15 : vector<1x256xf32> to vector<8x256xf32>
    %c45 = arith.constant 45 : index
    %c0_5 = arith.constant 0 : index
    %17 = vector.load %arg2[%c45, %c0_5] : memref<56x256xf32, #tpu.memory_space<vmem>>, vector<1x256xf32>
    %18 = vector.shape_cast %17 : vector<1x256xf32> to vector<1x256xf32>
    %19 = vector.broadcast %18 : vector<1x256xf32> to vector<8x256xf32>
    %c0_6 = arith.constant 0 : index
    %c5 = arith.constant 5 : index
    %20 = vector.load %arg1[%c0_6, %c5] : memref<8x6xf32, #tpu.memory_space<vmem>>, vector<8x1xf32>
    %21 = vector.shape_cast %20 : vector<8x1xf32> to vector<8x1xf32>
    %22 = vector.broadcast %21 : vector<8x1xf32> to vector<8x256xf32>
    %23 = arith.mulf %22, %4 : vector<8x256xf32>
    %24 = arith.mulf %22, %7 : vector<8x256xf32>
    %25 = math.exp %24 : vector<8x256xf32>
    %cst_7 = arith.constant 0.000000e+00 : f32
    %26 = vector.broadcast %cst_7 : f32 to vector<8x256xf32>
    %27 = arith.subf %26, %24 : vector<8x256xf32>
    %28 = math.exp %27 : vector<8x256xf32>
    %29 = math.cos %23 : vector<8x256xf32>
    %30 = math.sin %23 : vector<8x256xf32>
    %31 = arith.mulf %25, %29 : vector<8x256xf32>
    %32 = arith.mulf %25, %30 : vector<8x256xf32>
    %cst_8 = arith.constant 0.000000e+00 : f32
    %33 = vector.broadcast %cst_8 : f32 to vector<8x256xf32>
    %34 = arith.subf %33, %32 : vector<8x256xf32>
    %35 = arith.mulf %28, %29 : vector<8x256xf32>
    %36 = arith.mulf %28, %30 : vector<8x256xf32>
    %37 = arith.mulf %10, %1 : vector<8x256xf32>
    %38 = arith.mulf %13, %0 : vector<8x256xf32>
    %39 = arith.subf %37, %38 : vector<8x256xf32>
    %40 = arith.mulf %10, %0 : vector<8x256xf32>
    %41 = arith.mulf %13, %1 : vector<8x256xf32>
    %42 = arith.addf %40, %41 : vector<8x256xf32>
    %43 = arith.mulf %16, %0 : vector<8x256xf32>
    %44 = arith.mulf %19, %0 : vector<8x256xf32>
    %45 = arith.subf %43, %44 : vector<8x256xf32>
    %46 = arith.mulf %16, %0 : vector<8x256xf32>
    %47 = arith.mulf %19, %0 : vector<8x256xf32>
    %48 = arith.addf %46, %47 : vector<8x256xf32>
    %49 = arith.addf %39, %45 : vector<8x256xf32>
    %50 = arith.addf %42, %48 : vector<8x256xf32>
    %51 = arith.mulf %16, %1 : vector<8x256xf32>
    %52 = arith.mulf %19, %0 : vector<8x256xf32>
    %53 = arith.subf %51, %52 : vector<8x256xf32>
    %54 = arith.mulf %16, %0 : vector<8x256xf32>
    %55 = arith.mulf %19, %1 : vector<8x256xf32>
    %56 = arith.addf %54, %55 : vector<8x256xf32>
    %57 = arith.mulf %10, %0 : vector<8x256xf32>
    %58 = arith.mulf %13, %0 : vector<8x256xf32>
    %59 = arith.subf %57, %58 : vector<8x256xf32>
    %60 = arith.mulf %10, %0 : vector<8x256xf32>
    %61 = arith.mulf %13, %0 : vector<8x256xf32>
    %62 = arith.addf %60, %61 : vector<8x256xf32>
    %63 = arith.addf %53, %59 : vector<8x256xf32>
    %64 = arith.addf %56, %62 : vector<8x256xf32>
    %65 = arith.mulf %31, %49 : vector<8x256xf32>
    %66 = arith.mulf %34, %50 : vector<8x256xf32>
    %67 = arith.subf %65, %66 : vector<8x256xf32>
    %68 = arith.mulf %31, %50 : vector<8x256xf32>
    %69 = arith.mulf %34, %49 : vector<8x256xf32>
    %70 = arith.addf %68, %69 : vector<8x256xf32>
    %71 = arith.mulf %35, %63 : vector<8x256xf32>
    %72 = arith.mulf %36, %64 : vector<8x256xf32>
    %73 = arith.subf %71, %72 : vector<8x256xf32>
    %74 = arith.mulf %35, %64 : vector<8x256xf32>
    %75 = arith.mulf %36, %63 : vector<8x256xf32>
    %76 = arith.addf %74, %75 : vector<8x256xf32>
    %c32 = arith.constant 32 : index
    %c0_9 = arith.constant 0 : index
    %77 = vector.load %arg2[%c32, %c0_9] : memref<56x256xf32, #tpu.memory_space<vmem>>, vector<1x256xf32>
    %78 = vector.shape_cast %77 : vector<1x256xf32> to vector<1x256xf32>
    %79 = vector.broadcast %78 : vector<1x256xf32> to vector<8x256xf32>
    %c33 = arith.constant 33 : index
    %c0_10 = arith.constant 0 : index
    %80 = vector.load %arg2[%c33, %c0_10] : memref<56x256xf32, #tpu.memory_space<vmem>>, vector<1x256xf32>
    %81 = vector.shape_cast %80 : vector<1x256xf32> to vector<1x256xf32>
    %82 = vector.broadcast %81 : vector<1x256xf32> to vector<8x256xf32>
    %c34 = arith.constant 34 : index
    %c0_11 = arith.constant 0 : index
    %83 = vector.load %arg2[%c34, %c0_11] : memref<56x256xf32, #tpu.memory_space<vmem>>, vector<1x256xf32>
    %84 = vector.shape_cast %83 : vector<1x256xf32> to vector<1x256xf32>
    %85 = vector.broadcast %84 : vector<1x256xf32> to vector<8x256xf32>
    %c35 = arith.constant 35 : index
    %c0_12 = arith.constant 0 : index
    %86 = vector.load %arg2[%c35, %c0_12] : memref<56x256xf32, #tpu.memory_space<vmem>>, vector<1x256xf32>
    %87 = vector.shape_cast %86 : vector<1x256xf32> to vector<1x256xf32>
    %88 = vector.broadcast %87 : vector<1x256xf32> to vector<8x256xf32>
    %c36 = arith.constant 36 : index
    %c0_13 = arith.constant 0 : index
    %89 = vector.load %arg2[%c36, %c0_13] : memref<56x256xf32, #tpu.memory_space<vmem>>, vector<1x256xf32>
    %90 = vector.shape_cast %89 : vector<1x256xf32> to vector<1x256xf32>
    %91 = vector.broadcast %90 : vector<1x256xf32> to vector<8x256xf32>
    %c37 = arith.constant 37 : index
    %c0_14 = arith.constant 0 : index
    %92 = vector.load %arg2[%c37, %c0_14] : memref<56x256xf32, #tpu.memory_space<vmem>>, vector<1x256xf32>
    %93 = vector.shape_cast %92 : vector<1x256xf32> to vector<1x256xf32>
    %94 = vector.broadcast %93 : vector<1x256xf32> to vector<8x256xf32>
    %c0_15 = arith.constant 0 : index
    %c4 = arith.constant 4 : index
    %95 = vector.load %arg1[%c0_15, %c4] : memref<8x6xf32, #tpu.memory_space<vmem>>, vector<8x1xf32>
    %96 = vector.shape_cast %95 : vector<8x1xf32> to vector<8x1xf32>
    %97 = vector.broadcast %96 : vector<8x1xf32> to vector<8x256xf32>
    %98 = arith.mulf %97, %79 : vector<8x256xf32>
    %99 = arith.mulf %97, %82 : vector<8x256xf32>
    %100 = math.exp %99 : vector<8x256xf32>
    %cst_16 = arith.constant 0.000000e+00 : f32
    %101 = vector.broadcast %cst_16 : f32 to vector<8x256xf32>
    %102 = arith.subf %101, %99 : vector<8x256xf32>
    %103 = math.exp %102 : vector<8x256xf32>
    %104 = math.cos %98 : vector<8x256xf32>
    %105 = math.sin %98 : vector<8x256xf32>
    %106 = arith.mulf %100, %104 : vector<8x256xf32>
    %107 = arith.mulf %100, %105 : vector<8x256xf32>
    %cst_17 = arith.constant 0.000000e+00 : f32
    %108 = vector.broadcast %cst_17 : f32 to vector<8x256xf32>
    %109 = arith.subf %108, %107 : vector<8x256xf32>
    %110 = arith.mulf %103, %104 : vector<8x256xf32>
    %111 = arith.mulf %103, %105 : vector<8x256xf32>
    %112 = arith.mulf %85, %67 : vector<8x256xf32>
    %113 = arith.mulf %88, %70 : vector<8x256xf32>
    %114 = arith.subf %112, %113 : vector<8x256xf32>
    %115 = arith.mulf %85, %70 : vector<8x256xf32>
    %116 = arith.mulf %88, %67 : vector<8x256xf32>
    %117 = arith.addf %115, %116 : vector<8x256xf32>
    %118 = arith.mulf %91, %73 : vector<8x256xf32>
    %119 = arith.mulf %94, %76 : vector<8x256xf32>
    %120 = arith.subf %118, %119 : vector<8x256xf32>
    %121 = arith.mulf %91, %76 : vector<8x256xf32>
    %122 = arith.mulf %94, %73 : vector<8x256xf32>
    %123 = arith.addf %121, %122 : vector<8x256xf32>
    %124 = arith.addf %114, %120 : vector<8x256xf32>
    %125 = arith.addf %117, %123 : vector<8x256xf32>
    %126 = arith.mulf %91, %67 : vector<8x256xf32>
    %127 = arith.mulf %94, %70 : vector<8x256xf32>
    %128 = arith.subf %126, %127 : vector<8x256xf32>
    %129 = arith.mulf %91, %70 : vector<8x256xf32>
    %130 = arith.mulf %94, %67 : vector<8x256xf32>
    %131 = arith.addf %129, %130 : vector<8x256xf32>
    %132 = arith.mulf %85, %73 : vector<8x256xf32>
    %133 = arith.mulf %88, %76 : vector<8x256xf32>
    %134 = arith.subf %132, %133 : vector<8x256xf32>
    %135 = arith.mulf %85, %76 : vector<8x256xf32>
    %136 = arith.mulf %88, %73 : vector<8x256xf32>
    %137 = arith.addf %135, %136 : vector<8x256xf32>
    %138 = arith.addf %128, %134 : vector<8x256xf32>
    %139 = arith.addf %131, %137 : vector<8x256xf32>
    %140 = arith.mulf %106, %124 : vector<8x256xf32>
    %141 = arith.mulf %109, %125 : vector<8x256xf32>
    %142 = arith.subf %140, %141 : vector<8x256xf32>
    %143 = arith.mulf %106, %125 : vector<8x256xf32>
    %144 = arith.mulf %109, %124 : vector<8x256xf32>
    %145 = arith.addf %143, %144 : vector<8x256xf32>
    %146 = arith.mulf %110, %138 : vector<8x256xf32>
    %147 = arith.mulf %111, %139 : vector<8x256xf32>
    %148 = arith.subf %146, %147 : vector<8x256xf32>
    %149 = arith.mulf %110, %139 : vector<8x256xf32>
    %150 = arith.mulf %111, %138 : vector<8x256xf32>
    %151 = arith.addf %149, %150 : vector<8x256xf32>
    %c24 = arith.constant 24 : index
    %c0_18 = arith.constant 0 : index
    %152 = vector.load %arg2[%c24, %c0_18] : memref<56x256xf32, #tpu.memory_space<vmem>>, vector<1x256xf32>
    %153 = vector.shape_cast %152 : vector<1x256xf32> to vector<1x256xf32>
    %154 = vector.broadcast %153 : vector<1x256xf32> to vector<8x256xf32>
    %c25 = arith.constant 25 : index
    %c0_19 = arith.constant 0 : index
    %155 = vector.load %arg2[%c25, %c0_19] : memref<56x256xf32, #tpu.memory_space<vmem>>, vector<1x256xf32>
    %156 = vector.shape_cast %155 : vector<1x256xf32> to vector<1x256xf32>
    %157 = vector.broadcast %156 : vector<1x256xf32> to vector<8x256xf32>
    %c26 = arith.constant 26 : index
    %c0_20 = arith.constant 0 : index
    %158 = vector.load %arg2[%c26, %c0_20] : memref<56x256xf32, #tpu.memory_space<vmem>>, vector<1x256xf32>
    %159 = vector.shape_cast %158 : vector<1x256xf32> to vector<1x256xf32>
    %160 = vector.broadcast %159 : vector<1x256xf32> to vector<8x256xf32>
    %c27 = arith.constant 27 : index
    %c0_21 = arith.constant 0 : index
    %161 = vector.load %arg2[%c27, %c0_21] : memref<56x256xf32, #tpu.memory_space<vmem>>, vector<1x256xf32>
    %162 = vector.shape_cast %161 : vector<1x256xf32> to vector<1x256xf32>
    %163 = vector.broadcast %162 : vector<1x256xf32> to vector<8x256xf32>
    %c28 = arith.constant 28 : index
    %c0_22 = arith.constant 0 : index
    %164 = vector.load %arg2[%c28, %c0_22] : memref<56x256xf32, #tpu.memory_space<vmem>>, vector<1x256xf32>
    %165 = vector.shape_cast %164 : vector<1x256xf32> to vector<1x256xf32>
    %166 = vector.broadcast %165 : vector<1x256xf32> to vector<8x256xf32>
    %c29 = arith.constant 29 : index
    %c0_23 = arith.constant 0 : index
    %167 = vector.load %arg2[%c29, %c0_23] : memref<56x256xf32, #tpu.memory_space<vmem>>, vector<1x256xf32>
    %168 = vector.shape_cast %167 : vector<1x256xf32> to vector<1x256xf32>
    %169 = vector.broadcast %168 : vector<1x256xf32> to vector<8x256xf32>
    %c0_24 = arith.constant 0 : index
    %c3 = arith.constant 3 : index
    %170 = vector.load %arg1[%c0_24, %c3] : memref<8x6xf32, #tpu.memory_space<vmem>>, vector<8x1xf32>
    %171 = vector.shape_cast %170 : vector<8x1xf32> to vector<8x1xf32>
    %172 = vector.broadcast %171 : vector<8x1xf32> to vector<8x256xf32>
    %173 = arith.mulf %172, %154 : vector<8x256xf32>
    %174 = arith.mulf %172, %157 : vector<8x256xf32>
    %175 = math.exp %174 : vector<8x256xf32>
    %cst_25 = arith.constant 0.000000e+00 : f32
    %176 = vector.broadcast %cst_25 : f32 to vector<8x256xf32>
    %177 = arith.subf %176, %174 : vector<8x256xf32>
    %178 = math.exp %177 : vector<8x256xf32>
    %179 = math.cos %173 : vector<8x256xf32>
    %180 = math.sin %173 : vector<8x256xf32>
    %181 = arith.mulf %175, %179 : vector<8x256xf32>
    %182 = arith.mulf %175, %180 : vector<8x256xf32>
    %cst_26 = arith.constant 0.000000e+00 : f32
    %183 = vector.broadcast %cst_26 : f32 to vector<8x256xf32>
    %184 = arith.subf %183, %182 : vector<8x256xf32>
    %185 = arith.mulf %178, %179 : vector<8x256xf32>
    %186 = arith.mulf %178, %180 : vector<8x256xf32>
    %187 = arith.mulf %160, %142 : vector<8x256xf32>
    %188 = arith.mulf %163, %145 : vector<8x256xf32>
    %189 = arith.subf %187, %188 : vector<8x256xf32>
    %190 = arith.mulf %160, %145 : vector<8x256xf32>
    %191 = arith.mulf %163, %142 : vector<8x256xf32>
    %192 = arith.addf %190, %191 : vector<8x256xf32>
    %193 = arith.mulf %166, %148 : vector<8x256xf32>
    %194 = arith.mulf %169, %151 : vector<8x256xf32>
    %195 = arith.subf %193, %194 : vector<8x256xf32>
    %196 = arith.mulf %166, %151 : vector<8x256xf32>
    %197 = arith.mulf %169, %148 : vector<8x256xf32>
    %198 = arith.addf %196, %197 : vector<8x256xf32>
    %199 = arith.addf %189, %195 : vector<8x256xf32>
    %200 = arith.addf %192, %198 : vector<8x256xf32>
    %201 = arith.mulf %166, %142 : vector<8x256xf32>
    %202 = arith.mulf %169, %145 : vector<8x256xf32>
    %203 = arith.subf %201, %202 : vector<8x256xf32>
    %204 = arith.mulf %166, %145 : vector<8x256xf32>
    %205 = arith.mulf %169, %142 : vector<8x256xf32>
    %206 = arith.addf %204, %205 : vector<8x256xf32>
    %207 = arith.mulf %160, %148 : vector<8x256xf32>
    %208 = arith.mulf %163, %151 : vector<8x256xf32>
    %209 = arith.subf %207, %208 : vector<8x256xf32>
    %210 = arith.mulf %160, %151 : vector<8x256xf32>
    %211 = arith.mulf %163, %148 : vector<8x256xf32>
    %212 = arith.addf %210, %211 : vector<8x256xf32>
    %213 = arith.addf %203, %209 : vector<8x256xf32>
    %214 = arith.addf %206, %212 : vector<8x256xf32>
    %215 = arith.mulf %181, %199 : vector<8x256xf32>
    %216 = arith.mulf %184, %200 : vector<8x256xf32>
    %217 = arith.subf %215, %216 : vector<8x256xf32>
    %218 = arith.mulf %181, %200 : vector<8x256xf32>
    %219 = arith.mulf %184, %199 : vector<8x256xf32>
    %220 = arith.addf %218, %219 : vector<8x256xf32>
    %221 = arith.mulf %185, %213 : vector<8x256xf32>
    %222 = arith.mulf %186, %214 : vector<8x256xf32>
    %223 = arith.subf %221, %222 : vector<8x256xf32>
    %224 = arith.mulf %185, %214 : vector<8x256xf32>
    %225 = arith.mulf %186, %213 : vector<8x256xf32>
    %226 = arith.addf %224, %225 : vector<8x256xf32>
    %c16 = arith.constant 16 : index
    %c0_27 = arith.constant 0 : index
    %227 = vector.load %arg2[%c16, %c0_27] : memref<56x256xf32, #tpu.memory_space<vmem>>, vector<1x256xf32>
    %228 = vector.shape_cast %227 : vector<1x256xf32> to vector<1x256xf32>
    %229 = vector.broadcast %228 : vector<1x256xf32> to vector<8x256xf32>
    %c17 = arith.constant 17 : index
    %c0_28 = arith.constant 0 : index
    %230 = vector.load %arg2[%c17, %c0_28] : memref<56x256xf32, #tpu.memory_space<vmem>>, vector<1x256xf32>
    %231 = vector.shape_cast %230 : vector<1x256xf32> to vector<1x256xf32>
    %232 = vector.broadcast %231 : vector<1x256xf32> to vector<8x256xf32>
    %c18 = arith.constant 18 : index
    %c0_29 = arith.constant 0 : index
    %233 = vector.load %arg2[%c18, %c0_29] : memref<56x256xf32, #tpu.memory_space<vmem>>, vector<1x256xf32>
    %234 = vector.shape_cast %233 : vector<1x256xf32> to vector<1x256xf32>
    %235 = vector.broadcast %234 : vector<1x256xf32> to vector<8x256xf32>
    %c19 = arith.constant 19 : index
    %c0_30 = arith.constant 0 : index
    %236 = vector.load %arg2[%c19, %c0_30] : memref<56x256xf32, #tpu.memory_space<vmem>>, vector<1x256xf32>
    %237 = vector.shape_cast %236 : vector<1x256xf32> to vector<1x256xf32>
    %238 = vector.broadcast %237 : vector<1x256xf32> to vector<8x256xf32>
    %c20 = arith.constant 20 : index
    %c0_31 = arith.constant 0 : index
    %239 = vector.load %arg2[%c20, %c0_31] : memref<56x256xf32, #tpu.memory_space<vmem>>, vector<1x256xf32>
    %240 = vector.shape_cast %239 : vector<1x256xf32> to vector<1x256xf32>
    %241 = vector.broadcast %240 : vector<1x256xf32> to vector<8x256xf32>
    %c21 = arith.constant 21 : index
    %c0_32 = arith.constant 0 : index
    %242 = vector.load %arg2[%c21, %c0_32] : memref<56x256xf32, #tpu.memory_space<vmem>>, vector<1x256xf32>
    %243 = vector.shape_cast %242 : vector<1x256xf32> to vector<1x256xf32>
    %244 = vector.broadcast %243 : vector<1x256xf32> to vector<8x256xf32>
    %c0_33 = arith.constant 0 : index
    %c2 = arith.constant 2 : index
    %245 = vector.load %arg1[%c0_33, %c2] : memref<8x6xf32, #tpu.memory_space<vmem>>, vector<8x1xf32>
    %246 = vector.shape_cast %245 : vector<8x1xf32> to vector<8x1xf32>
    %247 = vector.broadcast %246 : vector<8x1xf32> to vector<8x256xf32>
    %248 = arith.mulf %247, %229 : vector<8x256xf32>
    %249 = arith.mulf %247, %232 : vector<8x256xf32>
    %250 = math.exp %249 : vector<8x256xf32>
    %cst_34 = arith.constant 0.000000e+00 : f32
    %251 = vector.broadcast %cst_34 : f32 to vector<8x256xf32>
    %252 = arith.subf %251, %249 : vector<8x256xf32>
    %253 = math.exp %252 : vector<8x256xf32>
    %254 = math.cos %248 : vector<8x256xf32>
    %255 = math.sin %248 : vector<8x256xf32>
    %256 = arith.mulf %250, %254 : vector<8x256xf32>
    %257 = arith.mulf %250, %255 : vector<8x256xf32>
    %cst_35 = arith.constant 0.000000e+00 : f32
    %258 = vector.broadcast %cst_35 : f32 to vector<8x256xf32>
    %259 = arith.subf %258, %257 : vector<8x256xf32>
    %260 = arith.mulf %253, %254 : vector<8x256xf32>
    %261 = arith.mulf %253, %255 : vector<8x256xf32>
    %262 = arith.mulf %235, %217 : vector<8x256xf32>
    %263 = arith.mulf %238, %220 : vector<8x256xf32>
    %264 = arith.subf %262, %263 : vector<8x256xf32>
    %265 = arith.mulf %235, %220 : vector<8x256xf32>
    %266 = arith.mulf %238, %217 : vector<8x256xf32>
    %267 = arith.addf %265, %266 : vector<8x256xf32>
    %268 = arith.mulf %241, %223 : vector<8x256xf32>
    %269 = arith.mulf %244, %226 : vector<8x256xf32>
    %270 = arith.subf %268, %269 : vector<8x256xf32>
    %271 = arith.mulf %241, %226 : vector<8x256xf32>
    %272 = arith.mulf %244, %223 : vector<8x256xf32>
    %273 = arith.addf %271, %272 : vector<8x256xf32>
    %274 = arith.addf %264, %270 : vector<8x256xf32>
    %275 = arith.addf %267, %273 : vector<8x256xf32>
    %276 = arith.mulf %241, %217 : vector<8x256xf32>
    %277 = arith.mulf %244, %220 : vector<8x256xf32>
    %278 = arith.subf %276, %277 : vector<8x256xf32>
    %279 = arith.mulf %241, %220 : vector<8x256xf32>
    %280 = arith.mulf %244, %217 : vector<8x256xf32>
    %281 = arith.addf %279, %280 : vector<8x256xf32>
    %282 = arith.mulf %235, %223 : vector<8x256xf32>
    %283 = arith.mulf %238, %226 : vector<8x256xf32>
    %284 = arith.subf %282, %283 : vector<8x256xf32>
    %285 = arith.mulf %235, %226 : vector<8x256xf32>
    %286 = arith.mulf %238, %223 : vector<8x256xf32>
    %287 = arith.addf %285, %286 : vector<8x256xf32>
    %288 = arith.addf %278, %284 : vector<8x256xf32>
    %289 = arith.addf %281, %287 : vector<8x256xf32>
    %290 = arith.mulf %256, %274 : vector<8x256xf32>
    %291 = arith.mulf %259, %275 : vector<8x256xf32>
    %292 = arith.subf %290, %291 : vector<8x256xf32>
    %293 = arith.mulf %256, %275 : vector<8x256xf32>
    %294 = arith.mulf %259, %274 : vector<8x256xf32>
    %295 = arith.addf %293, %294 : vector<8x256xf32>
    %296 = arith.mulf %260, %288 : vector<8x256xf32>
    %297 = arith.mulf %261, %289 : vector<8x256xf32>
    %298 = arith.subf %296, %297 : vector<8x256xf32>
    %299 = arith.mulf %260, %289 : vector<8x256xf32>
    %300 = arith.mulf %261, %288 : vector<8x256xf32>
    %301 = arith.addf %299, %300 : vector<8x256xf32>
    %c8 = arith.constant 8 : index
    %c0_36 = arith.constant 0 : index
    %302 = vector.load %arg2[%c8, %c0_36] : memref<56x256xf32, #tpu.memory_space<vmem>>, vector<1x256xf32>
    %303 = vector.shape_cast %302 : vector<1x256xf32> to vector<1x256xf32>
    %304 = vector.broadcast %303 : vector<1x256xf32> to vector<8x256xf32>
    %c9 = arith.constant 9 : index
    %c0_37 = arith.constant 0 : index
    %305 = vector.load %arg2[%c9, %c0_37] : memref<56x256xf32, #tpu.memory_space<vmem>>, vector<1x256xf32>
    %306 = vector.shape_cast %305 : vector<1x256xf32> to vector<1x256xf32>
    %307 = vector.broadcast %306 : vector<1x256xf32> to vector<8x256xf32>
    %c10 = arith.constant 10 : index
    %c0_38 = arith.constant 0 : index
    %308 = vector.load %arg2[%c10, %c0_38] : memref<56x256xf32, #tpu.memory_space<vmem>>, vector<1x256xf32>
    %309 = vector.shape_cast %308 : vector<1x256xf32> to vector<1x256xf32>
    %310 = vector.broadcast %309 : vector<1x256xf32> to vector<8x256xf32>
    %c11 = arith.constant 11 : index
    %c0_39 = arith.constant 0 : index
    %311 = vector.load %arg2[%c11, %c0_39] : memref<56x256xf32, #tpu.memory_space<vmem>>, vector<1x256xf32>
    %312 = vector.shape_cast %311 : vector<1x256xf32> to vector<1x256xf32>
    %313 = vector.broadcast %312 : vector<1x256xf32> to vector<8x256xf32>
    %c12 = arith.constant 12 : index
    %c0_40 = arith.constant 0 : index
    %314 = vector.load %arg2[%c12, %c0_40] : memref<56x256xf32, #tpu.memory_space<vmem>>, vector<1x256xf32>
    %315 = vector.shape_cast %314 : vector<1x256xf32> to vector<1x256xf32>
    %316 = vector.broadcast %315 : vector<1x256xf32> to vector<8x256xf32>
    %c13 = arith.constant 13 : index
    %c0_41 = arith.constant 0 : index
    %317 = vector.load %arg2[%c13, %c0_41] : memref<56x256xf32, #tpu.memory_space<vmem>>, vector<1x256xf32>
    %318 = vector.shape_cast %317 : vector<1x256xf32> to vector<1x256xf32>
    %319 = vector.broadcast %318 : vector<1x256xf32> to vector<8x256xf32>
    %c0_42 = arith.constant 0 : index
    %c1 = arith.constant 1 : index
    %320 = vector.load %arg1[%c0_42, %c1] : memref<8x6xf32, #tpu.memory_space<vmem>>, vector<8x1xf32>
    %321 = vector.shape_cast %320 : vector<8x1xf32> to vector<8x1xf32>
    %322 = vector.broadcast %321 : vector<8x1xf32> to vector<8x256xf32>
    %323 = arith.mulf %322, %304 : vector<8x256xf32>
    %324 = arith.mulf %322, %307 : vector<8x256xf32>
    %325 = math.exp %324 : vector<8x256xf32>
    %cst_43 = arith.constant 0.000000e+00 : f32
    %326 = vector.broadcast %cst_43 : f32 to vector<8x256xf32>
    %327 = arith.subf %326, %324 : vector<8x256xf32>
    %328 = math.exp %327 : vector<8x256xf32>
    %329 = math.cos %323 : vector<8x256xf32>
    %330 = math.sin %323 : vector<8x256xf32>
    %331 = arith.mulf %325, %329 : vector<8x256xf32>
    %332 = arith.mulf %325, %330 : vector<8x256xf32>
    %cst_44 = arith.constant 0.000000e+00 : f32
    %333 = vector.broadcast %cst_44 : f32 to vector<8x256xf32>
    %334 = arith.subf %333, %332 : vector<8x256xf32>
    %335 = arith.mulf %328, %329 : vector<8x256xf32>
    %336 = arith.mulf %328, %330 : vector<8x256xf32>
    %337 = arith.mulf %310, %292 : vector<8x256xf32>
    %338 = arith.mulf %313, %295 : vector<8x256xf32>
    %339 = arith.subf %337, %338 : vector<8x256xf32>
    %340 = arith.mulf %310, %295 : vector<8x256xf32>
    %341 = arith.mulf %313, %292 : vector<8x256xf32>
    %342 = arith.addf %340, %341 : vector<8x256xf32>
    %343 = arith.mulf %316, %298 : vector<8x256xf32>
    %344 = arith.mulf %319, %301 : vector<8x256xf32>
    %345 = arith.subf %343, %344 : vector<8x256xf32>
    %346 = arith.mulf %316, %301 : vector<8x256xf32>
    %347 = arith.mulf %319, %298 : vector<8x256xf32>
    %348 = arith.addf %346, %347 : vector<8x256xf32>
    %349 = arith.addf %339, %345 : vector<8x256xf32>
    %350 = arith.addf %342, %348 : vector<8x256xf32>
    %351 = arith.mulf %316, %292 : vector<8x256xf32>
    %352 = arith.mulf %319, %295 : vector<8x256xf32>
    %353 = arith.subf %351, %352 : vector<8x256xf32>
    %354 = arith.mulf %316, %295 : vector<8x256xf32>
    %355 = arith.mulf %319, %292 : vector<8x256xf32>
    %356 = arith.addf %354, %355 : vector<8x256xf32>
    %357 = arith.mulf %310, %298 : vector<8x256xf32>
    %358 = arith.mulf %313, %301 : vector<8x256xf32>
    %359 = arith.subf %357, %358 : vector<8x256xf32>
    %360 = arith.mulf %310, %301 : vector<8x256xf32>
    %361 = arith.mulf %313, %298 : vector<8x256xf32>
    %362 = arith.addf %360, %361 : vector<8x256xf32>
    %363 = arith.addf %353, %359 : vector<8x256xf32>
    %364 = arith.addf %356, %362 : vector<8x256xf32>
    %365 = arith.mulf %331, %349 : vector<8x256xf32>
    %366 = arith.mulf %334, %350 : vector<8x256xf32>
    %367 = arith.subf %365, %366 : vector<8x256xf32>
    %368 = arith.mulf %331, %350 : vector<8x256xf32>
    %369 = arith.mulf %334, %349 : vector<8x256xf32>
    %370 = arith.addf %368, %369 : vector<8x256xf32>
    %371 = arith.mulf %335, %363 : vector<8x256xf32>
    %372 = arith.mulf %336, %364 : vector<8x256xf32>
    %373 = arith.subf %371, %372 : vector<8x256xf32>
    %374 = arith.mulf %335, %364 : vector<8x256xf32>
    %375 = arith.mulf %336, %363 : vector<8x256xf32>
    %376 = arith.addf %374, %375 : vector<8x256xf32>
    %c0_45 = arith.constant 0 : index
    %c0_46 = arith.constant 0 : index
    %377 = vector.load %arg2[%c0_45, %c0_46] : memref<56x256xf32, #tpu.memory_space<vmem>>, vector<1x256xf32>
    %378 = vector.shape_cast %377 : vector<1x256xf32> to vector<1x256xf32>
    %379 = vector.broadcast %378 : vector<1x256xf32> to vector<8x256xf32>
    %c1_47 = arith.constant 1 : index
    %c0_48 = arith.constant 0 : index
    %380 = vector.load %arg2[%c1_47, %c0_48] : memref<56x256xf32, #tpu.memory_space<vmem>>, vector<1x256xf32>
    %381 = vector.shape_cast %380 : vector<1x256xf32> to vector<1x256xf32>
    %382 = vector.broadcast %381 : vector<1x256xf32> to vector<8x256xf32>
    %c2_49 = arith.constant 2 : index
    %c0_50 = arith.constant 0 : index
    %383 = vector.load %arg2[%c2_49, %c0_50] : memref<56x256xf32, #tpu.memory_space<vmem>>, vector<1x256xf32>
    %384 = vector.shape_cast %383 : vector<1x256xf32> to vector<1x256xf32>
    %385 = vector.broadcast %384 : vector<1x256xf32> to vector<8x256xf32>
    %c3_51 = arith.constant 3 : index
    %c0_52 = arith.constant 0 : index
    %386 = vector.load %arg2[%c3_51, %c0_52] : memref<56x256xf32, #tpu.memory_space<vmem>>, vector<1x256xf32>
    %387 = vector.shape_cast %386 : vector<1x256xf32> to vector<1x256xf32>
    %388 = vector.broadcast %387 : vector<1x256xf32> to vector<8x256xf32>
    %c4_53 = arith.constant 4 : index
    %c0_54 = arith.constant 0 : index
    %389 = vector.load %arg2[%c4_53, %c0_54] : memref<56x256xf32, #tpu.memory_space<vmem>>, vector<1x256xf32>
    %390 = vector.shape_cast %389 : vector<1x256xf32> to vector<1x256xf32>
    %391 = vector.broadcast %390 : vector<1x256xf32> to vector<8x256xf32>
    %c5_55 = arith.constant 5 : index
    %c0_56 = arith.constant 0 : index
    %392 = vector.load %arg2[%c5_55, %c0_56] : memref<56x256xf32, #tpu.memory_space<vmem>>, vector<1x256xf32>
    %393 = vector.shape_cast %392 : vector<1x256xf32> to vector<1x256xf32>
    %394 = vector.broadcast %393 : vector<1x256xf32> to vector<8x256xf32>
    %c0_57 = arith.constant 0 : index
    %c0_58 = arith.constant 0 : index
    %395 = vector.load %arg1[%c0_57, %c0_58] : memref<8x6xf32, #tpu.memory_space<vmem>>, vector<8x1xf32>
    %396 = vector.shape_cast %395 : vector<8x1xf32> to vector<8x1xf32>
    %397 = vector.broadcast %396 : vector<8x1xf32> to vector<8x256xf32>
    %398 = arith.mulf %397, %379 : vector<8x256xf32>
    %399 = arith.mulf %397, %382 : vector<8x256xf32>
    %400 = math.exp %399 : vector<8x256xf32>
    %cst_59 = arith.constant 0.000000e+00 : f32
    %401 = vector.broadcast %cst_59 : f32 to vector<8x256xf32>
    %402 = arith.subf %401, %399 : vector<8x256xf32>
    %403 = math.exp %402 : vector<8x256xf32>
    %404 = math.cos %398 : vector<8x256xf32>
    %405 = math.sin %398 : vector<8x256xf32>
    %406 = arith.mulf %400, %404 : vector<8x256xf32>
    %407 = arith.mulf %400, %405 : vector<8x256xf32>
    %cst_60 = arith.constant 0.000000e+00 : f32
    %408 = vector.broadcast %cst_60 : f32 to vector<8x256xf32>
    %409 = arith.subf %408, %407 : vector<8x256xf32>
    %410 = arith.mulf %403, %404 : vector<8x256xf32>
    %411 = arith.mulf %403, %405 : vector<8x256xf32>
    %412 = arith.mulf %385, %367 : vector<8x256xf32>
    %413 = arith.mulf %388, %370 : vector<8x256xf32>
    %414 = arith.subf %412, %413 : vector<8x256xf32>
    %415 = arith.mulf %385, %370 : vector<8x256xf32>
    %416 = arith.mulf %388, %367 : vector<8x256xf32>
    %417 = arith.addf %415, %416 : vector<8x256xf32>
    %418 = arith.mulf %391, %373 : vector<8x256xf32>
    %419 = arith.mulf %394, %376 : vector<8x256xf32>
    %420 = arith.subf %418, %419 : vector<8x256xf32>
    %421 = arith.mulf %391, %376 : vector<8x256xf32>
    %422 = arith.mulf %394, %373 : vector<8x256xf32>
    %423 = arith.addf %421, %422 : vector<8x256xf32>
    %424 = arith.addf %414, %420 : vector<8x256xf32>
    %425 = arith.addf %417, %423 : vector<8x256xf32>
    %426 = arith.mulf %391, %367 : vector<8x256xf32>
    %427 = arith.mulf %394, %370 : vector<8x256xf32>
    %428 = arith.subf %426, %427 : vector<8x256xf32>
    %429 = arith.mulf %391, %370 : vector<8x256xf32>
    %430 = arith.mulf %394, %367 : vector<8x256xf32>
    %431 = arith.addf %429, %430 : vector<8x256xf32>
    %432 = arith.mulf %385, %373 : vector<8x256xf32>
    %433 = arith.mulf %388, %376 : vector<8x256xf32>
    %434 = arith.subf %432, %433 : vector<8x256xf32>
    %435 = arith.mulf %385, %376 : vector<8x256xf32>
    %436 = arith.mulf %388, %373 : vector<8x256xf32>
    %437 = arith.addf %435, %436 : vector<8x256xf32>
    %438 = arith.addf %428, %434 : vector<8x256xf32>
    %439 = arith.addf %431, %437 : vector<8x256xf32>
    %440 = arith.mulf %406, %424 : vector<8x256xf32>
    %441 = arith.mulf %409, %425 : vector<8x256xf32>
    %442 = arith.subf %440, %441 : vector<8x256xf32>
    %443 = arith.mulf %406, %425 : vector<8x256xf32>
    %444 = arith.mulf %409, %424 : vector<8x256xf32>
    %445 = arith.addf %443, %444 : vector<8x256xf32>
    %446 = arith.mulf %410, %438 : vector<8x256xf32>
    %447 = arith.mulf %411, %439 : vector<8x256xf32>
    %448 = arith.subf %446, %447 : vector<8x256xf32>
    %449 = arith.mulf %410, %439 : vector<8x256xf32>
    %450 = arith.mulf %411, %438 : vector<8x256xf32>
    %451 = arith.addf %449, %450 : vector<8x256xf32>
    %c48 = arith.constant 48 : index
    %c0_61 = arith.constant 0 : index
    %452 = vector.load %arg2[%c48, %c0_61] : memref<56x256xf32, #tpu.memory_space<vmem>>, vector<1x256xf32>
    %453 = vector.shape_cast %452 : vector<1x256xf32> to vector<1x256xf32>
    %454 = vector.broadcast %453 : vector<1x256xf32> to vector<8x256xf32>
    %c49 = arith.constant 49 : index
    %c0_62 = arith.constant 0 : index
    %455 = vector.load %arg2[%c49, %c0_62] : memref<56x256xf32, #tpu.memory_space<vmem>>, vector<1x256xf32>
    %456 = vector.shape_cast %455 : vector<1x256xf32> to vector<1x256xf32>
    %457 = vector.broadcast %456 : vector<1x256xf32> to vector<8x256xf32>
    %c50 = arith.constant 50 : index
    %c0_63 = arith.constant 0 : index
    %458 = vector.load %arg2[%c50, %c0_63] : memref<56x256xf32, #tpu.memory_space<vmem>>, vector<1x256xf32>
    %459 = vector.shape_cast %458 : vector<1x256xf32> to vector<1x256xf32>
    %460 = vector.broadcast %459 : vector<1x256xf32> to vector<8x256xf32>
    %c51 = arith.constant 51 : index
    %c0_64 = arith.constant 0 : index
    %461 = vector.load %arg2[%c51, %c0_64] : memref<56x256xf32, #tpu.memory_space<vmem>>, vector<1x256xf32>
    %462 = vector.shape_cast %461 : vector<1x256xf32> to vector<1x256xf32>
    %463 = vector.broadcast %462 : vector<1x256xf32> to vector<8x256xf32>
    %c52 = arith.constant 52 : index
    %c0_65 = arith.constant 0 : index
    %464 = vector.load %arg2[%c52, %c0_65] : memref<56x256xf32, #tpu.memory_space<vmem>>, vector<1x256xf32>
    %465 = vector.shape_cast %464 : vector<1x256xf32> to vector<1x256xf32>
    %466 = vector.broadcast %465 : vector<1x256xf32> to vector<8x256xf32>
    %467 = arith.mulf %454, %442 : vector<8x256xf32>
    %468 = arith.mulf %457, %445 : vector<8x256xf32>
    %469 = arith.subf %467, %468 : vector<8x256xf32>
    %470 = arith.mulf %454, %445 : vector<8x256xf32>
    %471 = arith.mulf %457, %442 : vector<8x256xf32>
    %472 = arith.addf %470, %471 : vector<8x256xf32>
    %473 = arith.mulf %460, %448 : vector<8x256xf32>
    %474 = arith.mulf %463, %451 : vector<8x256xf32>
    %475 = arith.subf %473, %474 : vector<8x256xf32>
    %476 = arith.mulf %460, %451 : vector<8x256xf32>
    %477 = arith.mulf %463, %448 : vector<8x256xf32>
    %478 = arith.addf %476, %477 : vector<8x256xf32>
    %479 = arith.addf %469, %475 : vector<8x256xf32>
    %480 = arith.addf %472, %478 : vector<8x256xf32>
    %481 = arith.mulf %479, %479 : vector<8x256xf32>
    %482 = arith.mulf %480, %480 : vector<8x256xf32>
    %483 = arith.addf %481, %482 : vector<8x256xf32>
    %484 = tpu.reciprocal %483 : vector<8x256xf32> -> vector<8x256xf32>
    %485 = arith.mulf %466, %484 : vector<8x256xf32>
    %c0_66 = arith.constant 0 : index
    %c0_67 = arith.constant 0 : index
    %486 = vector.load %arg3[%c0_66, %c0_67] : memref<8x256xf32, #tpu.memory_space<vmem>>, vector<8x256xf32>
    tpu.vector_store %arg3[%c0_66, %c0_67], %485 {strides = array<i32>} : memref<8x256xf32, #tpu.memory_space<vmem>>, vector<8x256xf32>,
    return
  }
  func.func @transform_0(%arg0: i32) -> (i32, i32) {
    %c0_i32 = arith.constant 0 : i32
    %c0_i32_0 = arith.constant 0 : i32
    %c0_i32_1 = arith.constant 0 : i32
    return %c0_i32, %c0_i32_0 : i32, i32
  }
  func.func @transform_1(%arg0: i32) -> (i32, i32) {
    %c0_i32 = arith.constant 0 : i32
    %c0_i32_0 = arith.constant 0 : i32
    return %c0_i32, %arg0 : i32, i32
  }
  func.func @transform_2(%arg0: i32) -> (i32, i32) {
    %c0_i32 = arith.constant 0 : i32
    %c0_i32_0 = arith.constant 0 : i32
    return %c0_i32, %arg0 : i32, i32
  }
}

</mosaic_0001>

<llo_original>
// kernel: tpu_custom_call.1
$region0: #{tpu_custom_call.1}
  #allocation0 [shape = 'u32[]', space=smem, size = 0x4, offset = 0x4, fixed_abs, tag = 'smem constant byte address 0x4 - core index']
  #allocation1 [shape = 'u32[144,128]{1,0:T(1,128)}', space=vmem, size = 0x12000, scoped, tag = 'internal scratch']
  %s0 = inlined_call_operand.hbm [shape: f32[8,6], index: 0, kind: input, shape index: {}]
  %s1 = inlined_call_operand.hbm [shape: f32[56,256], index: 1, kind: input, shape index: {}]
  %s2 = inlined_call_operand.hbm [shape: f32[8,256], index: 2, kind: output, shape index: {}]
  %s3 = sld [smem:[#allocation0]]
  $region26: #{tpu_custom_call.1} parent=0
    _
  %s5 = ssub.s32 1, %s3
  %s6 = scalar_select 0, %s5, %s3
  $region1: #{tpu_custom_call.1} parent=0
    #allocation2 [shape = 'u8[4096]{0}', space=vmem, size = 0x1000, scoped, tag = 'input window, operand 0, single buffered']
    #allocation3 [shape = 's32[1]{0}', space=sflag, size = 0x4, scoped, tag = 'scoped memory for tpu_custom_call.1']
    #allocation4 [shape = 's32[1]{0}', space=sflag, size = 0x4, scoped, tag = 'scoped memory for tpu_custom_call.1']
    #allocation5 [shape = 'u8[57344]{0}', space=vmem, size = 0xe000, scoped, tag = 'input window, operand 1, single buffered']
    #allocation6 [shape = 's32[1]{0}', space=sflag, size = 0x4, scoped, tag = 'scoped memory for tpu_custom_call.1']
    #allocation7 [shape = 'u8[8192]{0}', space=vmem, size = 0x2000, scoped, tag = 'output window, operand 0, single buffered']
    %7 = vsyncpa [#allocation3], 0
    %8 = vsyncpa [#allocation6], 0
    %9 = vsyncpa [#allocation4], 0
    // Predicated region
    $region2: #{tpu_custom_call.1} parent=1 // pred_check
      _
    $region3: #{tpu_custom_call.1} parent=1 // pred_check_branch
      %11 = sbr.rel (0) target = $region5
    $region4: #{tpu_custom_call.1} parent=1 // pred_region
      %s13 = ssub.s32 128, 128
      %14 = vsyncadd [#allocation3], %s13
      %s16 = sshll.u32 [#allocation2], 4
      %s17 = int_to_ptr.vmem [resolvable:$true] %s16
      %19 = dma.hbm_to_vmem [thread:$0]  %s0, 128, %s17, [#allocation3]
    $region5: #{tpu_custom_call.1} parent=1 // pred_fallthru
      _
    // Predicated region
    $region6: #{tpu_custom_call.1} parent=1 // pred_check
      _
    $region7: #{tpu_custom_call.1} parent=1 // pred_check_branch
      %21 = sbr.rel (0) target = $region9
    $region8: #{tpu_custom_call.1} parent=1 // pred_region
      %s23 = ssub.s32 1792, 1792
      %24 = vsyncadd [#allocation6], %s23
      %s25 = sshll.u32 [#allocation5], 4
      %s26 = int_to_ptr.vmem [resolvable:$true] %s25
      %31 = dma.hbm_to_vmem [thread:$0]  %s1, 1792, %s26, [#allocation6], 256, 256, 16
    $region9: #{tpu_custom_call.1} parent=1 // pred_fallthru
      _
    // Predicated region
    $region10: #{tpu_custom_call.1} parent=1 // pred_check
      _
    $region11: #{tpu_custom_call.1} parent=1 // pred_check_branch
      %33 = sbr.rel (0) target = $region13
    $region12: #{tpu_custom_call.1} parent=1 // pred_region
      %34 = dma.done [#allocation3], 128
    $region13: #{tpu_custom_call.1} parent=1 // pred_fallthru
      _
    // Predicated region
    $region14: #{tpu_custom_call.1} parent=1 // pred_check
      _
    $region15: #{tpu_custom_call.1} parent=1 // pred_check_branch
      %36 = sbr.rel (0) target = $region17
    $region16: #{tpu_custom_call.1} parent=1 // pred_region
      %37 = dma.done [#allocation6], 1792
    $region17: #{tpu_custom_call.1} parent=1 // pred_fallthru
      _
    %s38 = scalar_lea.vmem [#allocation5], 80
    %v39 = vld [vmem:[%s38] ss:$8 sm:$0x3]
    %v41 = vlaneseq
    %v42 = vshrl.u32 %v41, 7
    %v43 = vsub.s32 0, %v42
    %v44 = vrot.slane %v39, %v43
    %v45 = vlaneseq
    %v46 = vshrl.u32 %v45, 7
    %v47 = vsub.s32 1, %v46
    %v48 = vrot.slane %v39, %v47
    %s51 = scalar_lea.vmem [#allocation5], 81
    %v52 = vld [vmem:[%s51] ss:$8 sm:$0x3]
    %v54 = vlaneseq
    %v55 = vshrl.u32 %v54, 7
    %v56 = vsub.s32 0, %v55
    %v57 = vrot.slane %v52, %v56
    %v58 = vlaneseq
    %v59 = vshrl.u32 %v58, 7
    %v60 = vsub.s32 1, %v59
    %v61 = vrot.slane %v52, %v60
    %s64 = scalar_lea.vmem [#allocation5], 82
    %v65 = vld [vmem:[%s64] ss:$8 sm:$0x3]
    %v67 = vlaneseq
    %v68 = vshrl.u32 %v67, 7
    %v69 = vsub.s32 0, %v68
    %v70 = vrot.slane %v65, %v69
    %v71 = vlaneseq
    %v72 = vshrl.u32 %v71, 7
    %v73 = vsub.s32 1, %v72
    %v74 = vrot.slane %v65, %v73
    %s77 = scalar_lea.vmem [#allocation5], 83
    %v78 = vld [vmem:[%s77] ss:$8 sm:$0x3]
    %v80 = vlaneseq
    %v81 = vshrl.u32 %v80, 7
    %v82 = vsub.s32 0, %v81
    %v83 = vrot.slane %v78, %v82
    %v84 = vlaneseq
    %v85 = vshrl.u32 %v84, 7
    %v86 = vsub.s32 1, %v85
    %v87 = vrot.slane %v78, %v86
    %s90 = scalar_lea.vmem [#allocation5], 84
    %v91 = vld [vmem:[%s90] ss:$8 sm:$0x3]
    %v93 = vlaneseq
    %v94 = vshrl.u32 %v93, 7
    %v95 = vsub.s32 0, %v94
    %v96 = vrot.slane %v91, %v95
    %v97 = vlaneseq
    %v98 = vshrl.u32 %v97, 7
    %v99 = vsub.s32 1, %v98
    %v100 = vrot.slane %v91, %v99
    %s103 = scalar_lea.vmem [#allocation5], 85
    %v104 = vld [vmem:[%s103] ss:$8 sm:$0x3]
    %v106 = vlaneseq
    %v107 = vshrl.u32 %v106, 7
    %v108 = vsub.s32 0, %v107
    %v109 = vrot.slane %v104, %v108
    %v110 = vlaneseq
    %v111 = vshrl.u32 %v110, 7
    %v112 = vsub.s32 1, %v111
    %v113 = vrot.slane %v104, %v112
    %v116 = vld [vmem:[#allocation2] sm:$0xff]
    %118 = vset.pattern.permute.xlu0 5
    %119 = vperm.xlu0 %118, %v116
    %v120 = vpop.permute.xlu0 %119
    %v122 = vmul.f32 %v120, %v44
    %v123 = vmul.f32 %v120, %v48
    %v124 = vmul.f32 %v120, %v57
    %v125 = vmul.f32 %v120, %v61
    %v126 = vmul.f32 %v124, 1.442695
    %v127 = vpow.pop %v126
    %v128 = vmul.f32 %v125, 1.442695
    %v129 = vpow.pop %v128
    %v130 = vsub.f32 0.0, %v124
    %v131 = vsub.f32 0.0, %v125
    %v132 = vmul.f32 %v130, 1.442695
    %v133 = vpow.pop %v132
    %v134 = vmul.f32 %v131, 1.442695
    %v135 = vpow.pop %v134
    %v136 = vand.u32 2147483647, %v122
    %vm137 = vcmp.le.f32.partialorder %v136, 0.7853982
    %vm138 = vcmp.lt.s32.totalorder %v122, 0
    %v139 = vand.u32 %v122, 2139095040
    %v140 = vshrl.u32 %v139, 23
    %v141 = vsub.s32 %v140, 127
    %v142 = vand.u32 2147483647, %v122
    %v143 = vand.u32 %v142, 8388607
    %v144 = vor.u32 %v143, 8388608
    %v145 = vsub.s32 0, %v144
    %v146 = vadd.s32 %v141, 1
    %vm147 = vcmp.gt.s32.totalorder %v146, 0
    %v148 = vsel %vm147, %v146, 0
    %v149 = vshrl.u32 %v148, 5
    %v150 = vand.u32 %v148, 31
    %v151 = vsub.s32 32, %v150
    %v152 = vshrl.u32 683565275, %v151
    %v153 = vshll.u32 683565275, %v150
    %v154 = vshrl.u32 2475754826, %v151
    %v155 = vor.u32 %v153, %v154
    %v156 = vshll.u32 2475754826, %v150
    %v157 = vshrl.u32 2131351028, %v151
    %v158 = vor.u32 %v156, %v157
    %v159 = vshll.u32 2131351028, %v150
    %v160 = vshrl.u32 2102212464, %v151
    %v161 = vor.u32 %v159, %v160
    %v162 = vshll.u32 2102212464, %v150
    %v163 = vshrl.u32 920167782, %v151
    %v164 = vor.u32 %v162, %v163
    %v165 = vshll.u32 920167782, %v150
    %v166 = vshrl.u32 1326507024, %v151
    %v167 = vor.u32 %v165, %v166
    %vm168 = vcmp.lt.s32.totalorder %v149, 1
    %vm169 = vcmp.lt.s32.totalorder %v149, 2
    %vm170 = vcmp.lt.s32.totalorder %v149, 3
    %vm171 = vcmp.lt.s32.totalorder %v149, 4
    %v172 = vsel %vm168, %v152, %v155
    %v173 = vsel %vm171, %v161, 2102212464
    %v174 = vsel %vm170, %v158, %v173
    %v175 = vsel %vm169, %v172, %v174
    %v176 = vsel %vm168, %v155, %v158
    %v177 = vsel %vm171, %v164, 920167782
    %v178 = vsel %vm170, %v161, %v177
    %v179 = vsel %vm169, %v176, %v178
    %v180 = vsel %vm168, %v158, %v161
    %v181 = vsel %vm171, %v167, 1326507024
    %v182 = vsel %vm170, %v164, %v181
    %v183 = vsel %vm169, %v180, %v182
    %v184 = vshll.u32 %v144, 8
    %v185 = vmul.u32.u64.compose %v184, %v183
    %v186 = vextract.low.u32 %v185
    %v187 = vextract.high.u32 %v185
    %v188 = vmul.u32.u64.compose %v184, %v179
    %v189 = vextract.low.u32 %v188
    %v190 = vextract.high.u32 %v188
    %v191 = vmul.u32 %v184, %v175
    %v192 = vadd.s32 %v187, %v189
    %vm193 = vc.u32 %v187, %v189
    %v194 = vadd.s32 %v190, 1
    %v195 = vsel %vm193, %v194, %v190
    %v196 = vadd.s32 %v191, %v195
    %v197 = vadd.s32 %v196, 536870912
    %v198 = vshrl.u32 %v197, 30
    %v199 = vshll.u32 %v198, 30
    %v200 = vsub.s32 %v196, %v199
    %vm201 = vcmp.lt.s32.totalorder %v200, 0
    %v202 = vsub.s32 0, %v200
    %v203 = vsel %vm201, %v202, %v200
    %v204 = vclz %v203
    %v205 = vsub.s32 %v204, 2
    %vm206 = vcmp.gt.s32.totalorder 0, %v205
    %v207 = vsel %vm206, 0, %v205
    %v208 = vsub.s32 32, %v207
    %v209 = vshll.u32 %v200, %v207
    %v210 = vshrl.u32 %v192, %v208
    %v211 = vor.u32 %v209, %v210
    %v212 = vsub.s32 4294967266, %v207
    %v213 = vadd.s32 %v212, 127
    %v214 = vshll.u32 %v213, 23
    %v215 = vor.u32 4788187, %v214
    %v216 = vand.u32 2147483647, %v215
    %v218 = vcvt.s32.f32 %v211
    %v219 = vmul.f32 %v218, %v216
    %v220 = vxor.u32 %v219, 2147483648
    %v221 = vsel %vm138, %v220, %v219
    %v222 = vsub.s32 4, %v198
    %v223 = vsel %vm138, %v222, %v198
    %v224 = vsel %vm137, %v122, %v221
    %v225 = vsel %vm137, 0, %v223
    %v226 = vcosq.f32.pop %v224
    %v227 = vsinq.f32.pop %v224
    %vm228 = vweird.f32 %v122
    %v229 = vand.u32 %v225, 3
    %vm230 = vcmp.lt.s32.totalorder %v229, 2
    %vm231 = vcmp.eq.s32.totalorder %v229, 0
    %v232 = vxor.u32 %v227, 2147483648
    %v233 = vsel %vm231, %v226, %v232
    %vm234 = vcmp.eq.s32.totalorder %v229, 2
    %v235 = vxor.u32 %v226, 2147483648
    %v236 = vsel %vm234, %v235, %v227
    %v237 = vsel %vm230, %v233, %v236
    %v238 = vsel %vm228, nan, %v237
    %v239 = vand.u32 2147483647, %v123
    %vm240 = vcmp.le.f32.partialorder %v239, 0.7853982
    %vm241 = vcmp.lt.s32.totalorder %v123, 0
    %v242 = vand.u32 %v123, 2139095040
    %v243 = vshrl.u32 %v242, 23
    %v244 = vsub.s32 %v243, 127
    %v245 = vand.u32 2147483647, %v123
    %v246 = vand.u32 %v245, 8388607
    %v247 = vor.u32 %v246, 8388608
    %v248 = vsub.s32 0, %v247
    %v249 = vadd.s32 %v244, 1
    %vm250 = vcmp.gt.s32.totalorder %v249, 0
    %v251 = vsel %vm250, %v249, 0
    %v252 = vshrl.u32 %v251, 5
    %v253 = vand.u32 %v251, 31
    %v254 = vsub.s32 32, %v253
    %v255 = vshrl.u32 683565275, %v254
    %v256 = vshll.u32 683565275, %v253
    %v257 = vshrl.u32 2475754826, %v254
    %v258 = vor.u32 %v256, %v257
    %v259 = vshll.u32 2475754826, %v253
    %v260 = vshrl.u32 2131351028, %v254
    %v261 = vor.u32 %v259, %v260
    %v262 = vshll.u32 2131351028, %v253
    %v263 = vshrl.u32 2102212464, %v254
    %v264 = vor.u32 %v262, %v263
    %v265 = vshll.u32 2102212464, %v253
    %v266 = vshrl.u32 920167782, %v254
    %v267 = vor.u32 %v265, %v266
    %v268 = vshll.u32 920167782, %v253
    %v269 = vshrl.u32 1326507024, %v254
    %v270 = vor.u32 %v268, %v269
    %vm271 = vcmp.lt.s32.totalorder %v252, 1
    %vm272 = vcmp.lt.s32.totalorder %v252, 2
    %vm273 = vcmp.lt.s32.totalorder %v252, 3
    %vm274 = vcmp.lt.s32.totalorder %v252, 4
    %v275 = vsel %vm271, %v255, %v258
    %v276 = vsel %vm274, %v264, 2102212464
    %v277 = vsel %vm273, %v261, %v276
    %v278 = vsel %vm272, %v275, %v277
    %v279 = vsel %vm271, %v258, %v261
    %v280 = vsel %vm274, %v267, 920167782
    %v281 = vsel %vm273, %v264, %v280
    %v282 = vsel %vm272, %v279, %v281
    %v283 = vsel %vm271, %v261, %v264
    %v284 = vsel %vm274, %v270, 1326507024
    %v285 = vsel %vm273, %v267, %v284
    %v286 = vsel %vm272, %v283, %v285
    %v287 = vshll.u32 %v247, 8
    %v288 = vmul.u32.u64.compose %v287, %v286
    %v289 = vextract.low.u32 %v288
    %v290 = vextract.high.u32 %v288
    %v291 = vmul.u32.u64.compose %v287, %v282
    %v292 = vextract.low.u32 %v291
    %v293 = vextract.high.u32 %v291
    %v294 = vmul.u32 %v287, %v278
    %v295 = vadd.s32 %v290, %v292
    %vm296 = vc.u32 %v290, %v292
    %v297 = vadd.s32 %v293, 1
    %v298 = vsel %vm296, %v297, %v293
    %v299 = vadd.s32 %v294, %v298
    %v300 = vadd.s32 %v299, 536870912
    %v301 = vshrl.u32 %v300, 30
    %v302 = vshll.u32 %v301, 30
    %v303 = vsub.s32 %v299, %v302
    %vm304 = vcmp.lt.s32.totalorder %v303, 0
    %v305 = vsub.s32 0, %v303
    %v306 = vsel %vm304, %v305, %v303
    %v307 = vclz %v306
    %v308 = vsub.s32 %v307, 2
    %vm309 = vcmp.gt.s32.totalorder 0, %v308
    %v310 = vsel %vm309, 0, %v308
    %v311 = vsub.s32 32, %v310
    %v312 = vshll.u32 %v303, %v310
    %v313 = vshrl.u32 %v295, %v311
    %v314 = vor.u32 %v312, %v313
    %v315 = vsub.s32 4294967266, %v310
    %v316 = vadd.s32 %v315, 127
    %v317 = vshll.u32 %v316, 23
    %v318 = vor.u32 4788187, %v317
    %v319 = vand.u32 2147483647, %v318
    %v321 = vcvt.s32.f32 %v314
    %v322 = vmul.f32 %v321, %v319
    %v323 = vxor.u32 %v322, 2147483648
    %v324 = vsel %vm241, %v323, %v322
    %v325 = vsub.s32 4, %v301
    %v326 = vsel %vm241, %v325, %v301
    %v327 = vsel %vm240, %v123, %v324
    %v328 = vsel %vm240, 0, %v326
    %v329 = vcosq.f32.pop %v327
    %v330 = vsinq.f32.pop %v327
    %vm331 = vweird.f32 %v123
    %v332 = vand.u32 %v328, 3
    %vm333 = vcmp.lt.s32.totalorder %v332, 2
    %vm334 = vcmp.eq.s32.totalorder %v332, 0
    %v335 = vxor.u32 %v330, 2147483648
    %v336 = vsel %vm334, %v329, %v335
    %vm337 = vcmp.eq.s32.totalorder %v332, 2
    %v338 = vxor.u32 %v329, 2147483648
    %v339 = vsel %vm337, %v338, %v330
    %v340 = vsel %vm333, %v336, %v339
    %v341 = vsel %vm331, nan, %v340
    %v342 = vand.u32 2147483647, %v122
    %vm343 = vcmp.le.f32.partialorder %v342, 0.7853982
    %vm344 = vcmp.lt.s32.totalorder %v122, 0
    %v345 = vand.u32 %v122, 2139095040
    %v346 = vshrl.u32 %v345, 23
    %v347 = vsub.s32 %v346, 127
    %v348 = vand.u32 2147483647, %v122
    %v349 = vand.u32 %v348, 8388607
    %v350 = vor.u32 %v349, 8388608
    %v351 = vsub.s32 0, %v350
    %v352 = vadd.s32 %v347, 1
    %vm353 = vcmp.gt.s32.totalorder %v352, 0
    %v354 = vsel %vm353, %v352, 0
    %v355 = vshrl.u32 %v354, 5
    %v356 = vand.u32 %v354, 31
    %v357 = vsub.s32 32, %v356
    %v358 = vshrl.u32 683565275, %v357
    %v359 = vshll.u32 683565275, %v356
    %v360 = vshrl.u32 2475754826, %v357
    %v361 = vor.u32 %v359, %v360
    %v362 = vshll.u32 2475754826, %v356
    %v363 = vshrl.u32 2131351028, %v357
    %v364 = vor.u32 %v362, %v363
    %v365 = vshll.u32 2131351028, %v356
    %v366 = vshrl.u32 2102212464, %v357
    %v367 = vor.u32 %v365, %v366
    %v368 = vshll.u32 2102212464, %v356
    %v369 = vshrl.u32 920167782, %v357
    %v370 = vor.u32 %v368, %v369
    %v371 = vshll.u32 920167782, %v356
    %v372 = vshrl.u32 1326507024, %v357
    %v373 = vor.u32 %v371, %v372
    %vm374 = vcmp.lt.s32.totalorder %v355, 1
    %vm375 = vcmp.lt.s32.totalorder %v355, 2
    %vm376 = vcmp.lt.s32.totalorder %v355, 3
    %vm377 = vcmp.lt.s32.totalorder %v355, 4
    %v378 = vsel %vm374, %v358, %v361
    %v379 = vsel %vm377, %v367, 2102212464
    %v380 = vsel %vm376, %v364, %v379
    %v381 = vsel %vm375, %v378, %v380
    %v382 = vsel %vm374, %v361, %v364
    %v383 = vsel %vm377, %v370, 920167782
    %v384 = vsel %vm376, %v367, %v383
    %v385 = vsel %vm375, %v382, %v384
    %v386 = vsel %vm374, %v364, %v367
    %v387 = vsel %vm377, %v373, 1326507024
    %v388 = vsel %vm376, %v370, %v387
    %v389 = vsel %vm375, %v386, %v388
    %v390 = vshll.u32 %v350, 8
    %v391 = vmul.u32.u64.compose %v390, %v389
    %v392 = vextract.low.u32 %v391
    %v393 = vextract.high.u32 %v391
    %v394 = vmul.u32.u64.compose %v390, %v385
    %v395 = vextract.low.u32 %v394
    %v396 = vextract.high.u32 %v394
    %v397 = vmul.u32 %v390, %v381
    %v398 = vadd.s32 %v393, %v395
    %vm399 = vc.u32 %v393, %v395
    %v400 = vadd.s32 %v396, 1
    %v401 = vsel %vm399, %v400, %v396
    %v402 = vadd.s32 %v397, %v401
    %v403 = vadd.s32 %v402, 536870912
    %v404 = vshrl.u32 %v403, 30
    %v405 = vshll.u32 %v404, 30
    %v406 = vsub.s32 %v402, %v405
    %vm407 = vcmp.lt.s32.totalorder %v406, 0
    %v408 = vsub.s32 0, %v406
    %v409 = vsel %vm407, %v408, %v406
    %v410 = vclz %v409
    %v411 = vsub.s32 %v410, 2
    %vm412 = vcmp.gt.s32.totalorder 0, %v411
    %v413 = vsel %vm412, 0, %v411
    %v414 = vsub.s32 32, %v413
    %v415 = vshll.u32 %v406, %v413
    %v416 = vshrl.u32 %v398, %v414
    %v417 = vor.u32 %v415, %v416
    %v418 = vsub.s32 4294967266, %v413
    %v419 = vadd.s32 %v418, 127
    %v420 = vshll.u32 %v419, 23
    %v421 = vor.u32 4788187, %v420
    %v422 = vand.u32 2147483647, %v421
    %v424 = vcvt.s32.f32 %v417
    %v425 = vmul.f32 %v424, %v422
    %v426 = vxor.u32 %v425, 2147483648
    %v427 = vsel %vm344, %v426, %v425
    %v428 = vsub.s32 4, %v404
    %v429 = vsel %vm344, %v428, %v404
    %v430 = vsel %vm343, %v122, %v427
    %v431 = vsel %vm343, 0, %v429
    %v432 = vcosq.f32.pop %v430
    %v433 = vsinq.f32.pop %v430
    %vm434 = vweird.f32 %v122
    %v435 = vadd.s32 %v431, 3
    %v436 = vand.u32 %v435, 3
    %vm437 = vcmp.lt.s32.totalorder %v436, 2
    %vm438 = vcmp.eq.s32.totalorder %v436, 0
    %v439 = vxor.u32 %v433, 2147483648
    %v440 = vsel %vm438, %v432, %v439
    %vm441 = vcmp.eq.s32.totalorder %v436, 2
    %v442 = vxor.u32 %v432, 2147483648
    %v443 = vsel %vm441, %v442, %v433
    %v444 = vsel %vm437, %v440, %v443
    %v445 = vsel %vm434, nan, %v444
    %v446 = vand.u32 2147483647, %v123
    %vm447 = vcmp.le.f32.partialorder %v446, 0.7853982
    %vm448 = vcmp.lt.s32.totalorder %v123, 0
    %v449 = vand.u32 %v123, 2139095040
    %v450 = vshrl.u32 %v449, 23
    %v451 = vsub.s32 %v450, 127
    %v452 = vand.u32 2147483647, %v123
    %v453 = vand.u32 %v452, 8388607
    %v454 = vor.u32 %v453, 8388608
    %v455 = vsub.s32 0, %v454
    %v456 = vadd.s32 %v451, 1
    %vm457 = vcmp.gt.s32.totalorder %v456, 0
    %v458 = vsel %vm457, %v456, 0
    %v459 = vshrl.u32 %v458, 5
    %v460 = vand.u32 %v458, 31
    %v461 = vsub.s32 32, %v460
    %v462 = vshrl.u32 683565275, %v461
    %v463 = vshll.u32 683565275, %v460
    %v464 = vshrl.u32 2475754826, %v461
    %v465 = vor.u32 %v463, %v464
    %v466 = vshll.u32 2475754826, %v460
    %v467 = vshrl.u32 2131351028, %v461
    %v468 = vor.u32 %v466, %v467
    %v469 = vshll.u32 2131351028, %v460
    %v470 = vshrl.u32 2102212464, %v461
    %v471 = vor.u32 %v469, %v470
    %v472 = vshll.u32 2102212464, %v460
    %v473 = vshrl.u32 920167782, %v461
    %v474 = vor.u32 %v472, %v473
    %v475 = vshll.u32 920167782, %v460
    %v476 = vshrl.u32 1326507024, %v461
    %v477 = vor.u32 %v475, %v476
    %vm478 = vcmp.lt.s32.totalorder %v459, 1
    %vm479 = vcmp.lt.s32.totalorder %v459, 2
    %vm480 = vcmp.lt.s32.totalorder %v459, 3
    %vm481 = vcmp.lt.s32.totalorder %v459, 4
    %v482 = vsel %vm478, %v462, %v465
    %v483 = vsel %vm481, %v471, 2102212464
    %v484 = vsel %vm480, %v468, %v483
    %v485 = vsel %vm479, %v482, %v484
    %v486 = vsel %vm478, %v465, %v468
    %v487 = vsel %vm481, %v474, 920167782
    %v488 = vsel %vm480, %v471, %v487
    %v489 = vsel %vm479, %v486, %v488
    %v490 = vsel %vm478, %v468, %v471
    %v491 = vsel %vm481, %v477, 1326507024
    %v492 = vsel %vm480, %v474, %v491
    %v493 = vsel %vm479, %v490, %v492
    %v494 = vshll.u32 %v454, 8
    %v495 = vmul.u32.u64.compose %v494, %v493
    %v496 = vextract.low.u32 %v495
    %v497 = vextract.high.u32 %v495
    %v498 = vmul.u32.u64.compose %v494, %v489
    %v499 = vextract.low.u32 %v498
    %v500 = vextract.high.u32 %v498
    %v501 = vmul.u32 %v494, %v485
    %v502 = vadd.s32 %v497, %v499
    %vm503 = vc.u32 %v497, %v499
    %v504 = vadd.s32 %v500, 1
    %v505 = vsel %vm503, %v504, %v500
    %v506 = vadd.s32 %v501, %v505
    %v507 = vadd.s32 %v506, 536870912
    %v508 = vshrl.u32 %v507, 30
    %v509 = vshll.u32 %v508, 30
    %v510 = vsub.s32 %v506, %v509
    %vm511 = vcmp.lt.s32.totalorder %v510, 0
    %v512 = vsub.s32 0, %v510
    %v513 = vsel %vm511, %v512, %v510
    %v514 = vclz %v513
    %v515 = vsub.s32 %v514, 2
    %vm516 = vcmp.gt.s32.totalorder 0, %v515
    %v517 = vsel %vm516, 0, %v515
    %v518 = vsub.s32 32, %v517
    %v519 = vshll.u32 %v510, %v517
    %v520 = vshrl.u32 %v502, %v518
    %v521 = vor.u32 %v519, %v520
    %v522 = vsub.s32 4294967266, %v517
    %v523 = vadd.s32 %v522, 127
    %v524 = vshll.u32 %v523, 23
    %v525 = vor.u32 4788187, %v524
    %v526 = vand.u32 2147483647, %v525
    %v528 = vcvt.s32.f32 %v521
    %v529 = vmul.f32 %v528, %v526
    %v530 = vxor.u32 %v529, 2147483648
    %v531 = vsel %vm448, %v530, %v529
    %v532 = vsub.s32 4, %v508
    %v533 = vsel %vm448, %v532, %v508
    %v534 = vsel %vm447, %v123, %v531
    %v535 = vsel %vm447, 0, %v533
    %v536 = vcosq.f32.pop %v534
    %v537 = vsinq.f32.pop %v534
    %vm538 = vweird.f32 %v123
    %v539 = vadd.s32 %v535, 3
    %v540 = vand.u32 %v539, 3
    %vm541 = vcmp.lt.s32.totalorder %v540, 2
    %vm542 = vcmp.eq.s32.totalorder %v540, 0
    %v543 = vxor.u32 %v537, 2147483648
    %v544 = vsel %vm542, %v536, %v543
    %vm545 = vcmp.eq.s32.totalorder %v540, 2
    %v546 = vxor.u32 %v536, 2147483648
    %v547 = vsel %vm545, %v546, %v537
    %v548 = vsel %vm541, %v544, %v547
    %v549 = vsel %vm538, nan, %v548
    %v550 = vmul.f32 %v127, %v238
    %v551 = vmul.f32 %v129, %v341
    %v552 = vmul.f32 %v127, %v445
    %v553 = vmul.f32 %v129, %v549
    %v554 = vsub.f32 0.0, %v552
    %v555 = vsub.f32 0.0, %v553
    %v556 = vmul.f32 %v133, %v238
    %v557 = vmul.f32 %v135, %v341
    %v558 = vmul.f32 %v133, %v445
    %v559 = vmul.f32 %v135, %v549
    %v560 = vmul.f32 %v83, 0.0
    %v561 = vmul.f32 %v87, 0.0
    %v562 = vsub.f32 %v70, %v560
    %v563 = vsub.f32 %v74, %v561
    %v564 = vmul.f32 %v70, 0.0
    %v565 = vmul.f32 %v74, 0.0
    %v566 = vadd.f32 %v564, %v83
    %v567 = vadd.f32 %v565, %v87
    %v568 = vmul.f32 %v96, 0.0
    %v569 = vmul.f32 %v100, 0.0
    %v570 = vmul.f32 %v109, 0.0
    %v571 = vmul.f32 %v113, 0.0
    %v572 = vsub.f32 %v568, %v570
    %v573 = vsub.f32 %v569, %v571
    %v574 = vadd.f32 %v568, %v570
    %v575 = vadd.f32 %v569, %v571
    %v576 = vadd.f32 %v562, %v572
    %v577 = vadd.f32 %v563, %v573
    %v578 = vadd.f32 %v566, %v574
    %v579 = vadd.f32 %v567, %v575
    %v580 = vsub.f32 %v96, %v570
    %v581 = vsub.f32 %v100, %v571
    %v582 = vadd.f32 %v568, %v109
    %v583 = vadd.f32 %v569, %v113
    %v584 = vsub.f32 %v564, %v560
    %v585 = vsub.f32 %v565, %v561
    %v586 = vadd.f32 %v564, %v560
    %v587 = vadd.f32 %v565, %v561
    %v588 = vadd.f32 %v580, %v584
    %v589 = vadd.f32 %v581, %v585
    %v590 = vadd.f32 %v582, %v586
    %v591 = vadd.f32 %v583, %v587
    %v592 = vmul.f32 %v550, %v576
    %v593 = vmul.f32 %v551, %v577
    %v594 = vmul.f32 %v554, %v578
    %v595 = vmul.f32 %v555, %v579
    %v596 = vsub.f32 %v592, %v594
    %v597 = vsub.f32 %v593, %v595
    %v598 = vmul.f32 %v550, %v578
    %v599 = vmul.f32 %v551, %v579
    %v600 = vmul.f32 %v554, %v576
    %v601 = vmul.f32 %v555, %v577
    %v602 = vadd.f32 %v598, %v600
    %v603 = vadd.f32 %v599, %v601
    %v604 = vmul.f32 %v556, %v588
    %v605 = vmul.f32 %v557, %v589
    %v606 = vmul.f32 %v558, %v590
    %v607 = vmul.f32 %v559, %v591
    %v608 = vsub.f32 %v604, %v606
    %v609 = vsub.f32 %v605, %v607
    %v610 = vmul.f32 %v556, %v590
    %v611 = vmul.f32 %v557, %v591
    %v612 = vmul.f32 %v558, %v588
    %v613 = vmul.f32 %v559, %v589
    %v614 = vadd.f32 %v610, %v612
    %v615 = vadd.f32 %v611, %v613
    %s616 = scalar_lea.vmem [#allocation5], 64
    %v617 = vld [vmem:[%s616] ss:$8 sm:$0x3]
    %v619 = vlaneseq
    %v620 = vshrl.u32 %v619, 7
    %v621 = vsub.s32 0, %v620
    %v622 = vrot.slane %v617, %v621
    %v623 = vlaneseq
    %v624 = vshrl.u32 %v623, 7
    %v625 = vsub.s32 1, %v624
    %v626 = vrot.slane %v617, %v625
    %s629 = scalar_lea.vmem [#allocation5], 65
    %v630 = vld [vmem:[%s629] ss:$8 sm:$0x3]
    %v632 = vlaneseq
    %v633 = vshrl.u32 %v632, 7
    %v634 = vsub.s32 0, %v633
    %v635 = vrot.slane %v630, %v634
    %v636 = vlaneseq
    %v637 = vshrl.u32 %v636, 7
    %v638 = vsub.s32 1, %v637
    %v639 = vrot.slane %v630, %v638
    %s642 = scalar_lea.vmem [#allocation5], 66
    %v643 = vld [vmem:[%s642] ss:$8 sm:$0x3]
    %v645 = vlaneseq
    %v646 = vshrl.u32 %v645, 7
    %v647 = vsub.s32 0, %v646
    %v648 = vrot.slane %v643, %v647
    %v649 = vlaneseq
    %v650 = vshrl.u32 %v649, 7
    %v651 = vsub.s32 1, %v650
    %v652 = vrot.slane %v643, %v651
    %s655 = scalar_lea.vmem [#allocation5], 67
    %v656 = vld [vmem:[%s655] ss:$8 sm:$0x3]
    %v658 = vlaneseq
    %v659 = vshrl.u32 %v658, 7
    %v660 = vsub.s32 0, %v659
    %v661 = vrot.slane %v656, %v660
    %v662 = vlaneseq
    %v663 = vshrl.u32 %v662, 7
    %v664 = vsub.s32 1, %v663
    %v665 = vrot.slane %v656, %v664
    %s668 = scalar_lea.vmem [#allocation5], 68
    %v669 = vld [vmem:[%s668] ss:$8 sm:$0x3]
    %v671 = vlaneseq
    %v672 = vshrl.u32 %v671, 7
    %v673 = vsub.s32 0, %v672
    %v674 = vrot.slane %v669, %v673
    %v675 = vlaneseq
    %v676 = vshrl.u32 %v675, 7
    %v677 = vsub.s32 1, %v676
    %v678 = vrot.slane %v669, %v677
    %s681 = scalar_lea.vmem [#allocation5], 69
    %v682 = vld [vmem:[%s681] ss:$8 sm:$0x3]
    %v684 = vlaneseq
    %v685 = vshrl.u32 %v684, 7
    %v686 = vsub.s32 0, %v685
    %v687 = vrot.slane %v682, %v686
    %v688 = vlaneseq
    %v689 = vshrl.u32 %v688, 7
    %v690 = vsub.s32 1, %v689
    %v691 = vrot.slane %v682, %v690
    %694 = vset.pattern.permute.xlu0 4
    %695 = vperm.xlu0 %694, %v116
    %v696 = vpop.permute.xlu0 %695
    %v698 = vmul.f32 %v696, %v622
    %v699 = vmul.f32 %v696, %v626
    %v700 = vmul.f32 %v696, %v635
    %v701 = vmul.f32 %v696, %v639
    %v702 = vmul.f32 %v700, 1.442695
    %v703 = vpow.pop %v702
    %v704 = vmul.f32 %v701, 1.442695
    %v705 = vpow.pop %v704
    %v706 = vsub.f32 0.0, %v700
    %v707 = vsub.f32 0.0, %v701
    %v708 = vmul.f32 %v706, 1.442695
    %v709 = vpow.pop %v708
    %v710 = vmul.f32 %v707, 1.442695
    %v711 = vpow.pop %v710
    %v712 = vand.u32 2147483647, %v698
    %vm713 = vcmp.le.f32.partialorder %v712, 0.7853982
    %vm714 = vcmp.lt.s32.totalorder %v698, 0
    %v715 = vand.u32 %v698, 2139095040
    %v716 = vshrl.u32 %v715, 23
    %v717 = vsub.s32 %v716, 127
    %v718 = vand.u32 2147483647, %v698
    %v719 = vand.u32 %v718, 8388607
    %v720 = vor.u32 %v719, 8388608
    %v721 = vsub.s32 0, %v720
    %v722 = vadd.s32 %v717, 1
    %vm723 = vcmp.gt.s32.totalorder %v722, 0
    %v724 = vsel %vm723, %v722, 0
    %v725 = vshrl.u32 %v724, 5
    %v726 = vand.u32 %v724, 31
    %v727 = vsub.s32 32, %v726
    %v728 = vshrl.u32 683565275, %v727
    %v729 = vshll.u32 683565275, %v726
    %v730 = vshrl.u32 2475754826, %v727
    %v731 = vor.u32 %v729, %v730
    %v732 = vshll.u32 2475754826, %v726
    %v733 = vshrl.u32 2131351028, %v727
    %v734 = vor.u32 %v732, %v733
    %v735 = vshll.u32 2131351028, %v726
    %v736 = vshrl.u32 2102212464, %v727
    %v737 = vor.u32 %v735, %v736
    %v738 = vshll.u32 2102212464, %v726
    %v739 = vshrl.u32 920167782, %v727
    %v740 = vor.u32 %v738, %v739
    %v741 = vshll.u32 920167782, %v726
    %v742 = vshrl.u32 1326507024, %v727
    %v743 = vor.u32 %v741, %v742
    %vm744 = vcmp.lt.s32.totalorder %v725, 1
    %vm745 = vcmp.lt.s32.totalorder %v725, 2
    %vm746 = vcmp.lt.s32.totalorder %v725, 3
    %vm747 = vcmp.lt.s32.totalorder %v725, 4
    %v748 = vsel %vm744, %v728, %v731
    %v749 = vsel %vm747, %v737, 2102212464
    %v750 = vsel %vm746, %v734, %v749
    %v751 = vsel %vm745, %v748, %v750
    %v752 = vsel %vm744, %v731, %v734
    %v753 = vsel %vm747, %v740, 920167782
    %v754 = vsel %vm746, %v737, %v753
    %v755 = vsel %vm745, %v752, %v754
    %v756 = vsel %vm744, %v734, %v737
    %v757 = vsel %vm747, %v743, 1326507024
    %v758 = vsel %vm746, %v740, %v757
    %v759 = vsel %vm745, %v756, %v758
    %v760 = vshll.u32 %v720, 8
    %v761 = vmul.u32.u64.compose %v760, %v759
    %v762 = vextract.low.u32 %v761
    %v763 = vextract.high.u32 %v761
    %v764 = vmul.u32.u64.compose %v760, %v755
    %v765 = vextract.low.u32 %v764
    %v766 = vextract.high.u32 %v764
    %v767 = vmul.u32 %v760, %v751
    %v768 = vadd.s32 %v763, %v765
    %vm769 = vc.u32 %v763, %v765
    %v770 = vadd.s32 %v766, 1
    %v771 = vsel %vm769, %v770, %v766
    %v772 = vadd.s32 %v767, %v771
    %v773 = vadd.s32 %v772, 536870912
    %v774 = vshrl.u32 %v773, 30
    %v775 = vshll.u32 %v774, 30
    %v776 = vsub.s32 %v772, %v775
    %vm777 = vcmp.lt.s32.totalorder %v776, 0
    %v778 = vsub.s32 0, %v776
    %v779 = vsel %vm777, %v778, %v776
    %v780 = vclz %v779
    %v781 = vsub.s32 %v780, 2
    %vm782 = vcmp.gt.s32.totalorder 0, %v781
    %v783 = vsel %vm782, 0, %v781
    %v784 = vsub.s32 32, %v783
    %v785 = vshll.u32 %v776, %v783
    %v786 = vshrl.u32 %v768, %v784
    %v787 = vor.u32 %v785, %v786
    %v788 = vsub.s32 4294967266, %v783
    %v789 = vadd.s32 %v788, 127
    %v790 = vshll.u32 %v789, 23
    %v791 = vor.u32 4788187, %v790
    %v792 = vand.u32 2147483647, %v791
    %v794 = vcvt.s32.f32 %v787
    %v795 = vmul.f32 %v794, %v792
    %v796 = vxor.u32 %v795, 2147483648
    %v797 = vsel %vm714, %v796, %v795
    %v798 = vsub.s32 4, %v774
    %v799 = vsel %vm714, %v798, %v774
    %v800 = vsel %vm713, %v698, %v797
    %v801 = vsel %vm713, 0, %v799
    %v802 = vcosq.f32.pop %v800
    %v803 = vsinq.f32.pop %v800
    %vm804 = vweird.f32 %v698
    %v805 = vand.u32 %v801, 3
    %vm806 = vcmp.lt.s32.totalorder %v805, 2
    %vm807 = vcmp.eq.s32.totalorder %v805, 0
    %v808 = vxor.u32 %v803, 2147483648
    %v809 = vsel %vm807, %v802, %v808
    %vm810 = vcmp.eq.s32.totalorder %v805, 2
    %v811 = vxor.u32 %v802, 2147483648
    %v812 = vsel %vm810, %v811, %v803
    %v813 = vsel %vm806, %v809, %v812
    %v814 = vsel %vm804, nan, %v813
    %v815 = vand.u32 2147483647, %v699
    %vm816 = vcmp.le.f32.partialorder %v815, 0.7853982
    %vm817 = vcmp.lt.s32.totalorder %v699, 0
    %v818 = vand.u32 %v699, 2139095040
    %v819 = vshrl.u32 %v818, 23
    %v820 = vsub.s32 %v819, 127
    %v821 = vand.u32 2147483647, %v699
    %v822 = vand.u32 %v821, 8388607
    %v823 = vor.u32 %v822, 8388608
    %v824 = vsub.s32 0, %v823
    %v825 = vadd.s32 %v820, 1
    %vm826 = vcmp.gt.s32.totalorder %v825, 0
    %v827 = vsel %vm826, %v825, 0
    %v828 = vshrl.u32 %v827, 5
    %v829 = vand.u32 %v827, 31
    %v830 = vsub.s32 32, %v829
    %v831 = vshrl.u32 683565275, %v830
    %v832 = vshll.u32 683565275, %v829
    %v833 = vshrl.u32 2475754826, %v830
    %v834 = vor.u32 %v832, %v833
    %v835 = vshll.u32 2475754826, %v829
    %v836 = vshrl.u32 2131351028, %v830
    %v837 = vor.u32 %v835, %v836
    %v838 = vshll.u32 2131351028, %v829
    %v839 = vshrl.u32 2102212464, %v830
    %v840 = vor.u32 %v838, %v839
    %v841 = vshll.u32 2102212464, %v829
    %v842 = vshrl.u32 920167782, %v830
    %v843 = vor.u32 %v841, %v842
    %v844 = vshll.u32 920167782, %v829
    %v845 = vshrl.u32 1326507024, %v830
    %v846 = vor.u32 %v844, %v845
    %vm847 = vcmp.lt.s32.totalorder %v828, 1
    %vm848 = vcmp.lt.s32.totalorder %v828, 2
    %vm849 = vcmp.lt.s32.totalorder %v828, 3
    %vm850 = vcmp.lt.s32.totalorder %v828, 4
    %v851 = vsel %vm847, %v831, %v834
    %v852 = vsel %vm850, %v840, 2102212464
    %v853 = vsel %vm849, %v837, %v852
    %v854 = vsel %vm848, %v851, %v853
    %v855 = vsel %vm847, %v834, %v837
    %v856 = vsel %vm850, %v843, 920167782
    %v857 = vsel %vm849, %v840, %v856
    %v858 = vsel %vm848, %v855, %v857
    %v859 = vsel %vm847, %v837, %v840
    %v860 = vsel %vm850, %v846, 1326507024
    %v861 = vsel %vm849, %v843, %v860
    %v862 = vsel %vm848, %v859, %v861
    %v863 = vshll.u32 %v823, 8
    %v864 = vmul.u32.u64.compose %v863, %v862
    %v865 = vextract.low.u32 %v864
    %v866 = vextract.high.u32 %v864
    %v867 = vmul.u32.u64.compose %v863, %v858
    %v868 = vextract.low.u32 %v867
    %v869 = vextract.high.u32 %v867
    %v870 = vmul.u32 %v863, %v854
    %v871 = vadd.s32 %v866, %v868
    %vm872 = vc.u32 %v866, %v868
    %v873 = vadd.s32 %v869, 1
    %v874 = vsel %vm872, %v873, %v869
    %v875 = vadd.s32 %v870, %v874
    %v876 = vadd.s32 %v875, 536870912
    %v877 = vshrl.u32 %v876, 30
    %v878 = vshll.u32 %v877, 30
    %v879 = vsub.s32 %v875, %v878
    %vm880 = vcmp.lt.s32.totalorder %v879, 0
    %v881 = vsub.s32 0, %v879
    %v882 = vsel %vm880, %v881, %v879
    %v883 = vclz %v882
    %v884 = vsub.s32 %v883, 2
    %vm885 = vcmp.gt.s32.totalorder 0, %v884
    %v886 = vsel %vm885, 0, %v884
    %v887 = vsub.s32 32, %v886
    %v888 = vshll.u32 %v879, %v886
    %v889 = vshrl.u32 %v871, %v887
    %v890 = vor.u32 %v888, %v889
    %v891 = vsub.s32 4294967266, %v886
    %v892 = vadd.s32 %v891, 127
    %v893 = vshll.u32 %v892, 23
    %v894 = vor.u32 4788187, %v893
    %v895 = vand.u32 2147483647, %v894
    %v897 = vcvt.s32.f32 %v890
    %v898 = vmul.f32 %v897, %v895
    %v899 = vxor.u32 %v898, 2147483648
    %v900 = vsel %vm817, %v899, %v898
    %v901 = vsub.s32 4, %v877
    %v902 = vsel %vm817, %v901, %v877
    %v903 = vsel %vm816, %v699, %v900
    %v904 = vsel %vm816, 0, %v902
    %v905 = vcosq.f32.pop %v903
    %v906 = vsinq.f32.pop %v903
    %vm907 = vweird.f32 %v699
    %v908 = vand.u32 %v904, 3
    %vm909 = vcmp.lt.s32.totalorder %v908, 2
    %vm910 = vcmp.eq.s32.totalorder %v908, 0
    %v911 = vxor.u32 %v906, 2147483648
    %v912 = vsel %vm910, %v905, %v911
    %vm913 = vcmp.eq.s32.totalorder %v908, 2
    %v914 = vxor.u32 %v905, 2147483648
    %v915 = vsel %vm913, %v914, %v906
    %v916 = vsel %vm909, %v912, %v915
    %v917 = vsel %vm907, nan, %v916
    %v918 = vand.u32 2147483647, %v698
    %vm919 = vcmp.le.f32.partialorder %v918, 0.7853982
    %vm920 = vcmp.lt.s32.totalorder %v698, 0
    %v921 = vand.u32 %v698, 2139095040
    %v922 = vshrl.u32 %v921, 23
    %v923 = vsub.s32 %v922, 127
    %v924 = vand.u32 2147483647, %v698
    %v925 = vand.u32 %v924, 8388607
    %v926 = vor.u32 %v925, 8388608
    %v927 = vsub.s32 0, %v926
    %v928 = vadd.s32 %v923, 1
    %vm929 = vcmp.gt.s32.totalorder %v928, 0
    %v930 = vsel %vm929, %v928, 0
    %v931 = vshrl.u32 %v930, 5
    %v932 = vand.u32 %v930, 31
    %v933 = vsub.s32 32, %v932
    %v934 = vshrl.u32 683565275, %v933
    %v935 = vshll.u32 683565275, %v932
    %v936 = vshrl.u32 2475754826, %v933
    %v937 = vor.u32 %v935, %v936
    %v938 = vshll.u32 2475754826, %v932
    %v939 = vshrl.u32 2131351028, %v933
    %v940 = vor.u32 %v938, %v939
    %v941 = vshll.u32 2131351028, %v932
    %v942 = vshrl.u32 2102212464, %v933
    %v943 = vor.u32 %v941, %v942
    %v944 = vshll.u32 2102212464, %v932
    %v945 = vshrl.u32 920167782, %v933
    %v946 = vor.u32 %v944, %v945
    %v947 = vshll.u32 920167782, %v932
    %v948 = vshrl.u32 1326507024, %v933
    %v949 = vor.u32 %v947, %v948
    %vm950 = vcmp.lt.s32.totalorder %v931, 1
    %vm951 = vcmp.lt.s32.totalorder %v931, 2
    %vm952 = vcmp.lt.s32.totalorder %v931, 3
    %vm953 = vcmp.lt.s32.totalorder %v931, 4
    %v954 = vsel %vm950, %v934, %v937
    %v955 = vsel %vm953, %v943, 2102212464
    %v956 = vsel %vm952, %v940, %v955
    %v957 = vsel %vm951, %v954, %v956
    %v958 = vsel %vm950, %v937, %v940
    %v959 = vsel %vm953, %v946, 920167782
    %v960 = vsel %vm952, %v943, %v959
    %v961 = vsel %vm951, %v958, %v960
    %v962 = vsel %vm950, %v940, %v943
    %v963 = vsel %vm953, %v949, 1326507024
    %v964 = vsel %vm952, %v946, %v963
    %v965 = vsel %vm951, %v962, %v964
    %v966 = vshll.u32 %v926, 8
    %v967 = vmul.u32.u64.compose %v966, %v965
    %v968 = vextract.low.u32 %v967
    %v969 = vextract.high.u32 %v967
    %v970 = vmul.u32.u64.compose %v966, %v961
    %v971 = vextract.low.u32 %v970
    %v972 = vextract.high.u32 %v970
    %v973 = vmul.u32 %v966, %v957
    %v974 = vadd.s32 %v969, %v971
    %vm975 = vc.u32 %v969, %v971
    %v976 = vadd.s32 %v972, 1
    %v977 = vsel %vm975, %v976, %v972
    %v978 = vadd.s32 %v973, %v977
    %v979 = vadd.s32 %v978, 536870912
    %v980 = vshrl.u32 %v979, 30
    %v981 = vshll.u32 %v980, 30
    %v982 = vsub.s32 %v978, %v981
    %vm983 = vcmp.lt.s32.totalorder %v982, 0
    %v984 = vsub.s32 0, %v982
    %v985 = vsel %vm983, %v984, %v982
    %v986 = vclz %v985
    %v987 = vsub.s32 %v986, 2
    %vm988 = vcmp.gt.s32.totalorder 0, %v987
    %v989 = vsel %vm988, 0, %v987
    %v990 = vsub.s32 32, %v989
    %v991 = vshll.u32 %v982, %v989
    %v992 = vshrl.u32 %v974, %v990
    %v993 = vor.u32 %v991, %v992
    %v994 = vsub.s32 4294967266, %v989
    %v995 = vadd.s32 %v994, 127
    %v996 = vshll.u32 %v995, 23
    %v997 = vor.u32 4788187, %v996
    %v998 = vand.u32 2147483647, %v997
    %v1000 = vcvt.s32.f32 %v993
    %v1001 = vmul.f32 %v1000, %v998
    %v1002 = vxor.u32 %v1001, 2147483648
    %v1003 = vsel %vm920, %v1002, %v1001
    %v1004 = vsub.s32 4, %v980
    %v1005 = vsel %vm920, %v1004, %v980
    %v1006 = vsel %vm919, %v698, %v1003
    %v1007 = vsel %vm919, 0, %v1005
    %v1008 = vcosq.f32.pop %v1006
    %v1009 = vsinq.f32.pop %v1006
    %vm1010 = vweird.f32 %v698
    %v1011 = vadd.s32 %v1007, 3
    %v1012 = vand.u32 %v1011, 3
    %vm1013 = vcmp.lt.s32.totalorder %v1012, 2
    %vm1014 = vcmp.eq.s32.totalorder %v1012, 0
    %v1015 = vxor.u32 %v1009, 2147483648
    %v1016 = vsel %vm1014, %v1008, %v1015
    %vm1017 = vcmp.eq.s32.totalorder %v1012, 2
    %v1018 = vxor.u32 %v1008, 2147483648
    %v1019 = vsel %vm1017, %v1018, %v1009
    %v1020 = vsel %vm1013, %v1016, %v1019
    %v1021 = vsel %vm1010, nan, %v1020
    %v1022 = vand.u32 2147483647, %v699
    %vm1023 = vcmp.le.f32.partialorder %v1022, 0.7853982
    %vm1024 = vcmp.lt.s32.totalorder %v699, 0
    %v1025 = vand.u32 %v699, 2139095040
    %v1026 = vshrl.u32 %v1025, 23
    %v1027 = vsub.s32 %v1026, 127
    %v1028 = vand.u32 2147483647, %v699
    %v1029 = vand.u32 %v1028, 8388607
    %v1030 = vor.u32 %v1029, 8388608
    %v1031 = vsub.s32 0, %v1030
    %v1032 = vadd.s32 %v1027, 1
    %vm1033 = vcmp.gt.s32.totalorder %v1032, 0
    %v1034 = vsel %vm1033, %v1032, 0
    %v1035 = vshrl.u32 %v1034, 5
    %v1036 = vand.u32 %v1034, 31
    %v1037 = vsub.s32 32, %v1036
    %v1038 = vshrl.u32 683565275, %v1037
    %v1039 = vshll.u32 683565275, %v1036
    %v1040 = vshrl.u32 2475754826, %v1037
    %v1041 = vor.u32 %v1039, %v1040
    %v1042 = vshll.u32 2475754826, %v1036
    %v1043 = vshrl.u32 2131351028, %v1037
    %v1044 = vor.u32 %v1042, %v1043
    %v1045 = vshll.u32 2131351028, %v1036
    %v1046 = vshrl.u32 2102212464, %v1037
    %v1047 = vor.u32 %v1045, %v1046
    %v1048 = vshll.u32 2102212464, %v1036
    %v1049 = vshrl.u32 920167782, %v1037
    %v1050 = vor.u32 %v1048, %v1049
    %v1051 = vshll.u32 920167782, %v1036
    %v1052 = vshrl.u32 1326507024, %v1037
    %v1053 = vor.u32 %v1051, %v1052
    %vm1054 = vcmp.lt.s32.totalorder %v1035, 1
    %vm1055 = vcmp.lt.s32.totalorder %v1035, 2
    %vm1056 = vcmp.lt.s32.totalorder %v1035, 3
    %vm1057 = vcmp.lt.s32.totalorder %v1035, 4
    %v1058 = vsel %vm1054, %v1038, %v1041
    %v1059 = vsel %vm1057, %v1047, 2102212464
    %v1060 = vsel %vm1056, %v1044, %v1059
    %v1061 = vsel %vm1055, %v1058, %v1060
    %v1062 = vsel %vm1054, %v1041, %v1044
    %v1063 = vsel %vm1057, %v1050, 920167782
    %v1064 = vsel %vm1056, %v1047, %v1063
    %v1065 = vsel %vm1055, %v1062, %v1064
    %v1066 = vsel %vm1054, %v1044, %v1047
    %v1067 = vsel %vm1057, %v1053, 1326507024
    %v1068 = vsel %vm1056, %v1050, %v1067
    %v1069 = vsel %vm1055, %v1066, %v1068
    %v1070 = vshll.u32 %v1030, 8
    %v1071 = vmul.u32.u64.compose %v1070, %v1069
    %v1072 = vextract.low.u32 %v1071
    %v1073 = vextract.high.u32 %v1071
    %v1074 = vmul.u32.u64.compose %v1070, %v1065
    %v1075 = vextract.low.u32 %v1074
    %v1076 = vextract.high.u32 %v1074
    %v1077 = vmul.u32 %v1070, %v1061
    %v1078 = vadd.s32 %v1073, %v1075
    %vm1079 = vc.u32 %v1073, %v1075
    %v1080 = vadd.s32 %v1076, 1
    %v1081 = vsel %vm1079, %v1080, %v1076
    %v1082 = vadd.s32 %v1077, %v1081
    %v1083 = vadd.s32 %v1082, 536870912
    %v1084 = vshrl.u32 %v1083, 30
    %v1085 = vshll.u32 %v1084, 30
    %v1086 = vsub.s32 %v1082, %v1085
    %vm1087 = vcmp.lt.s32.totalorder %v1086, 0
    %v1088 = vsub.s32 0, %v1086
    %v1089 = vsel %vm1087, %v1088, %v1086
    %v1090 = vclz %v1089
    %v1091 = vsub.s32 %v1090, 2
    %vm1092 = vcmp.gt.s32.totalorder 0, %v1091
    %v1093 = vsel %vm1092, 0, %v1091
    %v1094 = vsub.s32 32, %v1093
    %v1095 = vshll.u32 %v1086, %v1093
    %v1096 = vshrl.u32 %v1078, %v1094
    %v1097 = vor.u32 %v1095, %v1096
    %v1098 = vsub.s32 4294967266, %v1093
    %v1099 = vadd.s32 %v1098, 127
    %v1100 = vshll.u32 %v1099, 23
    %v1101 = vor.u32 4788187, %v1100
    %v1102 = vand.u32 2147483647, %v1101
    %v1104 = vcvt.s32.f32 %v1097
    %v1105 = vmul.f32 %v1104, %v1102
    %v1106 = vxor.u32 %v1105, 2147483648
    %v1107 = vsel %vm1024, %v1106, %v1105
    %v1108 = vsub.s32 4, %v1084
    %v1109 = vsel %vm1024, %v1108, %v1084
    %v1110 = vsel %vm1023, %v699, %v1107
    %v1111 = vsel %vm1023, 0, %v1109
    %v1112 = vcosq.f32.pop %v1110
    %v1113 = vsinq.f32.pop %v1110
    %vm1114 = vweird.f32 %v699
    %v1115 = vadd.s32 %v1111, 3
    %v1116 = vand.u32 %v1115, 3
    %vm1117 = vcmp.lt.s32.totalorder %v1116, 2
    %vm1118 = vcmp.eq.s32.totalorder %v1116, 0
    %v1119 = vxor.u32 %v1113, 2147483648
    %v1120 = vsel %vm1118, %v1112, %v1119
    %vm1121 = vcmp.eq.s32.totalorder %v1116, 2
    %v1122 = vxor.u32 %v1112, 2147483648
    %v1123 = vsel %vm1121, %v1122, %v1113
    %v1124 = vsel %vm1117, %v1120, %v1123
    %v1125 = vsel %vm1114, nan, %v1124
    %v1126 = vmul.f32 %v703, %v814
    %v1127 = vmul.f32 %v705, %v917
    %v1128 = vmul.f32 %v703, %v1021
    %v1129 = vmul.f32 %v705, %v1125
    %v1130 = vsub.f32 0.0, %v1128
    %v1131 = vsub.f32 0.0, %v1129
    %v1132 = vmul.f32 %v709, %v814
    %v1133 = vmul.f32 %v711, %v917
    %v1134 = vmul.f32 %v709, %v1021
    %v1135 = vmul.f32 %v711, %v1125
    %v1136 = vmul.f32 %v648, %v596
    %v1137 = vmul.f32 %v652, %v597
    %v1138 = vmul.f32 %v661, %v602
    %v1139 = vmul.f32 %v665, %v603
    %v1140 = vsub.f32 %v1136, %v1138
    %v1141 = vsub.f32 %v1137, %v1139
    %v1142 = vmul.f32 %v648, %v602
    %v1143 = vmul.f32 %v652, %v603
    %v1144 = vmul.f32 %v661, %v596
    %v1145 = vmul.f32 %v665, %v597
    %v1146 = vadd.f32 %v1142, %v1144
    %v1147 = vadd.f32 %v1143, %v1145
    %v1148 = vmul.f32 %v674, %v608
    %v1149 = vmul.f32 %v678, %v609
    %v1150 = vmul.f32 %v687, %v614
    %v1151 = vmul.f32 %v691, %v615
    %v1152 = vsub.f32 %v1148, %v1150
    %v1153 = vsub.f32 %v1149, %v1151
    %v1154 = vmul.f32 %v674, %v614
    %v1155 = vmul.f32 %v678, %v615
    %v1156 = vmul.f32 %v687, %v608
    %v1157 = vmul.f32 %v691, %v609
    %v1158 = vadd.f32 %v1154, %v1156
    %v1159 = vadd.f32 %v1155, %v1157
    %v1160 = vadd.f32 %v1140, %v1152
    %v1161 = vadd.f32 %v1141, %v1153
    %v1162 = vadd.f32 %v1146, %v1158
    %v1163 = vadd.f32 %v1147, %v1159
    %v1164 = vmul.f32 %v674, %v596
    %v1165 = vmul.f32 %v678, %v597
    %v1166 = vmul.f32 %v687, %v602
    %v1167 = vmul.f32 %v691, %v603
    %v1168 = vsub.f32 %v1164, %v1166
    %v1169 = vsub.f32 %v1165, %v1167
    %v1170 = vmul.f32 %v674, %v602
    %v1171 = vmul.f32 %v678, %v603
    %v1172 = vmul.f32 %v687, %v596
    %v1173 = vmul.f32 %v691, %v597
    %v1174 = vadd.f32 %v1170, %v1172
    %v1175 = vadd.f32 %v1171, %v1173
    %v1176 = vmul.f32 %v648, %v608
    %v1177 = vmul.f32 %v652, %v609
    %v1178 = vmul.f32 %v661, %v614
    %v1179 = vmul.f32 %v665, %v615
    %v1180 = vsub.f32 %v1176, %v1178
    %v1181 = vsub.f32 %v1177, %v1179
    %v1182 = vmul.f32 %v648, %v614
    %v1183 = vmul.f32 %v652, %v615
    %v1184 = vmul.f32 %v661, %v608
    %v1185 = vmul.f32 %v665, %v609
    %v1186 = vadd.f32 %v1182, %v1184
    %v1187 = vadd.f32 %v1183, %v1185
    %v1188 = vadd.f32 %v1168, %v1180
    %v1189 = vadd.f32 %v1169, %v1181
    %v1190 = vadd.f32 %v1174, %v1186
    %v1191 = vadd.f32 %v1175, %v1187
    %v1192 = vmul.f32 %v1126, %v1160
    %v1193 = vmul.f32 %v1127, %v1161
    %v1194 = vmul.f32 %v1130, %v1162
    %v1195 = vmul.f32 %v1131, %v1163
    %v1196 = vsub.f32 %v1192, %v1194
    %v1197 = vsub.f32 %v1193, %v1195
    %v1198 = vmul.f32 %v1126, %v1162
    %v1199 = vmul.f32 %v1127, %v1163
    %v1200 = vmul.f32 %v1130, %v1160
    %v1201 = vmul.f32 %v1131, %v1161
    %v1202 = vadd.f32 %v1198, %v1200
    %v1203 = vadd.f32 %v1199, %v1201
    %v1204 = vmul.f32 %v1132, %v1188
    %v1205 = vmul.f32 %v1133, %v1189
    %v1206 = vmul.f32 %v1134, %v1190
    %v1207 = vmul.f32 %v1135, %v1191
    %v1208 = vsub.f32 %v1204, %v1206
    %v1209 = vsub.f32 %v1205, %v1207
    %v1210 = vmul.f32 %v1132, %v1190
    %v1211 = vmul.f32 %v1133, %v1191
    %v1212 = vmul.f32 %v1134, %v1188
    %v1213 = vmul.f32 %v1135, %v1189
    %v1214 = vadd.f32 %v1210, %v1212
    %v1215 = vadd.f32 %v1211, %v1213
    %s1216 = scalar_lea.vmem [#allocation5], 48
    %v1217 = vld [vmem:[%s1216] ss:$8 sm:$0x3]
    %v1219 = vlaneseq
    %v1220 = vshrl.u32 %v1219, 7
    %v1221 = vsub.s32 0, %v1220
    %v1222 = vrot.slane %v1217, %v1221
    %v1223 = vlaneseq
    %v1224 = vshrl.u32 %v1223, 7
    %v1225 = vsub.s32 1, %v1224
    %v1226 = vrot.slane %v1217, %v1225
    %s1229 = scalar_lea.vmem [#allocation5], 49
    %v1230 = vld [vmem:[%s1229] ss:$8 sm:$0x3]
    %v1232 = vlaneseq
    %v1233 = vshrl.u32 %v1232, 7
    %v1234 = vsub.s32 0, %v1233
    %v1235 = vrot.slane %v1230, %v1234
    %v1236 = vlaneseq
    %v1237 = vshrl.u32 %v1236, 7
    %v1238 = vsub.s32 1, %v1237
    %v1239 = vrot.slane %v1230, %v1238
    %s1242 = scalar_lea.vmem [#allocation5], 50
    %v1243 = vld [vmem:[%s1242] ss:$8 sm:$0x3]
    %v1245 = vlaneseq
    %v1246 = vshrl.u32 %v1245, 7
    %v1247 = vsub.s32 0, %v1246
    %v1248 = vrot.slane %v1243, %v1247
    %v1249 = vlaneseq
    %v1250 = vshrl.u32 %v1249, 7
    %v1251 = vsub.s32 1, %v1250
    %v1252 = vrot.slane %v1243, %v1251
    %s1255 = scalar_lea.vmem [#allocation5], 51
    %v1256 = vld [vmem:[%s1255] ss:$8 sm:$0x3]
    %v1258 = vlaneseq
    %v1259 = vshrl.u32 %v1258, 7
    %v1260 = vsub.s32 0, %v1259
    %v1261 = vrot.slane %v1256, %v1260
    %v1262 = vlaneseq
    %v1263 = vshrl.u32 %v1262, 7
    %v1264 = vsub.s32 1, %v1263
    %v1265 = vrot.slane %v1256, %v1264
    %s1268 = scalar_lea.vmem [#allocation5], 52
    %v1269 = vld [vmem:[%s1268] ss:$8 sm:$0x3]
    %v1271 = vlaneseq
    %v1272 = vshrl.u32 %v1271, 7
    %v1273 = vsub.s32 0, %v1272
    %v1274 = vrot.slane %v1269, %v1273
    %v1275 = vlaneseq
    %v1276 = vshrl.u32 %v1275, 7
    %v1277 = vsub.s32 1, %v1276
    %v1278 = vrot.slane %v1269, %v1277
    %s1281 = scalar_lea.vmem [#allocation5], 53
    %v1282 = vld [vmem:[%s1281] ss:$8 sm:$0x3]
    %v1284 = vlaneseq
    %v1285 = vshrl.u32 %v1284, 7
    %v1286 = vsub.s32 0, %v1285
    %v1287 = vrot.slane %v1282, %v1286
    %v1288 = vlaneseq
    %v1289 = vshrl.u32 %v1288, 7
    %v1290 = vsub.s32 1, %v1289
    %v1291 = vrot.slane %v1282, %v1290
    %1294 = vset.pattern.permute.xlu0 3
    %1295 = vperm.xlu0 %1294, %v116
    %v1296 = vpop.permute.xlu0 %1295
    %v1298 = vmul.f32 %v1296, %v1222
    %v1299 = vmul.f32 %v1296, %v1226
    %v1300 = vmul.f32 %v1296, %v1235
    %v1301 = vmul.f32 %v1296, %v1239
    %v1302 = vmul.f32 %v1300, 1.442695
    %v1303 = vpow.pop %v1302
    %v1304 = vmul.f32 %v1301, 1.442695
    %v1305 = vpow.pop %v1304
    %v1306 = vsub.f32 0.0, %v1300
    %v1307 = vsub.f32 0.0, %v1301
    %v1308 = vmul.f32 %v1306, 1.442695
    %v1309 = vpow.pop %v1308
    %v1310 = vmul.f32 %v1307, 1.442695
    %v1311 = vpow.pop %v1310
    %v1312 = vand.u32 2147483647, %v1298
    %vm1313 = vcmp.le.f32.partialorder %v1312, 0.7853982
    %vm1314 = vcmp.lt.s32.totalorder %v1298, 0
    %v1315 = vand.u32 %v1298, 2139095040
    %v1316 = vshrl.u32 %v1315, 23
    %v1317 = vsub.s32 %v1316, 127
    %v1318 = vand.u32 2147483647, %v1298
    %v1319 = vand.u32 %v1318, 8388607
    %v1320 = vor.u32 %v1319, 8388608
    %v1321 = vsub.s32 0, %v1320
    %v1322 = vadd.s32 %v1317, 1
    %vm1323 = vcmp.gt.s32.totalorder %v1322, 0
    %v1324 = vsel %vm1323, %v1322, 0
    %v1325 = vshrl.u32 %v1324, 5
    %v1326 = vand.u32 %v1324, 31
    %v1327 = vsub.s32 32, %v1326
    %v1328 = vshrl.u32 683565275, %v1327
    %v1329 = vshll.u32 683565275, %v1326
    %v1330 = vshrl.u32 2475754826, %v1327
    %v1331 = vor.u32 %v1329, %v1330
    %v1332 = vshll.u32 2475754826, %v1326
    %v1333 = vshrl.u32 2131351028, %v1327
    %v1334 = vor.u32 %v1332, %v1333
    %v1335 = vshll.u32 2131351028, %v1326
    %v1336 = vshrl.u32 2102212464, %v1327
    %v1337 = vor.u32 %v1335, %v1336
    %v1338 = vshll.u32 2102212464, %v1326
    %v1339 = vshrl.u32 920167782, %v1327
    %v1340 = vor.u32 %v1338, %v1339
    %v1341 = vshll.u32 920167782, %v1326
    %v1342 = vshrl.u32 1326507024, %v1327
    %v1343 = vor.u32 %v1341, %v1342
    %vm1344 = vcmp.lt.s32.totalorder %v1325, 1
    %vm1345 = vcmp.lt.s32.totalorder %v1325, 2
    %vm1346 = vcmp.lt.s32.totalorder %v1325, 3
    %vm1347 = vcmp.lt.s32.totalorder %v1325, 4
    %v1348 = vsel %vm1344, %v1328, %v1331
    %v1349 = vsel %vm1347, %v1337, 2102212464
    %v1350 = vsel %vm1346, %v1334, %v1349
    %v1351 = vsel %vm1345, %v1348, %v1350
    %v1352 = vsel %vm1344, %v1331, %v1334
    %v1353 = vsel %vm1347, %v1340, 920167782
    %v1354 = vsel %vm1346, %v1337, %v1353
    %v1355 = vsel %vm1345, %v1352, %v1354
    %v1356 = vsel %vm1344, %v1334, %v1337
    %v1357 = vsel %vm1347, %v1343, 1326507024
    %v1358 = vsel %vm1346, %v1340, %v1357
    %v1359 = vsel %vm1345, %v1356, %v1358
    %v1360 = vshll.u32 %v1320, 8
    %v1361 = vmul.u32.u64.compose %v1360, %v1359
    %v1362 = vextract.low.u32 %v1361
    %v1363 = vextract.high.u32 %v1361
    %v1364 = vmul.u32.u64.compose %v1360, %v1355
    %v1365 = vextract.low.u32 %v1364
    %v1366 = vextract.high.u32 %v1364
    %v1367 = vmul.u32 %v1360, %v1351
    %v1368 = vadd.s32 %v1363, %v1365
    %vm1369 = vc.u32 %v1363, %v1365
    %v1370 = vadd.s32 %v1366, 1
    %v1371 = vsel %vm1369, %v1370, %v1366
    %v1372 = vadd.s32 %v1367, %v1371
    %v1373 = vadd.s32 %v1372, 536870912
    %v1374 = vshrl.u32 %v1373, 30
    %v1375 = vshll.u32 %v1374, 30
    %v1376 = vsub.s32 %v1372, %v1375
    %vm1377 = vcmp.lt.s32.totalorder %v1376, 0
    %v1378 = vsub.s32 0, %v1376
    %v1379 = vsel %vm1377, %v1378, %v1376
    %v1380 = vclz %v1379
    %v1381 = vsub.s32 %v1380, 2
    %vm1382 = vcmp.gt.s32.totalorder 0, %v1381
    %v1383 = vsel %vm1382, 0, %v1381
    %v1384 = vsub.s32 32, %v1383
    %v1385 = vshll.u32 %v1376, %v1383
    %v1386 = vshrl.u32 %v1368, %v1384
    %v1387 = vor.u32 %v1385, %v1386
    %v1388 = vsub.s32 4294967266, %v1383
    %v1389 = vadd.s32 %v1388, 127
    %v1390 = vshll.u32 %v1389, 23
    %v1391 = vor.u32 4788187, %v1390
    %v1392 = vand.u32 2147483647, %v1391
    %v1394 = vcvt.s32.f32 %v1387
    %v1395 = vmul.f32 %v1394, %v1392
    %v1396 = vxor.u32 %v1395, 2147483648
    %v1397 = vsel %vm1314, %v1396, %v1395
    %v1398 = vsub.s32 4, %v1374
    %v1399 = vsel %vm1314, %v1398, %v1374
    %v1400 = vsel %vm1313, %v1298, %v1397
    %v1401 = vsel %vm1313, 0, %v1399
    %v1402 = vcosq.f32.pop %v1400
    %v1403 = vsinq.f32.pop %v1400
    %vm1404 = vweird.f32 %v1298
    %v1405 = vand.u32 %v1401, 3
    %vm1406 = vcmp.lt.s32.totalorder %v1405, 2
    %vm1407 = vcmp.eq.s32.totalorder %v1405, 0
    %v1408 = vxor.u32 %v1403, 2147483648
    %v1409 = vsel %vm1407, %v1402, %v1408
    %vm1410 = vcmp.eq.s32.totalorder %v1405, 2
    %v1411 = vxor.u32 %v1402, 2147483648
    %v1412 = vsel %vm1410, %v1411, %v1403
    %v1413 = vsel %vm1406, %v1409, %v1412
    %v1414 = vsel %vm1404, nan, %v1413
    %v1415 = vand.u32 2147483647, %v1299
    %vm1416 = vcmp.le.f32.partialorder %v1415, 0.7853982
    %vm1417 = vcmp.lt.s32.totalorder %v1299, 0
    %v1418 = vand.u32 %v1299, 2139095040
    %v1419 = vshrl.u32 %v1418, 23
    %v1420 = vsub.s32 %v1419, 127
    %v1421 = vand.u32 2147483647, %v1299
    %v1422 = vand.u32 %v1421, 8388607
    %v1423 = vor.u32 %v1422, 8388608
    %v1424 = vsub.s32 0, %v1423
    %v1425 = vadd.s32 %v1420, 1
    %vm1426 = vcmp.gt.s32.totalorder %v1425, 0
    %v1427 = vsel %vm1426, %v1425, 0
    %v1428 = vshrl.u32 %v1427, 5
    %v1429 = vand.u32 %v1427, 31
    %v1430 = vsub.s32 32, %v1429
    %v1431 = vshrl.u32 683565275, %v1430
    %v1432 = vshll.u32 683565275, %v1429
    %v1433 = vshrl.u32 2475754826, %v1430
    %v1434 = vor.u32 %v1432, %v1433
    %v1435 = vshll.u32 2475754826, %v1429
    %v1436 = vshrl.u32 2131351028, %v1430
    %v1437 = vor.u32 %v1435, %v1436
    %v1438 = vshll.u32 2131351028, %v1429
    %v1439 = vshrl.u32 2102212464, %v1430
    %v1440 = vor.u32 %v1438, %v1439
    %v1441 = vshll.u32 2102212464, %v1429
    %v1442 = vshrl.u32 920167782, %v1430
    %v1443 = vor.u32 %v1441, %v1442
    %v1444 = vshll.u32 920167782, %v1429
    %v1445 = vshrl.u32 1326507024, %v1430
    %v1446 = vor.u32 %v1444, %v1445
    %vm1447 = vcmp.lt.s32.totalorder %v1428, 1
    %vm1448 = vcmp.lt.s32.totalorder %v1428, 2
    %vm1449 = vcmp.lt.s32.totalorder %v1428, 3
    %vm1450 = vcmp.lt.s32.totalorder %v1428, 4
    %v1451 = vsel %vm1447, %v1431, %v1434
    %v1452 = vsel %vm1450, %v1440, 2102212464
    %v1453 = vsel %vm1449, %v1437, %v1452
    %v1454 = vsel %vm1448, %v1451, %v1453
    %v1455 = vsel %vm1447, %v1434, %v1437
    %v1456 = vsel %vm1450, %v1443, 920167782
    %v1457 = vsel %vm1449, %v1440, %v1456
    %v1458 = vsel %vm1448, %v1455, %v1457
    %v1459 = vsel %vm1447, %v1437, %v1440
    %v1460 = vsel %vm1450, %v1446, 1326507024
    %v1461 = vsel %vm1449, %v1443, %v1460
    %v1462 = vsel %vm1448, %v1459, %v1461
    %v1463 = vshll.u32 %v1423, 8
    %v1464 = vmul.u32.u64.compose %v1463, %v1462
    %v1465 = vextract.low.u32 %v1464
    %v1466 = vextract.high.u32 %v1464
    %v1467 = vmul.u32.u64.compose %v1463, %v1458
    %v1468 = vextract.low.u32 %v1467
    %v1469 = vextract.high.u32 %v1467
    %v1470 = vmul.u32 %v1463, %v1454
    %v1471 = vadd.s32 %v1466, %v1468
    %vm1472 = vc.u32 %v1466, %v1468
    %v1473 = vadd.s32 %v1469, 1
    %v1474 = vsel %vm1472, %v1473, %v1469
    %v1475 = vadd.s32 %v1470, %v1474
    %v1476 = vadd.s32 %v1475, 536870912
    %v1477 = vshrl.u32 %v1476, 30
    %v1478 = vshll.u32 %v1477, 30
    %v1479 = vsub.s32 %v1475, %v1478
    %vm1480 = vcmp.lt.s32.totalorder %v1479, 0
    %v1481 = vsub.s32 0, %v1479
    %v1482 = vsel %vm1480, %v1481, %v1479
    %v1483 = vclz %v1482
    %v1484 = vsub.s32 %v1483, 2
    %vm1485 = vcmp.gt.s32.totalorder 0, %v1484
    %v1486 = vsel %vm1485, 0, %v1484
    %v1487 = vsub.s32 32, %v1486
    %v1488 = vshll.u32 %v1479, %v1486
    %v1489 = vshrl.u32 %v1471, %v1487
    %v1490 = vor.u32 %v1488, %v1489
    %v1491 = vsub.s32 4294967266, %v1486
    %v1492 = vadd.s32 %v1491, 127
    %v1493 = vshll.u32 %v1492, 23
    %v1494 = vor.u32 4788187, %v1493
    %v1495 = vand.u32 2147483647, %v1494
    %v1497 = vcvt.s32.f32 %v1490
    %v1498 = vmul.f32 %v1497, %v1495
    %v1499 = vxor.u32 %v1498, 2147483648
    %v1500 = vsel %vm1417, %v1499, %v1498
    %v1501 = vsub.s32 4, %v1477
    %v1502 = vsel %vm1417, %v1501, %v1477
    %v1503 = vsel %vm1416, %v1299, %v1500
    %v1504 = vsel %vm1416, 0, %v1502
    %v1505 = vcosq.f32.pop %v1503
    %v1506 = vsinq.f32.pop %v1503
    %vm1507 = vweird.f32 %v1299
    %v1508 = vand.u32 %v1504, 3
    %vm1509 = vcmp.lt.s32.totalorder %v1508, 2
    %vm1510 = vcmp.eq.s32.totalorder %v1508, 0
    %v1511 = vxor.u32 %v1506, 2147483648
    %v1512 = vsel %vm1510, %v1505, %v1511
    %vm1513 = vcmp.eq.s32.totalorder %v1508, 2
    %v1514 = vxor.u32 %v1505, 2147483648
    %v1515 = vsel %vm1513, %v1514, %v1506
    %v1516 = vsel %vm1509, %v1512, %v1515
    %v1517 = vsel %vm1507, nan, %v1516
    %v1518 = vand.u32 2147483647, %v1298
    %vm1519 = vcmp.le.f32.partialorder %v1518, 0.7853982
    %vm1520 = vcmp.lt.s32.totalorder %v1298, 0
    %v1521 = vand.u32 %v1298, 2139095040
    %v1522 = vshrl.u32 %v1521, 23
    %v1523 = vsub.s32 %v1522, 127
    %v1524 = vand.u32 2147483647, %v1298
    %v1525 = vand.u32 %v1524, 8388607
    %v1526 = vor.u32 %v1525, 8388608
    %v1527 = vsub.s32 0, %v1526
    %v1528 = vadd.s32 %v1523, 1
    %vm1529 = vcmp.gt.s32.totalorder %v1528, 0
    %v1530 = vsel %vm1529, %v1528, 0
    %v1531 = vshrl.u32 %v1530, 5
    %v1532 = vand.u32 %v1530, 31
    %v1533 = vsub.s32 32, %v1532
    %v1534 = vshrl.u32 683565275, %v1533
    %v1535 = vshll.u32 683565275, %v1532
    %v1536 = vshrl.u32 2475754826, %v1533
    %v1537 = vor.u32 %v1535, %v1536
    %v1538 = vshll.u32 2475754826, %v1532
    %v1539 = vshrl.u32 2131351028, %v1533
    %v1540 = vor.u32 %v1538, %v1539
    %v1541 = vshll.u32 2131351028, %v1532
    %v1542 = vshrl.u32 2102212464, %v1533
    %v1543 = vor.u32 %v1541, %v1542
    %v1544 = vshll.u32 2102212464, %v1532
    %v1545 = vshrl.u32 920167782, %v1533
    %v1546 = vor.u32 %v1544, %v1545
    %v1547 = vshll.u32 920167782, %v1532
    %v1548 = vshrl.u32 1326507024, %v1533
    %v1549 = vor.u32 %v1547, %v1548
    %vm1550 = vcmp.lt.s32.totalorder %v1531, 1
    %vm1551 = vcmp.lt.s32.totalorder %v1531, 2
    %vm1552 = vcmp.lt.s32.totalorder %v1531, 3
    %vm1553 = vcmp.lt.s32.totalorder %v1531, 4
    %v1554 = vsel %vm1550, %v1534, %v1537
    %v1555 = vsel %vm1553, %v1543, 2102212464
    %v1556 = vsel %vm1552, %v1540, %v1555
    %v1557 = vsel %vm1551, %v1554, %v1556
    %v1558 = vsel %vm1550, %v1537, %v1540
    %v1559 = vsel %vm1553, %v1546, 920167782
    %v1560 = vsel %vm1552, %v1543, %v1559
    %v1561 = vsel %vm1551, %v1558, %v1560
    %v1562 = vsel %vm1550, %v1540, %v1543
    %v1563 = vsel %vm1553, %v1549, 1326507024
    %v1564 = vsel %vm1552, %v1546, %v1563
    %v1565 = vsel %vm1551, %v1562, %v1564
    %v1566 = vshll.u32 %v1526, 8
    %v1567 = vmul.u32.u64.compose %v1566, %v1565
    %v1568 = vextract.low.u32 %v1567
    %v1569 = vextract.high.u32 %v1567
    %v1570 = vmul.u32.u64.compose %v1566, %v1561
    %v1571 = vextract.low.u32 %v1570
    %v1572 = vextract.high.u32 %v1570
    %v1573 = vmul.u32 %v1566, %v1557
    %v1574 = vadd.s32 %v1569, %v1571
    %vm1575 = vc.u32 %v1569, %v1571
    %v1576 = vadd.s32 %v1572, 1
    %v1577 = vsel %vm1575, %v1576, %v1572
    %v1578 = vadd.s32 %v1573, %v1577
    %v1579 = vadd.s32 %v1578, 536870912
    %v1580 = vshrl.u32 %v1579, 30
    %v1581 = vshll.u32 %v1580, 30
    %v1582 = vsub.s32 %v1578, %v1581
    %vm1583 = vcmp.lt.s32.totalorder %v1582, 0
    %v1584 = vsub.s32 0, %v1582
    %v1585 = vsel %vm1583, %v1584, %v1582
    %v1586 = vclz %v1585
    %v1587 = vsub.s32 %v1586, 2
    %vm1588 = vcmp.gt.s32.totalorder 0, %v1587
    %v1589 = vsel %vm1588, 0, %v1587
    %v1590 = vsub.s32 32, %v1589
    %v1591 = vshll.u32 %v1582, %v1589
    %v1592 = vshrl.u32 %v1574, %v1590
    %v1593 = vor.u32 %v1591, %v1592
    %v1594 = vsub.s32 4294967266, %v1589
    %v1595 = vadd.s32 %v1594, 127
    %v1596 = vshll.u32 %v1595, 23
    %v1597 = vor.u32 4788187, %v1596
    %v1598 = vand.u32 2147483647, %v1597
    %v1600 = vcvt.s32.f32 %v1593
    %v1601 = vmul.f32 %v1600, %v1598
    %v1602 = vxor.u32 %v1601, 2147483648
    %v1603 = vsel %vm1520, %v1602, %v1601
    %v1604 = vsub.s32 4, %v1580
    %v1605 = vsel %vm1520, %v1604, %v1580
    %v1606 = vsel %vm1519, %v1298, %v1603
    %v1607 = vsel %vm1519, 0, %v1605
    %v1608 = vcosq.f32.pop %v1606
    %v1609 = vsinq.f32.pop %v1606
    %vm1610 = vweird.f32 %v1298
    %v1611 = vadd.s32 %v1607, 3
    %v1612 = vand.u32 %v1611, 3
    %vm1613 = vcmp.lt.s32.totalorder %v1612, 2
    %vm1614 = vcmp.eq.s32.totalorder %v1612, 0
    %v1615 = vxor.u32 %v1609, 2147483648
    %v1616 = vsel %vm1614, %v1608, %v1615
    %vm1617 = vcmp.eq.s32.totalorder %v1612, 2
    %v1618 = vxor.u32 %v1608, 2147483648
    %v1619 = vsel %vm1617, %v1618, %v1609
    %v1620 = vsel %vm1613, %v1616, %v1619
    %v1621 = vsel %vm1610, nan, %v1620
    %v1622 = vand.u32 2147483647, %v1299
    %vm1623 = vcmp.le.f32.partialorder %v1622, 0.7853982
    %vm1624 = vcmp.lt.s32.totalorder %v1299, 0
    %v1625 = vand.u32 %v1299, 2139095040
    %v1626 = vshrl.u32 %v1625, 23
    %v1627 = vsub.s32 %v1626, 127
    %v1628 = vand.u32 2147483647, %v1299
    %v1629 = vand.u32 %v1628, 8388607
    %v1630 = vor.u32 %v1629, 8388608
    %v1631 = vsub.s32 0, %v1630
    %v1632 = vadd.s32 %v1627, 1
    %vm1633 = vcmp.gt.s32.totalorder %v1632, 0
    %v1634 = vsel %vm1633, %v1632, 0
    %v1635 = vshrl.u32 %v1634, 5
    %v1636 = vand.u32 %v1634, 31
    %v1637 = vsub.s32 32, %v1636
    %v1638 = vshrl.u32 683565275, %v1637
    %v1639 = vshll.u32 683565275, %v1636
    %v1640 = vshrl.u32 2475754826, %v1637
    %v1641 = vor.u32 %v1639, %v1640
    %v1642 = vshll.u32 2475754826, %v1636
    %v1643 = vshrl.u32 2131351028, %v1637
    %v1644 = vor.u32 %v1642, %v1643
    %v1645 = vshll.u32 2131351028, %v1636
    %v1646 = vshrl.u32 2102212464, %v1637
    %v1647 = vor.u32 %v1645, %v1646
    %v1648 = vshll.u32 2102212464, %v1636
    %v1649 = vshrl.u32 920167782, %v1637
    %v1650 = vor.u32 %v1648, %v1649
    %v1651 = vshll.u32 920167782, %v1636
    %v1652 = vshrl.u32 1326507024, %v1637
    %v1653 = vor.u32 %v1651, %v1652
    %vm1654 = vcmp.lt.s32.totalorder %v1635, 1
    %vm1655 = vcmp.lt.s32.totalorder %v1635, 2
    %vm1656 = vcmp.lt.s32.totalorder %v1635, 3
    %vm1657 = vcmp.lt.s32.totalorder %v1635, 4
    %v1658 = vsel %vm1654, %v1638, %v1641
    %v1659 = vsel %vm1657, %v1647, 2102212464
    %v1660 = vsel %vm1656, %v1644, %v1659
    %v1661 = vsel %vm1655, %v1658, %v1660
    %v1662 = vsel %vm1654, %v1641, %v1644
    %v1663 = vsel %vm1657, %v1650, 920167782
    %v1664 = vsel %vm1656, %v1647, %v1663
    %v1665 = vsel %vm1655, %v1662, %v1664
    %v1666 = vsel %vm1654, %v1644, %v1647
    %v1667 = vsel %vm1657, %v1653, 1326507024
    %v1668 = vsel %vm1656, %v1650, %v1667
    %v1669 = vsel %vm1655, %v1666, %v1668
    %v1670 = vshll.u32 %v1630, 8
    %v1671 = vmul.u32.u64.compose %v1670, %v1669
    %v1672 = vextract.low.u32 %v1671
    %v1673 = vextract.high.u32 %v1671
    %v1674 = vmul.u32.u64.compose %v1670, %v1665
    %v1675 = vextract.low.u32 %v1674
    %v1676 = vextract.high.u32 %v1674
    %v1677 = vmul.u32 %v1670, %v1661
    %v1678 = vadd.s32 %v1673, %v1675
    %vm1679 = vc.u32 %v1673, %v1675
    %v1680 = vadd.s32 %v1676, 1
    %v1681 = vsel %vm1679, %v1680, %v1676
    %v1682 = vadd.s32 %v1677, %v1681
    %v1683 = vadd.s32 %v1682, 536870912
    %v1684 = vshrl.u32 %v1683, 30
    %v1685 = vshll.u32 %v1684, 30
    %v1686 = vsub.s32 %v1682, %v1685
    %vm1687 = vcmp.lt.s32.totalorder %v1686, 0
    %v1688 = vsub.s32 0, %v1686
    %v1689 = vsel %vm1687, %v1688, %v1686
    %v1690 = vclz %v1689
    %v1691 = vsub.s32 %v1690, 2
    %vm1692 = vcmp.gt.s32.totalorder 0, %v1691
    %v1693 = vsel %vm1692, 0, %v1691
    %v1694 = vsub.s32 32, %v1693
    %v1695 = vshll.u32 %v1686, %v1693
    %v1696 = vshrl.u32 %v1678, %v1694
    %v1697 = vor.u32 %v1695, %v1696
    %v1698 = vsub.s32 4294967266, %v1693
    %v1699 = vadd.s32 %v1698, 127
    %v1700 = vshll.u32 %v1699, 23
    %v1701 = vor.u32 4788187, %v1700
    %v1702 = vand.u32 2147483647, %v1701
    %v1704 = vcvt.s32.f32 %v1697
    %v1705 = vmul.f32 %v1704, %v1702
    %v1706 = vxor.u32 %v1705, 2147483648
    %v1707 = vsel %vm1624, %v1706, %v1705
    %v1708 = vsub.s32 4, %v1684
    %v1709 = vsel %vm1624, %v1708, %v1684
    %v1710 = vsel %vm1623, %v1299, %v1707
    %v1711 = vsel %vm1623, 0, %v1709
    %v1712 = vcosq.f32.pop %v1710
    %v1713 = vsinq.f32.pop %v1710
    %vm1714 = vweird.f32 %v1299
    %v1715 = vadd.s32 %v1711, 3
    %v1716 = vand.u32 %v1715, 3
    %vm1717 = vcmp.lt.s32.totalorder %v1716, 2
    %vm1718 = vcmp.eq.s32.totalorder %v1716, 0
    %v1719 = vxor.u32 %v1713, 2147483648
    %v1720 = vsel %vm1718, %v1712, %v1719
    %vm1721 = vcmp.eq.s32.totalorder %v1716, 2
    %v1722 = vxor.u32 %v1712, 2147483648
    %v1723 = vsel %vm1721, %v1722, %v1713
    %v1724 = vsel %vm1717, %v1720, %v1723
    %v1725 = vsel %vm1714, nan, %v1724
    %v1726 = vmul.f32 %v1303, %v1414
    %v1727 = vmul.f32 %v1305, %v1517
    %v1728 = vmul.f32 %v1303, %v1621
    %v1729 = vmul.f32 %v1305, %v1725
    %v1730 = vsub.f32 0.0, %v1728
    %v1731 = vsub.f32 0.0, %v1729
    %v1732 = vmul.f32 %v1309, %v1414
    %v1733 = vmul.f32 %v1311, %v1517
    %v1734 = vmul.f32 %v1309, %v1621
    %v1735 = vmul.f32 %v1311, %v1725
    %v1736 = vmul.f32 %v1248, %v1196
    %v1737 = vmul.f32 %v1252, %v1197
    %v1738 = vmul.f32 %v1261, %v1202
    %v1739 = vmul.f32 %v1265, %v1203
    %v1740 = vsub.f32 %v1736, %v1738
    %v1741 = vsub.f32 %v1737, %v1739
    %v1742 = vmul.f32 %v1248, %v1202
    %v1743 = vmul.f32 %v1252, %v1203
    %v1744 = vmul.f32 %v1261, %v1196
    %v1745 = vmul.f32 %v1265, %v1197
    %v1746 = vadd.f32 %v1742, %v1744
    %v1747 = vadd.f32 %v1743, %v1745
    %v1748 = vmul.f32 %v1274, %v1208
    %v1749 = vmul.f32 %v1278, %v1209
    %v1750 = vmul.f32 %v1287, %v1214
    %v1751 = vmul.f32 %v1291, %v1215
    %v1752 = vsub.f32 %v1748, %v1750
    %v1753 = vsub.f32 %v1749, %v1751
    %v1754 = vmul.f32 %v1274, %v1214
    %v1755 = vmul.f32 %v1278, %v1215
    %v1756 = vmul.f32 %v1287, %v1208
    %v1757 = vmul.f32 %v1291, %v1209
    %v1758 = vadd.f32 %v1754, %v1756
    %v1759 = vadd.f32 %v1755, %v1757
    %v1760 = vadd.f32 %v1740, %v1752
    %v1761 = vadd.f32 %v1741, %v1753
    %v1762 = vadd.f32 %v1746, %v1758
    %v1763 = vadd.f32 %v1747, %v1759
    %v1764 = vmul.f32 %v1274, %v1196
    %v1765 = vmul.f32 %v1278, %v1197
    %v1766 = vmul.f32 %v1287, %v1202
    %v1767 = vmul.f32 %v1291, %v1203
    %v1768 = vsub.f32 %v1764, %v1766
    %v1769 = vsub.f32 %v1765, %v1767
    %v1770 = vmul.f32 %v1274, %v1202
    %v1771 = vmul.f32 %v1278, %v1203
    %v1772 = vmul.f32 %v1287, %v1196
    %v1773 = vmul.f32 %v1291, %v1197
    %v1774 = vadd.f32 %v1770, %v1772
    %v1775 = vadd.f32 %v1771, %v1773
    %v1776 = vmul.f32 %v1248, %v1208
    %v1777 = vmul.f32 %v1252, %v1209
    %v1778 = vmul.f32 %v1261, %v1214
    %v1779 = vmul.f32 %v1265, %v1215
    %v1780 = vsub.f32 %v1776, %v1778
    %v1781 = vsub.f32 %v1777, %v1779
    %v1782 = vmul.f32 %v1248, %v1214
    %v1783 = vmul.f32 %v1252, %v1215
    %v1784 = vmul.f32 %v1261, %v1208
    %v1785 = vmul.f32 %v1265, %v1209
    %v1786 = vadd.f32 %v1782, %v1784
    %v1787 = vadd.f32 %v1783, %v1785
    %v1788 = vadd.f32 %v1768, %v1780
    %v1789 = vadd.f32 %v1769, %v1781
    %v1790 = vadd.f32 %v1774, %v1786
    %v1791 = vadd.f32 %v1775, %v1787
    %v1792 = vmul.f32 %v1726, %v1760
    %v1793 = vmul.f32 %v1727, %v1761
    %v1794 = vmul.f32 %v1730, %v1762
    %v1795 = vmul.f32 %v1731, %v1763
    %v1796 = vsub.f32 %v1792, %v1794
    %v1797 = vsub.f32 %v1793, %v1795
    %v1798 = vmul.f32 %v1726, %v1762
    %v1799 = vmul.f32 %v1727, %v1763
    %v1800 = vmul.f32 %v1730, %v1760
    %v1801 = vmul.f32 %v1731, %v1761
    %v1802 = vadd.f32 %v1798, %v1800
    %v1803 = vadd.f32 %v1799, %v1801
    %v1804 = vmul.f32 %v1732, %v1788
    %v1805 = vmul.f32 %v1733, %v1789
    %v1806 = vmul.f32 %v1734, %v1790
    %v1807 = vmul.f32 %v1735, %v1791
    %v1808 = vsub.f32 %v1804, %v1806
    %v1809 = vsub.f32 %v1805, %v1807
    %v1810 = vmul.f32 %v1732, %v1790
    %v1811 = vmul.f32 %v1733, %v1791
    %v1812 = vmul.f32 %v1734, %v1788
    %v1813 = vmul.f32 %v1735, %v1789
    %v1814 = vadd.f32 %v1810, %v1812
    %v1815 = vadd.f32 %v1811, %v1813
    %s1816 = scalar_lea.vmem [#allocation5], 32
    %v1817 = vld [vmem:[%s1816] ss:$8 sm:$0x3]
    %v1819 = vlaneseq
    %v1820 = vshrl.u32 %v1819, 7
    %v1821 = vsub.s32 0, %v1820
    %v1822 = vrot.slane %v1817, %v1821
    %v1823 = vlaneseq
    %v1824 = vshrl.u32 %v1823, 7
    %v1825 = vsub.s32 1, %v1824
    %v1826 = vrot.slane %v1817, %v1825
    %s1829 = scalar_lea.vmem [#allocation5], 33
    %v1830 = vld [vmem:[%s1829] ss:$8 sm:$0x3]
    %v1832 = vlaneseq
    %v1833 = vshrl.u32 %v1832, 7
    %v1834 = vsub.s32 0, %v1833
    %v1835 = vrot.slane %v1830, %v1834
    %v1836 = vlaneseq
    %v1837 = vshrl.u32 %v1836, 7
    %v1838 = vsub.s32 1, %v1837
    %v1839 = vrot.slane %v1830, %v1838
    %s1842 = scalar_lea.vmem [#allocation5], 34
    %v1843 = vld [vmem:[%s1842] ss:$8 sm:$0x3]
    %v1845 = vlaneseq
    %v1846 = vshrl.u32 %v1845, 7
    %v1847 = vsub.s32 0, %v1846
    %v1848 = vrot.slane %v1843, %v1847
    %v1849 = vlaneseq
    %v1850 = vshrl.u32 %v1849, 7
    %v1851 = vsub.s32 1, %v1850
    %v1852 = vrot.slane %v1843, %v1851
    %s1855 = scalar_lea.vmem [#allocation5], 35
    %v1856 = vld [vmem:[%s1855] ss:$8 sm:$0x3]
    %v1858 = vlaneseq
    %v1859 = vshrl.u32 %v1858, 7
    %v1860 = vsub.s32 0, %v1859
    %v1861 = vrot.slane %v1856, %v1860
    %v1862 = vlaneseq
    %v1863 = vshrl.u32 %v1862, 7
    %v1864 = vsub.s32 1, %v1863
    %v1865 = vrot.slane %v1856, %v1864
    %s1868 = scalar_lea.vmem [#allocation5], 36
    %v1869 = vld [vmem:[%s1868] ss:$8 sm:$0x3]
    %v1871 = vlaneseq
    %v1872 = vshrl.u32 %v1871, 7
    %v1873 = vsub.s32 0, %v1872
    %v1874 = vrot.slane %v1869, %v1873
    %v1875 = vlaneseq
    %v1876 = vshrl.u32 %v1875, 7
    %v1877 = vsub.s32 1, %v1876
    %v1878 = vrot.slane %v1869, %v1877
    %s1881 = scalar_lea.vmem [#allocation5], 37
    %v1882 = vld [vmem:[%s1881] ss:$8 sm:$0x3]
    %v1884 = vlaneseq
    %v1885 = vshrl.u32 %v1884, 7
    %v1886 = vsub.s32 0, %v1885
    %v1887 = vrot.slane %v1882, %v1886
    %v1888 = vlaneseq
    %v1889 = vshrl.u32 %v1888, 7
    %v1890 = vsub.s32 1, %v1889
    %v1891 = vrot.slane %v1882, %v1890
    %1894 = vset.pattern.permute.xlu0 2
    %1895 = vperm.xlu0 %1894, %v116
    %v1896 = vpop.permute.xlu0 %1895
    %v1898 = vmul.f32 %v1896, %v1822
    %v1899 = vmul.f32 %v1896, %v1826
    %v1900 = vmul.f32 %v1896, %v1835
    %v1901 = vmul.f32 %v1896, %v1839
    %v1902 = vmul.f32 %v1900, 1.442695
    %v1903 = vpow.pop %v1902
    %v1904 = vmul.f32 %v1901, 1.442695
    %v1905 = vpow.pop %v1904
    %v1906 = vsub.f32 0.0, %v1900
    %v1907 = vsub.f32 0.0, %v1901
    %v1908 = vmul.f32 %v1906, 1.442695
    %v1909 = vpow.pop %v1908
    %v1910 = vmul.f32 %v1907, 1.442695
    %v1911 = vpow.pop %v1910
    %v1912 = vand.u32 2147483647, %v1898
    %vm1913 = vcmp.le.f32.partialorder %v1912, 0.7853982
    %vm1914 = vcmp.lt.s32.totalorder %v1898, 0
    %v1915 = vand.u32 %v1898, 2139095040
    %v1916 = vshrl.u32 %v1915, 23
    %v1917 = vsub.s32 %v1916, 127
    %v1918 = vand.u32 2147483647, %v1898
    %v1919 = vand.u32 %v1918, 8388607
    %v1920 = vor.u32 %v1919, 8388608
    %v1921 = vsub.s32 0, %v1920
    %v1922 = vadd.s32 %v1917, 1
    %vm1923 = vcmp.gt.s32.totalorder %v1922, 0
    %v1924 = vsel %vm1923, %v1922, 0
    %v1925 = vshrl.u32 %v1924, 5
    %v1926 = vand.u32 %v1924, 31
    %v1927 = vsub.s32 32, %v1926
    %v1928 = vshrl.u32 683565275, %v1927
    %v1929 = vshll.u32 683565275, %v1926
    %v1930 = vshrl.u32 2475754826, %v1927
    %v1931 = vor.u32 %v1929, %v1930
    %v1932 = vshll.u32 2475754826, %v1926
    %v1933 = vshrl.u32 2131351028, %v1927
    %v1934 = vor.u32 %v1932, %v1933
    %v1935 = vshll.u32 2131351028, %v1926
    %v1936 = vshrl.u32 2102212464, %v1927
    %v1937 = vor.u32 %v1935, %v1936
    %v1938 = vshll.u32 2102212464, %v1926
    %v1939 = vshrl.u32 920167782, %v1927
    %v1940 = vor.u32 %v1938, %v1939
    %v1941 = vshll.u32 920167782, %v1926
    %v1942 = vshrl.u32 1326507024, %v1927
    %v1943 = vor.u32 %v1941, %v1942
    %vm1944 = vcmp.lt.s32.totalorder %v1925, 1
    %vm1945 = vcmp.lt.s32.totalorder %v1925, 2
    %vm1946 = vcmp.lt.s32.totalorder %v1925, 3
    %vm1947 = vcmp.lt.s32.totalorder %v1925, 4
    %v1948 = vsel %vm1944, %v1928, %v1931
    %v1949 = vsel %vm1947, %v1937, 2102212464
    %v1950 = vsel %vm1946, %v1934, %v1949
    %v1951 = vsel %vm1945, %v1948, %v1950
    %v1952 = vsel %vm1944, %v1931, %v1934
    %v1953 = vsel %vm1947, %v1940, 920167782
    %v1954 = vsel %vm1946, %v1937, %v1953
    %v1955 = vsel %vm1945, %v1952, %v1954
    %v1956 = vsel %vm1944, %v1934, %v1937
    %v1957 = vsel %vm1947, %v1943, 1326507024
    %v1958 = vsel %vm1946, %v1940, %v1957
    %v1959 = vsel %vm1945, %v1956, %v1958
    %v1960 = vshll.u32 %v1920, 8
    %v1961 = vmul.u32.u64.compose %v1960, %v1959
    %v1962 = vextract.low.u32 %v1961
    %v1963 = vextract.high.u32 %v1961
    %v1964 = vmul.u32.u64.compose %v1960, %v1955
    %v1965 = vextract.low.u32 %v1964
    %v1966 = vextract.high.u32 %v1964
    %v1967 = vmul.u32 %v1960, %v1951
    %v1968 = vadd.s32 %v1963, %v1965
    %vm1969 = vc.u32 %v1963, %v1965
    %v1970 = vadd.s32 %v1966, 1
    %v1971 = vsel %vm1969, %v1970, %v1966
    %v1972 = vadd.s32 %v1967, %v1971
    %v1973 = vadd.s32 %v1972, 536870912
    %v1974 = vshrl.u32 %v1973, 30
    %v1975 = vshll.u32 %v1974, 30
    %v1976 = vsub.s32 %v1972, %v1975
    %vm1977 = vcmp.lt.s32.totalorder %v1976, 0
    %v1978 = vsub.s32 0, %v1976
    %v1979 = vsel %vm1977, %v1978, %v1976
    %v1980 = vclz %v1979
    %v1981 = vsub.s32 %v1980, 2
    %vm1982 = vcmp.gt.s32.totalorder 0, %v1981
    %v1983 = vsel %vm1982, 0, %v1981
    %v1984 = vsub.s32 32, %v1983
    %v1985 = vshll.u32 %v1976, %v1983
    %v1986 = vshrl.u32 %v1968, %v1984
    %v1987 = vor.u32 %v1985, %v1986
    %v1988 = vsub.s32 4294967266, %v1983
    %v1989 = vadd.s32 %v1988, 127
    %v1990 = vshll.u32 %v1989, 23
    %v1991 = vor.u32 4788187, %v1990
    %v1992 = vand.u32 2147483647, %v1991
    %v1994 = vcvt.s32.f32 %v1987
    %v1995 = vmul.f32 %v1994, %v1992
    %v1996 = vxor.u32 %v1995, 2147483648
    %v1997 = vsel %vm1914, %v1996, %v1995
    %v1998 = vsub.s32 4, %v1974
    %v1999 = vsel %vm1914, %v1998, %v1974
    %v2000 = vsel %vm1913, %v1898, %v1997
    %v2001 = vsel %vm1913, 0, %v1999
    %v2002 = vcosq.f32.pop %v2000
    %v2003 = vsinq.f32.pop %v2000
    %vm2004 = vweird.f32 %v1898
    %v2005 = vand.u32 %v2001, 3
    %vm2006 = vcmp.lt.s32.totalorder %v2005, 2
    %vm2007 = vcmp.eq.s32.totalorder %v2005, 0
    %v2008 = vxor.u32 %v2003, 2147483648
    %v2009 = vsel %vm2007, %v2002, %v2008
    %vm2010 = vcmp.eq.s32.totalorder %v2005, 2
    %v2011 = vxor.u32 %v2002, 2147483648
    %v2012 = vsel %vm2010, %v2011, %v2003
    %v2013 = vsel %vm2006, %v2009, %v2012
    %v2014 = vsel %vm2004, nan, %v2013
    %v2015 = vand.u32 2147483647, %v1899
    %vm2016 = vcmp.le.f32.partialorder %v2015, 0.7853982
    %vm2017 = vcmp.lt.s32.totalorder %v1899, 0
    %v2018 = vand.u32 %v1899, 2139095040
    %v2019 = vshrl.u32 %v2018, 23
    %v2020 = vsub.s32 %v2019, 127
    %v2021 = vand.u32 2147483647, %v1899
    %v2022 = vand.u32 %v2021, 8388607
    %v2023 = vor.u32 %v2022, 8388608
    %v2024 = vsub.s32 0, %v2023
    %v2025 = vadd.s32 %v2020, 1
    %vm2026 = vcmp.gt.s32.totalorder %v2025, 0
    %v2027 = vsel %vm2026, %v2025, 0
    %v2028 = vshrl.u32 %v2027, 5
    %v2029 = vand.u32 %v2027, 31
    %v2030 = vsub.s32 32, %v2029
    %v2031 = vshrl.u32 683565275, %v2030
    %v2032 = vshll.u32 683565275, %v2029
    %v2033 = vshrl.u32 2475754826, %v2030
    %v2034 = vor.u32 %v2032, %v2033
    %v2035 = vshll.u32 2475754826, %v2029
    %v2036 = vshrl.u32 2131351028, %v2030
    %v2037 = vor.u32 %v2035, %v2036
    %v2038 = vshll.u32 2131351028, %v2029
    %v2039 = vshrl.u32 2102212464, %v2030
    %v2040 = vor.u32 %v2038, %v2039
    %v2041 = vshll.u32 2102212464, %v2029
    %v2042 = vshrl.u32 920167782, %v2030
    %v2043 = vor.u32 %v2041, %v2042
    %v2044 = vshll.u32 920167782, %v2029
    %v2045 = vshrl.u32 1326507024, %v2030
    %v2046 = vor.u32 %v2044, %v2045
    %vm2047 = vcmp.lt.s32.totalorder %v2028, 1
    %vm2048 = vcmp.lt.s32.totalorder %v2028, 2
    %vm2049 = vcmp.lt.s32.totalorder %v2028, 3
    %vm2050 = vcmp.lt.s32.totalorder %v2028, 4
    %v2051 = vsel %vm2047, %v2031, %v2034
    %v2052 = vsel %vm2050, %v2040, 2102212464
    %v2053 = vsel %vm2049, %v2037, %v2052
    %v2054 = vsel %vm2048, %v2051, %v2053
    %v2055 = vsel %vm2047, %v2034, %v2037
    %v2056 = vsel %vm2050, %v2043, 920167782
    %v2057 = vsel %vm2049, %v2040, %v2056
    %v2058 = vsel %vm2048, %v2055, %v2057
    %v2059 = vsel %vm2047, %v2037, %v2040
    %v2060 = vsel %vm2050, %v2046, 1326507024
    %v2061 = vsel %vm2049, %v2043, %v2060
    %v2062 = vsel %vm2048, %v2059, %v2061
    %v2063 = vshll.u32 %v2023, 8
    %v2064 = vmul.u32.u64.compose %v2063, %v2062
    %v2065 = vextract.low.u32 %v2064
    %v2066 = vextract.high.u32 %v2064
    %v2067 = vmul.u32.u64.compose %v2063, %v2058
    %v2068 = vextract.low.u32 %v2067
    %v2069 = vextract.high.u32 %v2067
    %v2070 = vmul.u32 %v2063, %v2054
    %v2071 = vadd.s32 %v2066, %v2068
    %vm2072 = vc.u32 %v2066, %v2068
    %v2073 = vadd.s32 %v2069, 1
    %v2074 = vsel %vm2072, %v2073, %v2069
    %v2075 = vadd.s32 %v2070, %v2074
    %v2076 = vadd.s32 %v2075, 536870912
    %v2077 = vshrl.u32 %v2076, 30
    %v2078 = vshll.u32 %v2077, 30
    %v2079 = vsub.s32 %v2075, %v2078
    %vm2080 = vcmp.lt.s32.totalorder %v2079, 0
    %v2081 = vsub.s32 0, %v2079
    %v2082 = vsel %vm2080, %v2081, %v2079
    %v2083 = vclz %v2082
    %v2084 = vsub.s32 %v2083, 2
    %vm2085 = vcmp.gt.s32.totalorder 0, %v2084
    %v2086 = vsel %vm2085, 0, %v2084
    %v2087 = vsub.s32 32, %v2086
    %v2088 = vshll.u32 %v2079, %v2086
    %v2089 = vshrl.u32 %v2071, %v2087
    %v2090 = vor.u32 %v2088, %v2089
    %v2091 = vsub.s32 4294967266, %v2086
    %v2092 = vadd.s32 %v2091, 127
    %v2093 = vshll.u32 %v2092, 23
    %v2094 = vor.u32 4788187, %v2093
    %v2095 = vand.u32 2147483647, %v2094
    %v2097 = vcvt.s32.f32 %v2090
    %v2098 = vmul.f32 %v2097, %v2095
    %v2099 = vxor.u32 %v2098, 2147483648
    %v2100 = vsel %vm2017, %v2099, %v2098
    %v2101 = vsub.s32 4, %v2077
    %v2102 = vsel %vm2017, %v2101, %v2077
    %v2103 = vsel %vm2016, %v1899, %v2100
    %v2104 = vsel %vm2016, 0, %v2102
    %v2105 = vcosq.f32.pop %v2103
    %v2106 = vsinq.f32.pop %v2103
    %vm2107 = vweird.f32 %v1899
    %v2108 = vand.u32 %v2104, 3
    %vm2109 = vcmp.lt.s32.totalorder %v2108, 2
    %vm2110 = vcmp.eq.s32.totalorder %v2108, 0
    %v2111 = vxor.u32 %v2106, 2147483648
    %v2112 = vsel %vm2110, %v2105, %v2111
    %vm2113 = vcmp.eq.s32.totalorder %v2108, 2
    %v2114 = vxor.u32 %v2105, 2147483648
    %v2115 = vsel %vm2113, %v2114, %v2106
    %v2116 = vsel %vm2109, %v2112, %v2115
    %v2117 = vsel %vm2107, nan, %v2116
    %v2118 = vand.u32 2147483647, %v1898
    %vm2119 = vcmp.le.f32.partialorder %v2118, 0.7853982
    %vm2120 = vcmp.lt.s32.totalorder %v1898, 0
    %v2121 = vand.u32 %v1898, 2139095040
    %v2122 = vshrl.u32 %v2121, 23
    %v2123 = vsub.s32 %v2122, 127
    %v2124 = vand.u32 2147483647, %v1898
    %v2125 = vand.u32 %v2124, 8388607
    %v2126 = vor.u32 %v2125, 8388608
    %v2127 = vsub.s32 0, %v2126
    %v2128 = vadd.s32 %v2123, 1
    %vm2129 = vcmp.gt.s32.totalorder %v2128, 0
    %v2130 = vsel %vm2129, %v2128, 0
    %v2131 = vshrl.u32 %v2130, 5
    %v2132 = vand.u32 %v2130, 31
    %v2133 = vsub.s32 32, %v2132
    %v2134 = vshrl.u32 683565275, %v2133
    %v2135 = vshll.u32 683565275, %v2132
    %v2136 = vshrl.u32 2475754826, %v2133
    %v2137 = vor.u32 %v2135, %v2136
    %v2138 = vshll.u32 2475754826, %v2132
    %v2139 = vshrl.u32 2131351028, %v2133
    %v2140 = vor.u32 %v2138, %v2139
    %v2141 = vshll.u32 2131351028, %v2132
    %v2142 = vshrl.u32 2102212464, %v2133
    %v2143 = vor.u32 %v2141, %v2142
    %v2144 = vshll.u32 2102212464, %v2132
    %v2145 = vshrl.u32 920167782, %v2133
    %v2146 = vor.u32 %v2144, %v2145
    %v2147 = vshll.u32 920167782, %v2132
    %v2148 = vshrl.u32 1326507024, %v2133
    %v2149 = vor.u32 %v2147, %v2148
    %vm2150 = vcmp.lt.s32.totalorder %v2131, 1
    %vm2151 = vcmp.lt.s32.totalorder %v2131, 2
    %vm2152 = vcmp.lt.s32.totalorder %v2131, 3
    %vm2153 = vcmp.lt.s32.totalorder %v2131, 4
    %v2154 = vsel %vm2150, %v2134, %v2137
    %v2155 = vsel %vm2153, %v2143, 2102212464
    %v2156 = vsel %vm2152, %v2140, %v2155
    %v2157 = vsel %vm2151, %v2154, %v2156
    %v2158 = vsel %vm2150, %v2137, %v2140
    %v2159 = vsel %vm2153, %v2146, 920167782
    %v2160 = vsel %vm2152, %v2143, %v2159
    %v2161 = vsel %vm2151, %v2158, %v2160
    %v2162 = vsel %vm2150, %v2140, %v2143
    %v2163 = vsel %vm2153, %v2149, 1326507024
    %v2164 = vsel %vm2152, %v2146, %v2163
    %v2165 = vsel %vm2151, %v2162, %v2164
    %v2166 = vshll.u32 %v2126, 8
    %v2167 = vmul.u32.u64.compose %v2166, %v2165
    %v2168 = vextract.low.u32 %v2167
    %v2169 = vextract.high.u32 %v2167
    %v2170 = vmul.u32.u64.compose %v2166, %v2161
    %v2171 = vextract.low.u32 %v2170
    %v2172 = vextract.high.u32 %v2170
    %v2173 = vmul.u32 %v2166, %v2157
    %v2174 = vadd.s32 %v2169, %v2171
    %vm2175 = vc.u32 %v2169, %v2171
    %v2176 = vadd.s32 %v2172, 1
    %v2177 = vsel %vm2175, %v2176, %v2172
    %v2178 = vadd.s32 %v2173, %v2177
    %v2179 = vadd.s32 %v2178, 536870912
    %v2180 = vshrl.u32 %v2179, 30
    %v2181 = vshll.u32 %v2180, 30
    %v2182 = vsub.s32 %v2178, %v2181
    %vm2183 = vcmp.lt.s32.totalorder %v2182, 0
    %v2184 = vsub.s32 0, %v2182
    %v2185 = vsel %vm2183, %v2184, %v2182
    %v2186 = vclz %v2185
    %v2187 = vsub.s32 %v2186, 2
    %vm2188 = vcmp.gt.s32.totalorder 0, %v2187
    %v2189 = vsel %vm2188, 0, %v2187
    %v2190 = vsub.s32 32, %v2189
    %v2191 = vshll.u32 %v2182, %v2189
    %v2192 = vshrl.u32 %v2174, %v2190
    %v2193 = vor.u32 %v2191, %v2192
    %v2194 = vsub.s32 4294967266, %v2189
    %v2195 = vadd.s32 %v2194, 127
    %v2196 = vshll.u32 %v2195, 23
    %v2197 = vor.u32 4788187, %v2196
    %v2198 = vand.u32 2147483647, %v2197
    %v2200 = vcvt.s32.f32 %v2193
    %v2201 = vmul.f32 %v2200, %v2198
    %v2202 = vxor.u32 %v2201, 2147483648
    %v2203 = vsel %vm2120, %v2202, %v2201
    %v2204 = vsub.s32 4, %v2180
    %v2205 = vsel %vm2120, %v2204, %v2180
    %v2206 = vsel %vm2119, %v1898, %v2203
    %v2207 = vsel %vm2119, 0, %v2205
    %v2208 = vcosq.f32.pop %v2206
    %v2209 = vsinq.f32.pop %v2206
    %vm2210 = vweird.f32 %v1898
    %v2211 = vadd.s32 %v2207, 3
    %v2212 = vand.u32 %v2211, 3
    %vm2213 = vcmp.lt.s32.totalorder %v2212, 2
    %vm2214 = vcmp.eq.s32.totalorder %v2212, 0
    %v2215 = vxor.u32 %v2209, 2147483648
    %v2216 = vsel %vm2214, %v2208, %v2215
    %vm2217 = vcmp.eq.s32.totalorder %v2212, 2
    %v2218 = vxor.u32 %v2208, 2147483648
    %v2219 = vsel %vm2217, %v2218, %v2209
    %v2220 = vsel %vm2213, %v2216, %v2219
    %v2221 = vsel %vm2210, nan, %v2220
    %v2222 = vand.u32 2147483647, %v1899
    %vm2223 = vcmp.le.f32.partialorder %v2222, 0.7853982
    %vm2224 = vcmp.lt.s32.totalorder %v1899, 0
    %v2225 = vand.u32 %v1899, 2139095040
    %v2226 = vshrl.u32 %v2225, 23
    %v2227 = vsub.s32 %v2226, 127
    %v2228 = vand.u32 2147483647, %v1899
    %v2229 = vand.u32 %v2228, 8388607
    %v2230 = vor.u32 %v2229, 8388608
    %v2231 = vsub.s32 0, %v2230
    %v2232 = vadd.s32 %v2227, 1
    %vm2233 = vcmp.gt.s32.totalorder %v2232, 0
    %v2234 = vsel %vm2233, %v2232, 0
    %v2235 = vshrl.u32 %v2234, 5
    %v2236 = vand.u32 %v2234, 31
    %v2237 = vsub.s32 32, %v2236
    %v2238 = vshrl.u32 683565275, %v2237
    %v2239 = vshll.u32 683565275, %v2236
    %v2240 = vshrl.u32 2475754826, %v2237
    %v2241 = vor.u32 %v2239, %v2240
    %v2242 = vshll.u32 2475754826, %v2236
    %v2243 = vshrl.u32 2131351028, %v2237
    %v2244 = vor.u32 %v2242, %v2243
    %v2245 = vshll.u32 2131351028, %v2236
    %v2246 = vshrl.u32 2102212464, %v2237
    %v2247 = vor.u32 %v2245, %v2246
    %v2248 = vshll.u32 2102212464, %v2236
    %v2249 = vshrl.u32 920167782, %v2237
    %v2250 = vor.u32 %v2248, %v2249
    %v2251 = vshll.u32 920167782, %v2236
    %v2252 = vshrl.u32 1326507024, %v2237
    %v2253 = vor.u32 %v2251, %v2252
    %vm2254 = vcmp.lt.s32.totalorder %v2235, 1
    %vm2255 = vcmp.lt.s32.totalorder %v2235, 2
    %vm2256 = vcmp.lt.s32.totalorder %v2235, 3
    %vm2257 = vcmp.lt.s32.totalorder %v2235, 4
    %v2258 = vsel %vm2254, %v2238, %v2241
    %v2259 = vsel %vm2257, %v2247, 2102212464
    %v2260 = vsel %vm2256, %v2244, %v2259
    %v2261 = vsel %vm2255, %v2258, %v2260
    %v2262 = vsel %vm2254, %v2241, %v2244
    %v2263 = vsel %vm2257, %v2250, 920167782
    %v2264 = vsel %vm2256, %v2247, %v2263
    %v2265 = vsel %vm2255, %v2262, %v2264
    %v2266 = vsel %vm2254, %v2244, %v2247
    %v2267 = vsel %vm2257, %v2253, 1326507024
    %v2268 = vsel %vm2256, %v2250, %v2267
    %v2269 = vsel %vm2255, %v2266, %v2268
    %v2270 = vshll.u32 %v2230, 8
    %v2271 = vmul.u32.u64.compose %v2270, %v2269
    %v2272 = vextract.low.u32 %v2271
    %v2273 = vextract.high.u32 %v2271
    %v2274 = vmul.u32.u64.compose %v2270, %v2265
    %v2275 = vextract.low.u32 %v2274
    %v2276 = vextract.high.u32 %v2274
    %v2277 = vmul.u32 %v2270, %v2261
    %v2278 = vadd.s32 %v2273, %v2275
    %vm2279 = vc.u32 %v2273, %v2275
    %v2280 = vadd.s32 %v2276, 1
    %v2281 = vsel %vm2279, %v2280, %v2276
    %v2282 = vadd.s32 %v2277, %v2281
    %v2283 = vadd.s32 %v2282, 536870912
    %v2284 = vshrl.u32 %v2283, 30
    %v2285 = vshll.u32 %v2284, 30
    %v2286 = vsub.s32 %v2282, %v2285
    %vm2287 = vcmp.lt.s32.totalorder %v2286, 0
    %v2288 = vsub.s32 0, %v2286
    %v2289 = vsel %vm2287, %v2288, %v2286
    %v2290 = vclz %v2289
    %v2291 = vsub.s32 %v2290, 2
    %vm2292 = vcmp.gt.s32.totalorder 0, %v2291
    %v2293 = vsel %vm2292, 0, %v2291
    %v2294 = vsub.s32 32, %v2293
    %v2295 = vshll.u32 %v2286, %v2293
    %v2296 = vshrl.u32 %v2278, %v2294
    %v2297 = vor.u32 %v2295, %v2296
    %v2298 = vsub.s32 4294967266, %v2293
    %v2299 = vadd.s32 %v2298, 127
    %v2300 = vshll.u32 %v2299, 23
    %v2301 = vor.u32 4788187, %v2300
    %v2302 = vand.u32 2147483647, %v2301
    %v2304 = vcvt.s32.f32 %v2297
    %v2305 = vmul.f32 %v2304, %v2302
    %v2306 = vxor.u32 %v2305, 2147483648
    %v2307 = vsel %vm2224, %v2306, %v2305
    %v2308 = vsub.s32 4, %v2284
    %v2309 = vsel %vm2224, %v2308, %v2284
    %v2310 = vsel %vm2223, %v1899, %v2307
    %v2311 = vsel %vm2223, 0, %v2309
    %v2312 = vcosq.f32.pop %v2310
    %v2313 = vsinq.f32.pop %v2310
    %vm2314 = vweird.f32 %v1899
    %v2315 = vadd.s32 %v2311, 3
    %v2316 = vand.u32 %v2315, 3
    %vm2317 = vcmp.lt.s32.totalorder %v2316, 2
    %vm2318 = vcmp.eq.s32.totalorder %v2316, 0
    %v2319 = vxor.u32 %v2313, 2147483648
    %v2320 = vsel %vm2318, %v2312, %v2319
    %vm2321 = vcmp.eq.s32.totalorder %v2316, 2
    %v2322 = vxor.u32 %v2312, 2147483648
    %v2323 = vsel %vm2321, %v2322, %v2313
    %v2324 = vsel %vm2317, %v2320, %v2323
    %v2325 = vsel %vm2314, nan, %v2324
    %v2326 = vmul.f32 %v1903, %v2014
    %v2327 = vmul.f32 %v1905, %v2117
    %v2328 = vmul.f32 %v1903, %v2221
    %v2329 = vmul.f32 %v1905, %v2325
    %v2330 = vsub.f32 0.0, %v2328
    %v2331 = vsub.f32 0.0, %v2329
    %v2332 = vmul.f32 %v1909, %v2014
    %v2333 = vmul.f32 %v1911, %v2117
    %v2334 = vmul.f32 %v1909, %v2221
    %v2335 = vmul.f32 %v1911, %v2325
    %v2336 = vmul.f32 %v1848, %v1796
    %v2337 = vmul.f32 %v1852, %v1797
    %v2338 = vmul.f32 %v1861, %v1802
    %v2339 = vmul.f32 %v1865, %v1803
    %v2340 = vsub.f32 %v2336, %v2338
    %v2341 = vsub.f32 %v2337, %v2339
    %v2342 = vmul.f32 %v1848, %v1802
    %v2343 = vmul.f32 %v1852, %v1803
    %v2344 = vmul.f32 %v1861, %v1796
    %v2345 = vmul.f32 %v1865, %v1797
    %v2346 = vadd.f32 %v2342, %v2344
    %v2347 = vadd.f32 %v2343, %v2345
    %v2348 = vmul.f32 %v1874, %v1808
    %v2349 = vmul.f32 %v1878, %v1809
    %v2350 = vmul.f32 %v1887, %v1814
    %v2351 = vmul.f32 %v1891, %v1815
    %v2352 = vsub.f32 %v2348, %v2350
    %v2353 = vsub.f32 %v2349, %v2351
    %v2354 = vmul.f32 %v1874, %v1814
    %v2355 = vmul.f32 %v1878, %v1815
    %v2356 = vmul.f32 %v1887, %v1808
    %v2357 = vmul.f32 %v1891, %v1809
    %v2358 = vadd.f32 %v2354, %v2356
    %v2359 = vadd.f32 %v2355, %v2357
    %v2360 = vadd.f32 %v2340, %v2352
    %v2361 = vadd.f32 %v2341, %v2353
    %v2362 = vadd.f32 %v2346, %v2358
    %v2363 = vadd.f32 %v2347, %v2359
    %v2364 = vmul.f32 %v1874, %v1796
    %v2365 = vmul.f32 %v1878, %v1797
    %v2366 = vmul.f32 %v1887, %v1802
    %v2367 = vmul.f32 %v1891, %v1803
    %v2368 = vsub.f32 %v2364, %v2366
    %v2369 = vsub.f32 %v2365, %v2367
    %v2370 = vmul.f32 %v1874, %v1802
    %v2371 = vmul.f32 %v1878, %v1803
    %v2372 = vmul.f32 %v1887, %v1796
    %v2373 = vmul.f32 %v1891, %v1797
    %v2374 = vadd.f32 %v2370, %v2372
    %v2375 = vadd.f32 %v2371, %v2373
    %v2376 = vmul.f32 %v1848, %v1808
    %v2377 = vmul.f32 %v1852, %v1809
    %v2378 = vmul.f32 %v1861, %v1814
    %v2379 = vmul.f32 %v1865, %v1815
    %v2380 = vsub.f32 %v2376, %v2378
    %v2381 = vsub.f32 %v2377, %v2379
    %v2382 = vmul.f32 %v1848, %v1814
    %v2383 = vmul.f32 %v1852, %v1815
    %v2384 = vmul.f32 %v1861, %v1808
    %v2385 = vmul.f32 %v1865, %v1809
    %v2386 = vadd.f32 %v2382, %v2384
    %v2387 = vadd.f32 %v2383, %v2385
    %v2388 = vadd.f32 %v2368, %v2380
    %v2389 = vadd.f32 %v2369, %v2381
    %v2390 = vadd.f32 %v2374, %v2386
    %v2391 = vadd.f32 %v2375, %v2387
    %v2392 = vmul.f32 %v2326, %v2360
    %v2393 = vmul.f32 %v2327, %v2361
    %v2394 = vmul.f32 %v2330, %v2362
    %v2395 = vmul.f32 %v2331, %v2363
    %v2396 = vsub.f32 %v2392, %v2394
    %v2397 = vsub.f32 %v2393, %v2395
    %v2398 = vmul.f32 %v2326, %v2362
    %v2399 = vmul.f32 %v2327, %v2363
    %v2400 = vmul.f32 %v2330, %v2360
    %v2401 = vmul.f32 %v2331, %v2361
    %v2402 = vadd.f32 %v2398, %v2400
    %v2403 = vadd.f32 %v2399, %v2401
    %v2404 = vmul.f32 %v2332, %v2388
    %v2405 = vmul.f32 %v2333, %v2389
    %v2406 = vmul.f32 %v2334, %v2390
    %v2407 = vmul.f32 %v2335, %v2391
    %v2408 = vsub.f32 %v2404, %v2406
    %v2409 = vsub.f32 %v2405, %v2407
    %v2410 = vmul.f32 %v2332, %v2390
    %v2411 = vmul.f32 %v2333, %v2391
    %v2412 = vmul.f32 %v2334, %v2388
    %v2413 = vmul.f32 %v2335, %v2389
    %v2414 = vadd.f32 %v2410, %v2412
    %v2415 = vadd.f32 %v2411, %v2413
    %s2416 = scalar_lea.vmem [#allocation5], 16
    %v2417 = vld [vmem:[%s2416] ss:$8 sm:$0x3]
    %v2419 = vlaneseq
    %v2420 = vshrl.u32 %v2419, 7
    %v2421 = vsub.s32 0, %v2420
    %v2422 = vrot.slane %v2417, %v2421
    %v2423 = vlaneseq
    %v2424 = vshrl.u32 %v2423, 7
    %v2425 = vsub.s32 1, %v2424
    %v2426 = vrot.slane %v2417, %v2425
    %s2429 = scalar_lea.vmem [#allocation5], 17
    %v2430 = vld [vmem:[%s2429] ss:$8 sm:$0x3]
    %v2432 = vlaneseq
    %v2433 = vshrl.u32 %v2432, 7
    %v2434 = vsub.s32 0, %v2433
    %v2435 = vrot.slane %v2430, %v2434
    %v2436 = vlaneseq
    %v2437 = vshrl.u32 %v2436, 7
    %v2438 = vsub.s32 1, %v2437
    %v2439 = vrot.slane %v2430, %v2438
    %s2442 = scalar_lea.vmem [#allocation5], 18
    %v2443 = vld [vmem:[%s2442] ss:$8 sm:$0x3]
    %v2445 = vlaneseq
    %v2446 = vshrl.u32 %v2445, 7
    %v2447 = vsub.s32 0, %v2446
    %v2448 = vrot.slane %v2443, %v2447
    %v2449 = vlaneseq
    %v2450 = vshrl.u32 %v2449, 7
    %v2451 = vsub.s32 1, %v2450
    %v2452 = vrot.slane %v2443, %v2451
    %s2455 = scalar_lea.vmem [#allocation5], 19
    %v2456 = vld [vmem:[%s2455] ss:$8 sm:$0x3]
    %v2458 = vlaneseq
    %v2459 = vshrl.u32 %v2458, 7
    %v2460 = vsub.s32 0, %v2459
    %v2461 = vrot.slane %v2456, %v2460
    %v2462 = vlaneseq
    %v2463 = vshrl.u32 %v2462, 7
    %v2464 = vsub.s32 1, %v2463
    %v2465 = vrot.slane %v2456, %v2464
    %s2468 = scalar_lea.vmem [#allocation5], 20
    %v2469 = vld [vmem:[%s2468] ss:$8 sm:$0x3]
    %v2471 = vlaneseq
    %v2472 = vshrl.u32 %v2471, 7
    %v2473 = vsub.s32 0, %v2472
    %v2474 = vrot.slane %v2469, %v2473
    %v2475 = vlaneseq
    %v2476 = vshrl.u32 %v2475, 7
    %v2477 = vsub.s32 1, %v2476
    %v2478 = vrot.slane %v2469, %v2477
    %s2481 = scalar_lea.vmem [#allocation5], 21
    %v2482 = vld [vmem:[%s2481] ss:$8 sm:$0x3]
    %v2484 = vlaneseq
    %v2485 = vshrl.u32 %v2484, 7
    %v2486 = vsub.s32 0, %v2485
    %v2487 = vrot.slane %v2482, %v2486
    %v2488 = vlaneseq
    %v2489 = vshrl.u32 %v2488, 7
    %v2490 = vsub.s32 1, %v2489
    %v2491 = vrot.slane %v2482, %v2490
    %2494 = vset.pattern.permute.xlu0 1
    %2495 = vperm.xlu0 %2494, %v116
    %v2496 = vpop.permute.xlu0 %2495
    %v2498 = vmul.f32 %v2496, %v2422
    %v2499 = vmul.f32 %v2496, %v2426
    %v2500 = vmul.f32 %v2496, %v2435
    %v2501 = vmul.f32 %v2496, %v2439
    %v2502 = vmul.f32 %v2500, 1.442695
    %v2503 = vpow.pop %v2502
    %v2504 = vmul.f32 %v2501, 1.442695
    %v2505 = vpow.pop %v2504
    %v2506 = vsub.f32 0.0, %v2500
    %v2507 = vsub.f32 0.0, %v2501
    %v2508 = vmul.f32 %v2506, 1.442695
    %v2509 = vpow.pop %v2508
    %v2510 = vmul.f32 %v2507, 1.442695
    %v2511 = vpow.pop %v2510
    %v2512 = vand.u32 2147483647, %v2498
    %vm2513 = vcmp.le.f32.partialorder %v2512, 0.7853982
    %vm2514 = vcmp.lt.s32.totalorder %v2498, 0
    %v2515 = vand.u32 %v2498, 2139095040
    %v2516 = vshrl.u32 %v2515, 23
    %v2517 = vsub.s32 %v2516, 127
    %v2518 = vand.u32 2147483647, %v2498
    %v2519 = vand.u32 %v2518, 8388607
    %v2520 = vor.u32 %v2519, 8388608
    %v2521 = vsub.s32 0, %v2520
    %v2522 = vadd.s32 %v2517, 1
    %vm2523 = vcmp.gt.s32.totalorder %v2522, 0
    %v2524 = vsel %vm2523, %v2522, 0
    %v2525 = vshrl.u32 %v2524, 5
    %v2526 = vand.u32 %v2524, 31
    %v2527 = vsub.s32 32, %v2526
    %v2528 = vshrl.u32 683565275, %v2527
    %v2529 = vshll.u32 683565275, %v2526
    %v2530 = vshrl.u32 2475754826, %v2527
    %v2531 = vor.u32 %v2529, %v2530
    %v2532 = vshll.u32 2475754826, %v2526
    %v2533 = vshrl.u32 2131351028, %v2527
    %v2534 = vor.u32 %v2532, %v2533
    %v2535 = vshll.u32 2131351028, %v2526
    %v2536 = vshrl.u32 2102212464, %v2527
    %v2537 = vor.u32 %v2535, %v2536
    %v2538 = vshll.u32 2102212464, %v2526
    %v2539 = vshrl.u32 920167782, %v2527
    %v2540 = vor.u32 %v2538, %v2539
    %v2541 = vshll.u32 920167782, %v2526
    %v2542 = vshrl.u32 1326507024, %v2527
    %v2543 = vor.u32 %v2541, %v2542
    %vm2544 = vcmp.lt.s32.totalorder %v2525, 1
    %vm2545 = vcmp.lt.s32.totalorder %v2525, 2
    %vm2546 = vcmp.lt.s32.totalorder %v2525, 3
    %vm2547 = vcmp.lt.s32.totalorder %v2525, 4
    %v2548 = vsel %vm2544, %v2528, %v2531
    %v2549 = vsel %vm2547, %v2537, 2102212464
    %v2550 = vsel %vm2546, %v2534, %v2549
    %v2551 = vsel %vm2545, %v2548, %v2550
    %v2552 = vsel %vm2544, %v2531, %v2534
    %v2553 = vsel %vm2547, %v2540, 920167782
    %v2554 = vsel %vm2546, %v2537, %v2553
    %v2555 = vsel %vm2545, %v2552, %v2554
    %v2556 = vsel %vm2544, %v2534, %v2537
    %v2557 = vsel %vm2547, %v2543, 1326507024
    %v2558 = vsel %vm2546, %v2540, %v2557
    %v2559 = vsel %vm2545, %v2556, %v2558
    %v2560 = vshll.u32 %v2520, 8
    %v2561 = vmul.u32.u64.compose %v2560, %v2559
    %v2562 = vextract.low.u32 %v2561
    %v2563 = vextract.high.u32 %v2561
    %v2564 = vmul.u32.u64.compose %v2560, %v2555
    %v2565 = vextract.low.u32 %v2564
    %v2566 = vextract.high.u32 %v2564
    %v2567 = vmul.u32 %v2560, %v2551
    %v2568 = vadd.s32 %v2563, %v2565
    %vm2569 = vc.u32 %v2563, %v2565
    %v2570 = vadd.s32 %v2566, 1
    %v2571 = vsel %vm2569, %v2570, %v2566
    %v2572 = vadd.s32 %v2567, %v2571
    %v2573 = vadd.s32 %v2572, 536870912
    %v2574 = vshrl.u32 %v2573, 30
    %v2575 = vshll.u32 %v2574, 30
    %v2576 = vsub.s32 %v2572, %v2575
    %vm2577 = vcmp.lt.s32.totalorder %v2576, 0
    %v2578 = vsub.s32 0, %v2576
    %v2579 = vsel %vm2577, %v2578, %v2576
    %v2580 = vclz %v2579
    %v2581 = vsub.s32 %v2580, 2
    %vm2582 = vcmp.gt.s32.totalorder 0, %v2581
    %v2583 = vsel %vm2582, 0, %v2581
    %v2584 = vsub.s32 32, %v2583
    %v2585 = vshll.u32 %v2576, %v2583
    %v2586 = vshrl.u32 %v2568, %v2584
    %v2587 = vor.u32 %v2585, %v2586
    %v2588 = vsub.s32 4294967266, %v2583
    %v2589 = vadd.s32 %v2588, 127
    %v2590 = vshll.u32 %v2589, 23
    %v2591 = vor.u32 4788187, %v2590
    %v2592 = vand.u32 2147483647, %v2591
    %v2594 = vcvt.s32.f32 %v2587
    %v2595 = vmul.f32 %v2594, %v2592
    %v2596 = vxor.u32 %v2595, 2147483648
    %v2597 = vsel %vm2514, %v2596, %v2595
    %v2598 = vsub.s32 4, %v2574
    %v2599 = vsel %vm2514, %v2598, %v2574
    %v2600 = vsel %vm2513, %v2498, %v2597
    %v2601 = vsel %vm2513, 0, %v2599
    %v2602 = vcosq.f32.pop %v2600
    %v2603 = vsinq.f32.pop %v2600
    %vm2604 = vweird.f32 %v2498
    %v2605 = vand.u32 %v2601, 3
    %vm2606 = vcmp.lt.s32.totalorder %v2605, 2
    %vm2607 = vcmp.eq.s32.totalorder %v2605, 0
    %v2608 = vxor.u32 %v2603, 2147483648
    %v2609 = vsel %vm2607, %v2602, %v2608
    %vm2610 = vcmp.eq.s32.totalorder %v2605, 2
    %v2611 = vxor.u32 %v2602, 2147483648
    %v2612 = vsel %vm2610, %v2611, %v2603
    %v2613 = vsel %vm2606, %v2609, %v2612
    %v2614 = vsel %vm2604, nan, %v2613
    %v2615 = vand.u32 2147483647, %v2499
    %vm2616 = vcmp.le.f32.partialorder %v2615, 0.7853982
    %vm2617 = vcmp.lt.s32.totalorder %v2499, 0
    %v2618 = vand.u32 %v2499, 2139095040
    %v2619 = vshrl.u32 %v2618, 23
    %v2620 = vsub.s32 %v2619, 127
    %v2621 = vand.u32 2147483647, %v2499
    %v2622 = vand.u32 %v2621, 8388607
    %v2623 = vor.u32 %v2622, 8388608
    %v2624 = vsub.s32 0, %v2623
    %v2625 = vadd.s32 %v2620, 1
    %vm2626 = vcmp.gt.s32.totalorder %v2625, 0
    %v2627 = vsel %vm2626, %v2625, 0
    %v2628 = vshrl.u32 %v2627, 5
    %v2629 = vand.u32 %v2627, 31
    %v2630 = vsub.s32 32, %v2629
    %v2631 = vshrl.u32 683565275, %v2630
    %v2632 = vshll.u32 683565275, %v2629
    %v2633 = vshrl.u32 2475754826, %v2630
    %v2634 = vor.u32 %v2632, %v2633
    %v2635 = vshll.u32 2475754826, %v2629
    %v2636 = vshrl.u32 2131351028, %v2630
    %v2637 = vor.u32 %v2635, %v2636
    %v2638 = vshll.u32 2131351028, %v2629
    %v2639 = vshrl.u32 2102212464, %v2630
    %v2640 = vor.u32 %v2638, %v2639
    %v2641 = vshll.u32 2102212464, %v2629
    %v2642 = vshrl.u32 920167782, %v2630
    %v2643 = vor.u32 %v2641, %v2642
    %v2644 = vshll.u32 920167782, %v2629
    %v2645 = vshrl.u32 1326507024, %v2630
    %v2646 = vor.u32 %v2644, %v2645
    %vm2647 = vcmp.lt.s32.totalorder %v2628, 1
    %vm2648 = vcmp.lt.s32.totalorder %v2628, 2
    %vm2649 = vcmp.lt.s32.totalorder %v2628, 3
    %vm2650 = vcmp.lt.s32.totalorder %v2628, 4
    %v2651 = vsel %vm2647, %v2631, %v2634
    %v2652 = vsel %vm2650, %v2640, 2102212464
    %v2653 = vsel %vm2649, %v2637, %v2652
    %v2654 = vsel %vm2648, %v2651, %v2653
    %v2655 = vsel %vm2647, %v2634, %v2637
    %v2656 = vsel %vm2650, %v2643, 920167782
    %v2657 = vsel %vm2649, %v2640, %v2656
    %v2658 = vsel %vm2648, %v2655, %v2657
    %v2659 = vsel %vm2647, %v2637, %v2640
    %v2660 = vsel %vm2650, %v2646, 1326507024
    %v2661 = vsel %vm2649, %v2643, %v2660
    %v2662 = vsel %vm2648, %v2659, %v2661
    %v2663 = vshll.u32 %v2623, 8
    %v2664 = vmul.u32.u64.compose %v2663, %v2662
    %v2665 = vextract.low.u32 %v2664
    %v2666 = vextract.high.u32 %v2664
    %v2667 = vmul.u32.u64.compose %v2663, %v2658
    %v2668 = vextract.low.u32 %v2667
    %v2669 = vextract.high.u32 %v2667
    %v2670 = vmul.u32 %v2663, %v2654
    %v2671 = vadd.s32 %v2666, %v2668
    %vm2672 = vc.u32 %v2666, %v2668
    %v2673 = vadd.s32 %v2669, 1
    %v2674 = vsel %vm2672, %v2673, %v2669
    %v2675 = vadd.s32 %v2670, %v2674
    %v2676 = vadd.s32 %v2675, 536870912
    %v2677 = vshrl.u32 %v2676, 30
    %v2678 = vshll.u32 %v2677, 30
    %v2679 = vsub.s32 %v2675, %v2678
    %vm2680 = vcmp.lt.s32.totalorder %v2679, 0
    %v2681 = vsub.s32 0, %v2679
    %v2682 = vsel %vm2680, %v2681, %v2679
    %v2683 = vclz %v2682
    %v2684 = vsub.s32 %v2683, 2
    %vm2685 = vcmp.gt.s32.totalorder 0, %v2684
    %v2686 = vsel %vm2685, 0, %v2684
    %v2687 = vsub.s32 32, %v2686
    %v2688 = vshll.u32 %v2679, %v2686
    %v2689 = vshrl.u32 %v2671, %v2687
    %v2690 = vor.u32 %v2688, %v2689
    %v2691 = vsub.s32 4294967266, %v2686
    %v2692 = vadd.s32 %v2691, 127
    %v2693 = vshll.u32 %v2692, 23
    %v2694 = vor.u32 4788187, %v2693
    %v2695 = vand.u32 2147483647, %v2694
    %v2697 = vcvt.s32.f32 %v2690
    %v2698 = vmul.f32 %v2697, %v2695
    %v2699 = vxor.u32 %v2698, 2147483648
    %v2700 = vsel %vm2617, %v2699, %v2698
    %v2701 = vsub.s32 4, %v2677
    %v2702 = vsel %vm2617, %v2701, %v2677
    %v2703 = vsel %vm2616, %v2499, %v2700
    %v2704 = vsel %vm2616, 0, %v2702
    %v2705 = vcosq.f32.pop %v2703
    %v2706 = vsinq.f32.pop %v2703
    %vm2707 = vweird.f32 %v2499
    %v2708 = vand.u32 %v2704, 3
    %vm2709 = vcmp.lt.s32.totalorder %v2708, 2
    %vm2710 = vcmp.eq.s32.totalorder %v2708, 0
    %v2711 = vxor.u32 %v2706, 2147483648
    %v2712 = vsel %vm2710, %v2705, %v2711
    %vm2713 = vcmp.eq.s32.totalorder %v2708, 2
    %v2714 = vxor.u32 %v2705, 2147483648
    %v2715 = vsel %vm2713, %v2714, %v2706
    %v2716 = vsel %vm2709, %v2712, %v2715
    %v2717 = vsel %vm2707, nan, %v2716
    %v2718 = vand.u32 2147483647, %v2498
    %vm2719 = vcmp.le.f32.partialorder %v2718, 0.7853982
    %vm2720 = vcmp.lt.s32.totalorder %v2498, 0
    %v2721 = vand.u32 %v2498, 2139095040
    %v2722 = vshrl.u32 %v2721, 23
    %v2723 = vsub.s32 %v2722, 127
    %v2724 = vand.u32 2147483647, %v2498
    %v2725 = vand.u32 %v2724, 8388607
    %v2726 = vor.u32 %v2725, 8388608
    %v2727 = vsub.s32 0, %v2726
    %v2728 = vadd.s32 %v2723, 1
    %vm2729 = vcmp.gt.s32.totalorder %v2728, 0
    %v2730 = vsel %vm2729, %v2728, 0
    %v2731 = vshrl.u32 %v2730, 5
    %v2732 = vand.u32 %v2730, 31
    %v2733 = vsub.s32 32, %v2732
    %v2734 = vshrl.u32 683565275, %v2733
    %v2735 = vshll.u32 683565275, %v2732
    %v2736 = vshrl.u32 2475754826, %v2733
    %v2737 = vor.u32 %v2735, %v2736
    %v2738 = vshll.u32 2475754826, %v2732
    %v2739 = vshrl.u32 2131351028, %v2733
    %v2740 = vor.u32 %v2738, %v2739
    %v2741 = vshll.u32 2131351028, %v2732
    %v2742 = vshrl.u32 2102212464, %v2733
    %v2743 = vor.u32 %v2741, %v2742
    %v2744 = vshll.u32 2102212464, %v2732
    %v2745 = vshrl.u32 920167782, %v2733
    %v2746 = vor.u32 %v2744, %v2745
    %v2747 = vshll.u32 920167782, %v2732
    %v2748 = vshrl.u32 1326507024, %v2733
    %v2749 = vor.u32 %v2747, %v2748
    %vm2750 = vcmp.lt.s32.totalorder %v2731, 1
    %vm2751 = vcmp.lt.s32.totalorder %v2731, 2
    %vm2752 = vcmp.lt.s32.totalorder %v2731, 3
    %vm2753 = vcmp.lt.s32.totalorder %v2731, 4
    %v2754 = vsel %vm2750, %v2734, %v2737
    %v2755 = vsel %vm2753, %v2743, 2102212464
    %v2756 = vsel %vm2752, %v2740, %v2755
    %v2757 = vsel %vm2751, %v2754, %v2756
    %v2758 = vsel %vm2750, %v2737, %v2740
    %v2759 = vsel %vm2753, %v2746, 920167782
    %v2760 = vsel %vm2752, %v2743, %v2759
    %v2761 = vsel %vm2751, %v2758, %v2760
    %v2762 = vsel %vm2750, %v2740, %v2743
    %v2763 = vsel %vm2753, %v2749, 1326507024
    %v2764 = vsel %vm2752, %v2746, %v2763
    %v2765 = vsel %vm2751, %v2762, %v2764
    %v2766 = vshll.u32 %v2726, 8
    %v2767 = vmul.u32.u64.compose %v2766, %v2765
    %v2768 = vextract.low.u32 %v2767
    %v2769 = vextract.high.u32 %v2767
    %v2770 = vmul.u32.u64.compose %v2766, %v2761
    %v2771 = vextract.low.u32 %v2770
    %v2772 = vextract.high.u32 %v2770
    %v2773 = vmul.u32 %v2766, %v2757
    %v2774 = vadd.s32 %v2769, %v2771
    %vm2775 = vc.u32 %v2769, %v2771
    %v2776 = vadd.s32 %v2772, 1
    %v2777 = vsel %vm2775, %v2776, %v2772
    %v2778 = vadd.s32 %v2773, %v2777
    %v2779 = vadd.s32 %v2778, 536870912
    %v2780 = vshrl.u32 %v2779, 30
    %v2781 = vshll.u32 %v2780, 30
    %v2782 = vsub.s32 %v2778, %v2781
    %vm2783 = vcmp.lt.s32.totalorder %v2782, 0
    %v2784 = vsub.s32 0, %v2782
    %v2785 = vsel %vm2783, %v2784, %v2782
    %v2786 = vclz %v2785
    %v2787 = vsub.s32 %v2786, 2
    %vm2788 = vcmp.gt.s32.totalorder 0, %v2787
    %v2789 = vsel %vm2788, 0, %v2787
    %v2790 = vsub.s32 32, %v2789
    %v2791 = vshll.u32 %v2782, %v2789
    %v2792 = vshrl.u32 %v2774, %v2790
    %v2793 = vor.u32 %v2791, %v2792
    %v2794 = vsub.s32 4294967266, %v2789
    %v2795 = vadd.s32 %v2794, 127
    %v2796 = vshll.u32 %v2795, 23
    %v2797 = vor.u32 4788187, %v2796
    %v2798 = vand.u32 2147483647, %v2797
    %v2800 = vcvt.s32.f32 %v2793
    %v2801 = vmul.f32 %v2800, %v2798
    %v2802 = vxor.u32 %v2801, 2147483648
    %v2803 = vsel %vm2720, %v2802, %v2801
    %v2804 = vsub.s32 4, %v2780
    %v2805 = vsel %vm2720, %v2804, %v2780
    %v2806 = vsel %vm2719, %v2498, %v2803
    %v2807 = vsel %vm2719, 0, %v2805
    %v2808 = vcosq.f32.pop %v2806
    %v2809 = vsinq.f32.pop %v2806
    %vm2810 = vweird.f32 %v2498
    %v2811 = vadd.s32 %v2807, 3
    %v2812 = vand.u32 %v2811, 3
    %vm2813 = vcmp.lt.s32.totalorder %v2812, 2
    %vm2814 = vcmp.eq.s32.totalorder %v2812, 0
    %v2815 = vxor.u32 %v2809, 2147483648
    %v2816 = vsel %vm2814, %v2808, %v2815
    %vm2817 = vcmp.eq.s32.totalorder %v2812, 2
    %v2818 = vxor.u32 %v2808, 2147483648
    %v2819 = vsel %vm2817, %v2818, %v2809
    %v2820 = vsel %vm2813, %v2816, %v2819
    %v2821 = vsel %vm2810, nan, %v2820
    %v2822 = vand.u32 2147483647, %v2499
    %vm2823 = vcmp.le.f32.partialorder %v2822, 0.7853982
    %vm2824 = vcmp.lt.s32.totalorder %v2499, 0
    %v2825 = vand.u32 %v2499, 2139095040
    %v2826 = vshrl.u32 %v2825, 23
    %v2827 = vsub.s32 %v2826, 127
    %v2828 = vand.u32 2147483647, %v2499
    %v2829 = vand.u32 %v2828, 8388607
    %v2830 = vor.u32 %v2829, 8388608
    %v2831 = vsub.s32 0, %v2830
    %v2832 = vadd.s32 %v2827, 1
    %vm2833 = vcmp.gt.s32.totalorder %v2832, 0
    %v2834 = vsel %vm2833, %v2832, 0
    %v2835 = vshrl.u32 %v2834, 5
    %v2836 = vand.u32 %v2834, 31
    %v2837 = vsub.s32 32, %v2836
    %v2838 = vshrl.u32 683565275, %v2837
    %v2839 = vshll.u32 683565275, %v2836
    %v2840 = vshrl.u32 2475754826, %v2837
    %v2841 = vor.u32 %v2839, %v2840
    %v2842 = vshll.u32 2475754826, %v2836
    %v2843 = vshrl.u32 2131351028, %v2837
    %v2844 = vor.u32 %v2842, %v2843
    %v2845 = vshll.u32 2131351028, %v2836
    %v2846 = vshrl.u32 2102212464, %v2837
    %v2847 = vor.u32 %v2845, %v2846
    %v2848 = vshll.u32 2102212464, %v2836
    %v2849 = vshrl.u32 920167782, %v2837
    %v2850 = vor.u32 %v2848, %v2849
    %v2851 = vshll.u32 920167782, %v2836
    %v2852 = vshrl.u32 1326507024, %v2837
    %v2853 = vor.u32 %v2851, %v2852
    %vm2854 = vcmp.lt.s32.totalorder %v2835, 1
    %vm2855 = vcmp.lt.s32.totalorder %v2835, 2
    %vm2856 = vcmp.lt.s32.totalorder %v2835, 3
    %vm2857 = vcmp.lt.s32.totalorder %v2835, 4
    %v2858 = vsel %vm2854, %v2838, %v2841
    %v2859 = vsel %vm2857, %v2847, 2102212464
    %v2860 = vsel %vm2856, %v2844, %v2859
    %v2861 = vsel %vm2855, %v2858, %v2860
    %v2862 = vsel %vm2854, %v2841, %v2844
    %v2863 = vsel %vm2857, %v2850, 920167782
    %v2864 = vsel %vm2856, %v2847, %v2863
    %v2865 = vsel %vm2855, %v2862, %v2864
    %v2866 = vsel %vm2854, %v2844, %v2847
    %v2867 = vsel %vm2857, %v2853, 1326507024
    %v2868 = vsel %vm2856, %v2850, %v2867
    %v2869 = vsel %vm2855, %v2866, %v2868
    %v2870 = vshll.u32 %v2830, 8
    %v2871 = vmul.u32.u64.compose %v2870, %v2869
    %v2872 = vextract.low.u32 %v2871
    %v2873 = vextract.high.u32 %v2871
    %v2874 = vmul.u32.u64.compose %v2870, %v2865
    %v2875 = vextract.low.u32 %v2874
    %v2876 = vextract.high.u32 %v2874
    %v2877 = vmul.u32 %v2870, %v2861
    %v2878 = vadd.s32 %v2873, %v2875
    %vm2879 = vc.u32 %v2873, %v2875
    %v2880 = vadd.s32 %v2876, 1
    %v2881 = vsel %vm2879, %v2880, %v2876
    %v2882 = vadd.s32 %v2877, %v2881
    %v2883 = vadd.s32 %v2882, 536870912
    %v2884 = vshrl.u32 %v2883, 30
    %v2885 = vshll.u32 %v2884, 30
    %v2886 = vsub.s32 %v2882, %v2885
    %vm2887 = vcmp.lt.s32.totalorder %v2886, 0
    %v2888 = vsub.s32 0, %v2886
    %v2889 = vsel %vm2887, %v2888, %v2886
    %v2890 = vclz %v2889
    %v2891 = vsub.s32 %v2890, 2
    %vm2892 = vcmp.gt.s32.totalorder 0, %v2891
    %v2893 = vsel %vm2892, 0, %v2891
    %v2894 = vsub.s32 32, %v2893
    %v2895 = vshll.u32 %v2886, %v2893
    %v2896 = vshrl.u32 %v2878, %v2894
    %v2897 = vor.u32 %v2895, %v2896
    %v2898 = vsub.s32 4294967266, %v2893
    %v2899 = vadd.s32 %v2898, 127
    %v2900 = vshll.u32 %v2899, 23
    %v2901 = vor.u32 4788187, %v2900
    %v2902 = vand.u32 2147483647, %v2901
    %v2904 = vcvt.s32.f32 %v2897
    %v2905 = vmul.f32 %v2904, %v2902
    %v2906 = vxor.u32 %v2905, 2147483648
    %v2907 = vsel %vm2824, %v2906, %v2905
    %v2908 = vsub.s32 4, %v2884
    %v2909 = vsel %vm2824, %v2908, %v2884
    %v2910 = vsel %vm2823, %v2499, %v2907
    %v2911 = vsel %vm2823, 0, %v2909
    %v2912 = vcosq.f32.pop %v2910
    %v2913 = vsinq.f32.pop %v2910
    %vm2914 = vweird.f32 %v2499
    %v2915 = vadd.s32 %v2911, 3
    %v2916 = vand.u32 %v2915, 3
    %vm2917 = vcmp.lt.s32.totalorder %v2916, 2
    %vm2918 = vcmp.eq.s32.totalorder %v2916, 0
    %v2919 = vxor.u32 %v2913, 2147483648
    %v2920 = vsel %vm2918, %v2912, %v2919
    %vm2921 = vcmp.eq.s32.totalorder %v2916, 2
    %v2922 = vxor.u32 %v2912, 2147483648
    %v2923 = vsel %vm2921, %v2922, %v2913
    %v2924 = vsel %vm2917, %v2920, %v2923
    %v2925 = vsel %vm2914, nan, %v2924
    %v2926 = vmul.f32 %v2503, %v2614
    %v2927 = vmul.f32 %v2505, %v2717
    %v2928 = vmul.f32 %v2503, %v2821
    %v2929 = vmul.f32 %v2505, %v2925
    %v2930 = vsub.f32 0.0, %v2928
    %v2931 = vsub.f32 0.0, %v2929
    %v2932 = vmul.f32 %v2509, %v2614
    %v2933 = vmul.f32 %v2511, %v2717
    %v2934 = vmul.f32 %v2509, %v2821
    %v2935 = vmul.f32 %v2511, %v2925
    %v2936 = vmul.f32 %v2448, %v2396
    %v2937 = vmul.f32 %v2452, %v2397
    %v2938 = vmul.f32 %v2461, %v2402
    %v2939 = vmul.f32 %v2465, %v2403
    %v2940 = vsub.f32 %v2936, %v2938
    %v2941 = vsub.f32 %v2937, %v2939
    %v2942 = vmul.f32 %v2448, %v2402
    %v2943 = vmul.f32 %v2452, %v2403
    %v2944 = vmul.f32 %v2461, %v2396
    %v2945 = vmul.f32 %v2465, %v2397
    %v2946 = vadd.f32 %v2942, %v2944
    %v2947 = vadd.f32 %v2943, %v2945
    %v2948 = vmul.f32 %v2474, %v2408
    %v2949 = vmul.f32 %v2478, %v2409
    %v2950 = vmul.f32 %v2487, %v2414
    %v2951 = vmul.f32 %v2491, %v2415
    %v2952 = vsub.f32 %v2948, %v2950
    %v2953 = vsub.f32 %v2949, %v2951
    %v2954 = vmul.f32 %v2474, %v2414
    %v2955 = vmul.f32 %v2478, %v2415
    %v2956 = vmul.f32 %v2487, %v2408
    %v2957 = vmul.f32 %v2491, %v2409
    %v2958 = vadd.f32 %v2954, %v2956
    %v2959 = vadd.f32 %v2955, %v2957
    %v2960 = vadd.f32 %v2940, %v2952
    %v2961 = vadd.f32 %v2941, %v2953
    %v2962 = vadd.f32 %v2946, %v2958
    %v2963 = vadd.f32 %v2947, %v2959
    %v2964 = vmul.f32 %v2474, %v2396
    %v2965 = vmul.f32 %v2478, %v2397
    %v2966 = vmul.f32 %v2487, %v2402
    %v2967 = vmul.f32 %v2491, %v2403
    %v2968 = vsub.f32 %v2964, %v2966
    %v2969 = vsub.f32 %v2965, %v2967
    %v2970 = vmul.f32 %v2474, %v2402
    %v2971 = vmul.f32 %v2478, %v2403
    %v2972 = vmul.f32 %v2487, %v2396
    %v2973 = vmul.f32 %v2491, %v2397
    %v2974 = vadd.f32 %v2970, %v2972
    %v2975 = vadd.f32 %v2971, %v2973
    %v2976 = vmul.f32 %v2448, %v2408
    %v2977 = vmul.f32 %v2452, %v2409
    %v2978 = vmul.f32 %v2461, %v2414
    %v2979 = vmul.f32 %v2465, %v2415
    %v2980 = vsub.f32 %v2976, %v2978
    %v2981 = vsub.f32 %v2977, %v2979
    %v2982 = vmul.f32 %v2448, %v2414
    %v2983 = vmul.f32 %v2452, %v2415
    %v2984 = vmul.f32 %v2461, %v2408
    %v2985 = vmul.f32 %v2465, %v2409
    %v2986 = vadd.f32 %v2982, %v2984
    %v2987 = vadd.f32 %v2983, %v2985
    %v2988 = vadd.f32 %v2968, %v2980
    %v2989 = vadd.f32 %v2969, %v2981
    %v2990 = vadd.f32 %v2974, %v2986
    %v2991 = vadd.f32 %v2975, %v2987
    %v2992 = vmul.f32 %v2926, %v2960
    %v2993 = vmul.f32 %v2927, %v2961
    %v2994 = vmul.f32 %v2930, %v2962
    %v2995 = vmul.f32 %v2931, %v2963
    %v2996 = vsub.f32 %v2992, %v2994
    %v2997 = vsub.f32 %v2993, %v2995
    %v2998 = vmul.f32 %v2926, %v2962
    %v2999 = vmul.f32 %v2927, %v2963
    %v3000 = vmul.f32 %v2930, %v2960
    %v3001 = vmul.f32 %v2931, %v2961
    %v3002 = vadd.f32 %v2998, %v3000
    %v3003 = vadd.f32 %v2999, %v3001
    %v3004 = vmul.f32 %v2932, %v2988
    %v3005 = vmul.f32 %v2933, %v2989
    %v3006 = vmul.f32 %v2934, %v2990
    %v3007 = vmul.f32 %v2935, %v2991
    %v3008 = vsub.f32 %v3004, %v3006
    %v3009 = vsub.f32 %v3005, %v3007
    %v3010 = vmul.f32 %v2932, %v2990
    %v3011 = vmul.f32 %v2933, %v2991
    %v3012 = vmul.f32 %v2934, %v2988
    %v3013 = vmul.f32 %v2935, %v2989
    %v3014 = vadd.f32 %v3010, %v3012
    %v3015 = vadd.f32 %v3011, %v3013
    %v3016 = vld [vmem:[#allocation5] ss:$8 sm:$0x3]
    %v3018 = vlaneseq
    %v3019 = vshrl.u32 %v3018, 7
    %v3020 = vsub.s32 0, %v3019
    %v3021 = vrot.slane %v3016, %v3020
    %v3022 = vlaneseq
    %v3023 = vshrl.u32 %v3022, 7
    %v3024 = vsub.s32 1, %v3023
    %v3025 = vrot.slane %v3016, %v3024
    %s3028 = scalar_lea.vmem [#allocation5], 1
    %v3029 = vld [vmem:[%s3028] ss:$8 sm:$0x3]
    %v3031 = vlaneseq
    %v3032 = vshrl.u32 %v3031, 7
    %v3033 = vsub.s32 0, %v3032
    %v3034 = vrot.slane %v3029, %v3033
    %v3035 = vlaneseq
    %v3036 = vshrl.u32 %v3035, 7
    %v3037 = vsub.s32 1, %v3036
    %v3038 = vrot.slane %v3029, %v3037
    %s3041 = scalar_lea.vmem [#allocation5], 2
    %v3042 = vld [vmem:[%s3041] ss:$8 sm:$0x3]
    %v3044 = vlaneseq
    %v3045 = vshrl.u32 %v3044, 7
    %v3046 = vsub.s32 0, %v3045
    %v3047 = vrot.slane %v3042, %v3046
    %v3048 = vlaneseq
    %v3049 = vshrl.u32 %v3048, 7
    %v3050 = vsub.s32 1, %v3049
    %v3051 = vrot.slane %v3042, %v3050
    %s3054 = scalar_lea.vmem [#allocation5], 3
    %v3055 = vld [vmem:[%s3054] ss:$8 sm:$0x3]
    %v3057 = vlaneseq
    %v3058 = vshrl.u32 %v3057, 7
    %v3059 = vsub.s32 0, %v3058
    %v3060 = vrot.slane %v3055, %v3059
    %v3061 = vlaneseq
    %v3062 = vshrl.u32 %v3061, 7
    %v3063 = vsub.s32 1, %v3062
    %v3064 = vrot.slane %v3055, %v3063
    %s3067 = scalar_lea.vmem [#allocation5], 4
    %v3068 = vld [vmem:[%s3067] ss:$8 sm:$0x3]
    %v3070 = vlaneseq
    %v3071 = vshrl.u32 %v3070, 7
    %v3072 = vsub.s32 0, %v3071
    %v3073 = vrot.slane %v3068, %v3072
    %v3074 = vlaneseq
    %v3075 = vshrl.u32 %v3074, 7
    %v3076 = vsub.s32 1, %v3075
    %v3077 = vrot.slane %v3068, %v3076
    %s3080 = scalar_lea.vmem [#allocation5], 5
    %v3081 = vld [vmem:[%s3080] ss:$8 sm:$0x3]
    %v3083 = vlaneseq
    %v3084 = vshrl.u32 %v3083, 7
    %v3085 = vsub.s32 0, %v3084
    %v3086 = vrot.slane %v3081, %v3085
    %v3087 = vlaneseq
    %v3088 = vshrl.u32 %v3087, 7
    %v3089 = vsub.s32 1, %v3088
    %v3090 = vrot.slane %v3081, %v3089
    %3093 = vset.pattern.permute.xlu0 0
    %3094 = vperm.xlu0 %3093, %v116
    %v3095 = vpop.permute.xlu0 %3094
    %v3097 = vmul.f32 %v3095, %v3021
    %v3098 = vmul.f32 %v3095, %v3025
    %v3099 = vmul.f32 %v3095, %v3034
    %v3100 = vmul.f32 %v3095, %v3038
    %v3101 = vmul.f32 %v3099, 1.442695
    %v3102 = vpow.pop %v3101
    %v3103 = vmul.f32 %v3100, 1.442695
    %v3104 = vpow.pop %v3103
    %v3105 = vsub.f32 0.0, %v3099
    %v3106 = vsub.f32 0.0, %v3100
    %v3107 = vmul.f32 %v3105, 1.442695
    %v3108 = vpow.pop %v3107
    %v3109 = vmul.f32 %v3106, 1.442695
    %v3110 = vpow.pop %v3109
    %v3111 = vand.u32 2147483647, %v3097
    %vm3112 = vcmp.le.f32.partialorder %v3111, 0.7853982
    %vm3113 = vcmp.lt.s32.totalorder %v3097, 0
    %v3114 = vand.u32 %v3097, 2139095040
    %v3115 = vshrl.u32 %v3114, 23
    %v3116 = vsub.s32 %v3115, 127
    %v3117 = vand.u32 2147483647, %v3097
    %v3118 = vand.u32 %v3117, 8388607
    %v3119 = vor.u32 %v3118, 8388608
    %v3120 = vsub.s32 0, %v3119
    %v3121 = vadd.s32 %v3116, 1
    %vm3122 = vcmp.gt.s32.totalorder %v3121, 0
    %v3123 = vsel %vm3122, %v3121, 0
    %v3124 = vshrl.u32 %v3123, 5
    %v3125 = vand.u32 %v3123, 31
    %v3126 = vsub.s32 32, %v3125
    %v3127 = vshrl.u32 683565275, %v3126
    %v3128 = vshll.u32 683565275, %v3125
    %v3129 = vshrl.u32 2475754826, %v3126
    %v3130 = vor.u32 %v3128, %v3129
    %v3131 = vshll.u32 2475754826, %v3125
    %v3132 = vshrl.u32 2131351028, %v3126
    %v3133 = vor.u32 %v3131, %v3132
    %v3134 = vshll.u32 2131351028, %v3125
    %v3135 = vshrl.u32 2102212464, %v3126
    %v3136 = vor.u32 %v3134, %v3135
    %v3137 = vshll.u32 2102212464, %v3125
    %v3138 = vshrl.u32 920167782, %v3126
    %v3139 = vor.u32 %v3137, %v3138
    %v3140 = vshll.u32 920167782, %v3125
    %v3141 = vshrl.u32 1326507024, %v3126
    %v3142 = vor.u32 %v3140, %v3141
    %vm3143 = vcmp.lt.s32.totalorder %v3124, 1
    %vm3144 = vcmp.lt.s32.totalorder %v3124, 2
    %vm3145 = vcmp.lt.s32.totalorder %v3124, 3
    %vm3146 = vcmp.lt.s32.totalorder %v3124, 4
    %v3147 = vsel %vm3143, %v3127, %v3130
    %v3148 = vsel %vm3146, %v3136, 2102212464
    %v3149 = vsel %vm3145, %v3133, %v3148
    %v3150 = vsel %vm3144, %v3147, %v3149
    %v3151 = vsel %vm3143, %v3130, %v3133
    %v3152 = vsel %vm3146, %v3139, 920167782
    %v3153 = vsel %vm3145, %v3136, %v3152
    %v3154 = vsel %vm3144, %v3151, %v3153
    %v3155 = vsel %vm3143, %v3133, %v3136
    %v3156 = vsel %vm3146, %v3142, 1326507024
    %v3157 = vsel %vm3145, %v3139, %v3156
    %v3158 = vsel %vm3144, %v3155, %v3157
    %v3159 = vshll.u32 %v3119, 8
    %v3160 = vmul.u32.u64.compose %v3159, %v3158
    %v3161 = vextract.low.u32 %v3160
    %v3162 = vextract.high.u32 %v3160
    %v3163 = vmul.u32.u64.compose %v3159, %v3154
    %v3164 = vextract.low.u32 %v3163
    %v3165 = vextract.high.u32 %v3163
    %v3166 = vmul.u32 %v3159, %v3150
    %v3167 = vadd.s32 %v3162, %v3164
    %vm3168 = vc.u32 %v3162, %v3164
    %v3169 = vadd.s32 %v3165, 1
    %v3170 = vsel %vm3168, %v3169, %v3165
    %v3171 = vadd.s32 %v3166, %v3170
    %v3172 = vadd.s32 %v3171, 536870912
    %v3173 = vshrl.u32 %v3172, 30
    %v3174 = vshll.u32 %v3173, 30
    %v3175 = vsub.s32 %v3171, %v3174
    %vm3176 = vcmp.lt.s32.totalorder %v3175, 0
    %v3177 = vsub.s32 0, %v3175
    %v3178 = vsel %vm3176, %v3177, %v3175
    %v3179 = vclz %v3178
    %v3180 = vsub.s32 %v3179, 2
    %vm3181 = vcmp.gt.s32.totalorder 0, %v3180
    %v3182 = vsel %vm3181, 0, %v3180
    %v3183 = vsub.s32 32, %v3182
    %v3184 = vshll.u32 %v3175, %v3182
    %v3185 = vshrl.u32 %v3167, %v3183
    %v3186 = vor.u32 %v3184, %v3185
    %v3187 = vsub.s32 4294967266, %v3182
    %v3188 = vadd.s32 %v3187, 127
    %v3189 = vshll.u32 %v3188, 23
    %v3190 = vor.u32 4788187, %v3189
    %v3191 = vand.u32 2147483647, %v3190
    %v3193 = vcvt.s32.f32 %v3186
    %v3194 = vmul.f32 %v3193, %v3191
    %v3195 = vxor.u32 %v3194, 2147483648
    %v3196 = vsel %vm3113, %v3195, %v3194
    %v3197 = vsub.s32 4, %v3173
    %v3198 = vsel %vm3113, %v3197, %v3173
    %v3199 = vsel %vm3112, %v3097, %v3196
    %v3200 = vsel %vm3112, 0, %v3198
    %v3201 = vcosq.f32.pop %v3199
    %v3202 = vsinq.f32.pop %v3199
    %vm3203 = vweird.f32 %v3097
    %v3204 = vand.u32 %v3200, 3
    %vm3205 = vcmp.lt.s32.totalorder %v3204, 2
    %vm3206 = vcmp.eq.s32.totalorder %v3204, 0
    %v3207 = vxor.u32 %v3202, 2147483648
    %v3208 = vsel %vm3206, %v3201, %v3207
    %vm3209 = vcmp.eq.s32.totalorder %v3204, 2
    %v3210 = vxor.u32 %v3201, 2147483648
    %v3211 = vsel %vm3209, %v3210, %v3202
    %v3212 = vsel %vm3205, %v3208, %v3211
    %v3213 = vsel %vm3203, nan, %v3212
    %v3214 = vand.u32 2147483647, %v3098
    %vm3215 = vcmp.le.f32.partialorder %v3214, 0.7853982
    %vm3216 = vcmp.lt.s32.totalorder %v3098, 0
    %v3217 = vand.u32 %v3098, 2139095040
    %v3218 = vshrl.u32 %v3217, 23
    %v3219 = vsub.s32 %v3218, 127
    %v3220 = vand.u32 2147483647, %v3098
    %v3221 = vand.u32 %v3220, 8388607
    %v3222 = vor.u32 %v3221, 8388608
    %v3223 = vsub.s32 0, %v3222
    %v3224 = vadd.s32 %v3219, 1
    %vm3225 = vcmp.gt.s32.totalorder %v3224, 0
    %v3226 = vsel %vm3225, %v3224, 0
    %v3227 = vshrl.u32 %v3226, 5
    %v3228 = vand.u32 %v3226, 31
    %v3229 = vsub.s32 32, %v3228
    %v3230 = vshrl.u32 683565275, %v3229
    %v3231 = vshll.u32 683565275, %v3228
    %v3232 = vshrl.u32 2475754826, %v3229
    %v3233 = vor.u32 %v3231, %v3232
    %v3234 = vshll.u32 2475754826, %v3228
    %v3235 = vshrl.u32 2131351028, %v3229
    %v3236 = vor.u32 %v3234, %v3235
    %v3237 = vshll.u32 2131351028, %v3228
    %v3238 = vshrl.u32 2102212464, %v3229
    %v3239 = vor.u32 %v3237, %v3238
    %v3240 = vshll.u32 2102212464, %v3228
    %v3241 = vshrl.u32 920167782, %v3229
    %v3242 = vor.u32 %v3240, %v3241
    %v3243 = vshll.u32 920167782, %v3228
    %v3244 = vshrl.u32 1326507024, %v3229
    %v3245 = vor.u32 %v3243, %v3244
    %vm3246 = vcmp.lt.s32.totalorder %v3227, 1
    %vm3247 = vcmp.lt.s32.totalorder %v3227, 2
    %vm3248 = vcmp.lt.s32.totalorder %v3227, 3
    %vm3249 = vcmp.lt.s32.totalorder %v3227, 4
    %v3250 = vsel %vm3246, %v3230, %v3233
    %v3251 = vsel %vm3249, %v3239, 2102212464
    %v3252 = vsel %vm3248, %v3236, %v3251
    %v3253 = vsel %vm3247, %v3250, %v3252
    %v3254 = vsel %vm3246, %v3233, %v3236
    %v3255 = vsel %vm3249, %v3242, 920167782
    %v3256 = vsel %vm3248, %v3239, %v3255
    %v3257 = vsel %vm3247, %v3254, %v3256
    %v3258 = vsel %vm3246, %v3236, %v3239
    %v3259 = vsel %vm3249, %v3245, 1326507024
    %v3260 = vsel %vm3248, %v3242, %v3259
    %v3261 = vsel %vm3247, %v3258, %v3260
    %v3262 = vshll.u32 %v3222, 8
    %v3263 = vmul.u32.u64.compose %v3262, %v3261
    %v3264 = vextract.low.u32 %v3263
    %v3265 = vextract.high.u32 %v3263
    %v3266 = vmul.u32.u64.compose %v3262, %v3257
    %v3267 = vextract.low.u32 %v3266
    %v3268 = vextract.high.u32 %v3266
    %v3269 = vmul.u32 %v3262, %v3253
    %v3270 = vadd.s32 %v3265, %v3267
    %vm3271 = vc.u32 %v3265, %v3267
    %v3272 = vadd.s32 %v3268, 1
    %v3273 = vsel %vm3271, %v3272, %v3268
    %v3274 = vadd.s32 %v3269, %v3273
    %v3275 = vadd.s32 %v3274, 536870912
    %v3276 = vshrl.u32 %v3275, 30
    %v3277 = vshll.u32 %v3276, 30
    %v3278 = vsub.s32 %v3274, %v3277
    %vm3279 = vcmp.lt.s32.totalorder %v3278, 0
    %v3280 = vsub.s32 0, %v3278
    %v3281 = vsel %vm3279, %v3280, %v3278
    %v3282 = vclz %v3281
    %v3283 = vsub.s32 %v3282, 2
    %vm3284 = vcmp.gt.s32.totalorder 0, %v3283
    %v3285 = vsel %vm3284, 0, %v3283
    %v3286 = vsub.s32 32, %v3285
    %v3287 = vshll.u32 %v3278, %v3285
    %v3288 = vshrl.u32 %v3270, %v3286
    %v3289 = vor.u32 %v3287, %v3288
    %v3290 = vsub.s32 4294967266, %v3285
    %v3291 = vadd.s32 %v3290, 127
    %v3292 = vshll.u32 %v3291, 23
    %v3293 = vor.u32 4788187, %v3292
    %v3294 = vand.u32 2147483647, %v3293
    %v3296 = vcvt.s32.f32 %v3289
    %v3297 = vmul.f32 %v3296, %v3294
    %v3298 = vxor.u32 %v3297, 2147483648
    %v3299 = vsel %vm3216, %v3298, %v3297
    %v3300 = vsub.s32 4, %v3276
    %v3301 = vsel %vm3216, %v3300, %v3276
    %v3302 = vsel %vm3215, %v3098, %v3299
    %v3303 = vsel %vm3215, 0, %v3301
    %v3304 = vcosq.f32.pop %v3302
    %v3305 = vsinq.f32.pop %v3302
    %vm3306 = vweird.f32 %v3098
    %v3307 = vand.u32 %v3303, 3
    %vm3308 = vcmp.lt.s32.totalorder %v3307, 2
    %vm3309 = vcmp.eq.s32.totalorder %v3307, 0
    %v3310 = vxor.u32 %v3305, 2147483648
    %v3311 = vsel %vm3309, %v3304, %v3310
    %vm3312 = vcmp.eq.s32.totalorder %v3307, 2
    %v3313 = vxor.u32 %v3304, 2147483648
    %v3314 = vsel %vm3312, %v3313, %v3305
    %v3315 = vsel %vm3308, %v3311, %v3314
    %v3316 = vsel %vm3306, nan, %v3315
    %v3317 = vand.u32 2147483647, %v3097
    %vm3318 = vcmp.le.f32.partialorder %v3317, 0.7853982
    %vm3319 = vcmp.lt.s32.totalorder %v3097, 0
    %v3320 = vand.u32 %v3097, 2139095040
    %v3321 = vshrl.u32 %v3320, 23
    %v3322 = vsub.s32 %v3321, 127
    %v3323 = vand.u32 2147483647, %v3097
    %v3324 = vand.u32 %v3323, 8388607
    %v3325 = vor.u32 %v3324, 8388608
    %v3326 = vsub.s32 0, %v3325
    %v3327 = vadd.s32 %v3322, 1
    %vm3328 = vcmp.gt.s32.totalorder %v3327, 0
    %v3329 = vsel %vm3328, %v3327, 0
    %v3330 = vshrl.u32 %v3329, 5
    %v3331 = vand.u32 %v3329, 31
    %v3332 = vsub.s32 32, %v3331
    %v3333 = vshrl.u32 683565275, %v3332
    %v3334 = vshll.u32 683565275, %v3331
    %v3335 = vshrl.u32 2475754826, %v3332
    %v3336 = vor.u32 %v3334, %v3335
    %v3337 = vshll.u32 2475754826, %v3331
    %v3338 = vshrl.u32 2131351028, %v3332
    %v3339 = vor.u32 %v3337, %v3338
    %v3340 = vshll.u32 2131351028, %v3331
    %v3341 = vshrl.u32 2102212464, %v3332
    %v3342 = vor.u32 %v3340, %v3341
    %v3343 = vshll.u32 2102212464, %v3331
    %v3344 = vshrl.u32 920167782, %v3332
    %v3345 = vor.u32 %v3343, %v3344
    %v3346 = vshll.u32 920167782, %v3331
    %v3347 = vshrl.u32 1326507024, %v3332
    %v3348 = vor.u32 %v3346, %v3347
    %vm3349 = vcmp.lt.s32.totalorder %v3330, 1
    %vm3350 = vcmp.lt.s32.totalorder %v3330, 2
    %vm3351 = vcmp.lt.s32.totalorder %v3330, 3
    %vm3352 = vcmp.lt.s32.totalorder %v3330, 4
    %v3353 = vsel %vm3349, %v3333, %v3336
    %v3354 = vsel %vm3352, %v3342, 2102212464
    %v3355 = vsel %vm3351, %v3339, %v3354
    %v3356 = vsel %vm3350, %v3353, %v3355
    %v3357 = vsel %vm3349, %v3336, %v3339
    %v3358 = vsel %vm3352, %v3345, 920167782
    %v3359 = vsel %vm3351, %v3342, %v3358
    %v3360 = vsel %vm3350, %v3357, %v3359
    %v3361 = vsel %vm3349, %v3339, %v3342
    %v3362 = vsel %vm3352, %v3348, 1326507024
    %v3363 = vsel %vm3351, %v3345, %v3362
    %v3364 = vsel %vm3350, %v3361, %v3363
    %v3365 = vshll.u32 %v3325, 8
    %v3366 = vmul.u32.u64.compose %v3365, %v3364
    %v3367 = vextract.low.u32 %v3366
    %v3368 = vextract.high.u32 %v3366
    %v3369 = vmul.u32.u64.compose %v3365, %v3360
    %v3370 = vextract.low.u32 %v3369
    %v3371 = vextract.high.u32 %v3369
    %v3372 = vmul.u32 %v3365, %v3356
    %v3373 = vadd.s32 %v3368, %v3370
    %vm3374 = vc.u32 %v3368, %v3370
    %v3375 = vadd.s32 %v3371, 1
    %v3376 = vsel %vm3374, %v3375, %v3371
    %v3377 = vadd.s32 %v3372, %v3376
    %v3378 = vadd.s32 %v3377, 536870912
    %v3379 = vshrl.u32 %v3378, 30
    %v3380 = vshll.u32 %v3379, 30
    %v3381 = vsub.s32 %v3377, %v3380
    %vm3382 = vcmp.lt.s32.totalorder %v3381, 0
    %v3383 = vsub.s32 0, %v3381
    %v3384 = vsel %vm3382, %v3383, %v3381
    %v3385 = vclz %v3384
    %v3386 = vsub.s32 %v3385, 2
    %vm3387 = vcmp.gt.s32.totalorder 0, %v3386
    %v3388 = vsel %vm3387, 0, %v3386
    %v3389 = vsub.s32 32, %v3388
    %v3390 = vshll.u32 %v3381, %v3388
    %v3391 = vshrl.u32 %v3373, %v3389
    %v3392 = vor.u32 %v3390, %v3391
    %v3393 = vsub.s32 4294967266, %v3388
    %v3394 = vadd.s32 %v3393, 127
    %v3395 = vshll.u32 %v3394, 23
    %v3396 = vor.u32 4788187, %v3395
    %v3397 = vand.u32 2147483647, %v3396
    %v3399 = vcvt.s32.f32 %v3392
    %v3400 = vmul.f32 %v3399, %v3397
    %v3401 = vxor.u32 %v3400, 2147483648
    %v3402 = vsel %vm3319, %v3401, %v3400
    %v3403 = vsub.s32 4, %v3379
    %v3404 = vsel %vm3319, %v3403, %v3379
    %v3405 = vsel %vm3318, %v3097, %v3402
    %v3406 = vsel %vm3318, 0, %v3404
    %v3407 = vcosq.f32.pop %v3405
    %v3408 = vsinq.f32.pop %v3405
    %vm3409 = vweird.f32 %v3097
    %v3410 = vadd.s32 %v3406, 3
    %v3411 = vand.u32 %v3410, 3
    %vm3412 = vcmp.lt.s32.totalorder %v3411, 2
    %vm3413 = vcmp.eq.s32.totalorder %v3411, 0
    %v3414 = vxor.u32 %v3408, 2147483648
    %v3415 = vsel %vm3413, %v3407, %v3414
    %vm3416 = vcmp.eq.s32.totalorder %v3411, 2
    %v3417 = vxor.u32 %v3407, 2147483648
    %v3418 = vsel %vm3416, %v3417, %v3408
    %v3419 = vsel %vm3412, %v3415, %v3418
    %v3420 = vsel %vm3409, nan, %v3419
    %v3421 = vand.u32 2147483647, %v3098
    %vm3422 = vcmp.le.f32.partialorder %v3421, 0.7853982
    %vm3423 = vcmp.lt.s32.totalorder %v3098, 0
    %v3424 = vand.u32 %v3098, 2139095040
    %v3425 = vshrl.u32 %v3424, 23
    %v3426 = vsub.s32 %v3425, 127
    %v3427 = vand.u32 2147483647, %v3098
    %v3428 = vand.u32 %v3427, 8388607
    %v3429 = vor.u32 %v3428, 8388608
    %v3430 = vsub.s32 0, %v3429
    %v3431 = vadd.s32 %v3426, 1
    %vm3432 = vcmp.gt.s32.totalorder %v3431, 0
    %v3433 = vsel %vm3432, %v3431, 0
    %v3434 = vshrl.u32 %v3433, 5
    %v3435 = vand.u32 %v3433, 31
    %v3436 = vsub.s32 32, %v3435
    %v3437 = vshrl.u32 683565275, %v3436
    %v3438 = vshll.u32 683565275, %v3435
    %v3439 = vshrl.u32 2475754826, %v3436
    %v3440 = vor.u32 %v3438, %v3439
    %v3441 = vshll.u32 2475754826, %v3435
    %v3442 = vshrl.u32 2131351028, %v3436
    %v3443 = vor.u32 %v3441, %v3442
    %v3444 = vshll.u32 2131351028, %v3435
    %v3445 = vshrl.u32 2102212464, %v3436
    %v3446 = vor.u32 %v3444, %v3445
    %v3447 = vshll.u32 2102212464, %v3435
    %v3448 = vshrl.u32 920167782, %v3436
    %v3449 = vor.u32 %v3447, %v3448
    %v3450 = vshll.u32 920167782, %v3435
    %v3451 = vshrl.u32 1326507024, %v3436
    %v3452 = vor.u32 %v3450, %v3451
    %vm3453 = vcmp.lt.s32.totalorder %v3434, 1
    %vm3454 = vcmp.lt.s32.totalorder %v3434, 2
    %vm3455 = vcmp.lt.s32.totalorder %v3434, 3
    %vm3456 = vcmp.lt.s32.totalorder %v3434, 4
    %v3457 = vsel %vm3453, %v3437, %v3440
    %v3458 = vsel %vm3456, %v3446, 2102212464
    %v3459 = vsel %vm3455, %v3443, %v3458
    %v3460 = vsel %vm3454, %v3457, %v3459
    %v3461 = vsel %vm3453, %v3440, %v3443
    %v3462 = vsel %vm3456, %v3449, 920167782
    %v3463 = vsel %vm3455, %v3446, %v3462
    %v3464 = vsel %vm3454, %v3461, %v3463
    %v3465 = vsel %vm3453, %v3443, %v3446
    %v3466 = vsel %vm3456, %v3452, 1326507024
    %v3467 = vsel %vm3455, %v3449, %v3466
    %v3468 = vsel %vm3454, %v3465, %v3467
    %v3469 = vshll.u32 %v3429, 8
    %v3470 = vmul.u32.u64.compose %v3469, %v3468
    %v3471 = vextract.low.u32 %v3470
    %v3472 = vextract.high.u32 %v3470
    %v3473 = vmul.u32.u64.compose %v3469, %v3464
    %v3474 = vextract.low.u32 %v3473
    %v3475 = vextract.high.u32 %v3473
    %v3476 = vmul.u32 %v3469, %v3460
    %v3477 = vadd.s32 %v3472, %v3474
    %vm3478 = vc.u32 %v3472, %v3474
    %v3479 = vadd.s32 %v3475, 1
    %v3480 = vsel %vm3478, %v3479, %v3475
    %v3481 = vadd.s32 %v3476, %v3480
    %v3482 = vadd.s32 %v3481, 536870912
    %v3483 = vshrl.u32 %v3482, 30
    %v3484 = vshll.u32 %v3483, 30
    %v3485 = vsub.s32 %v3481, %v3484
    %vm3486 = vcmp.lt.s32.totalorder %v3485, 0
    %v3487 = vsub.s32 0, %v3485
    %v3488 = vsel %vm3486, %v3487, %v3485
    %v3489 = vclz %v3488
    %v3490 = vsub.s32 %v3489, 2
    %vm3491 = vcmp.gt.s32.totalorder 0, %v3490
    %v3492 = vsel %vm3491, 0, %v3490
    %v3493 = vsub.s32 32, %v3492
    %v3494 = vshll.u32 %v3485, %v3492
    %v3495 = vshrl.u32 %v3477, %v3493
    %v3496 = vor.u32 %v3494, %v3495
    %v3497 = vsub.s32 4294967266, %v3492
    %v3498 = vadd.s32 %v3497, 127
    %v3499 = vshll.u32 %v3498, 23
    %v3500 = vor.u32 4788187, %v3499
    %v3501 = vand.u32 2147483647, %v3500
    %v3503 = vcvt.s32.f32 %v3496
    %v3504 = vmul.f32 %v3503, %v3501
    %v3505 = vxor.u32 %v3504, 2147483648
    %v3506 = vsel %vm3423, %v3505, %v3504
    %v3507 = vsub.s32 4, %v3483
    %v3508 = vsel %vm3423, %v3507, %v3483
    %v3509 = vsel %vm3422, %v3098, %v3506
    %v3510 = vsel %vm3422, 0, %v3508
    %v3511 = vcosq.f32.pop %v3509
    %v3512 = vsinq.f32.pop %v3509
    %vm3513 = vweird.f32 %v3098
    %v3514 = vadd.s32 %v3510, 3
    %v3515 = vand.u32 %v3514, 3
    %vm3516 = vcmp.lt.s32.totalorder %v3515, 2
    %vm3517 = vcmp.eq.s32.totalorder %v3515, 0
    %v3518 = vxor.u32 %v3512, 2147483648
    %v3519 = vsel %vm3517, %v3511, %v3518
    %vm3520 = vcmp.eq.s32.totalorder %v3515, 2
    %v3521 = vxor.u32 %v3511, 2147483648
    %v3522 = vsel %vm3520, %v3521, %v3512
    %v3523 = vsel %vm3516, %v3519, %v3522
    %v3524 = vsel %vm3513, nan, %v3523
    %v3525 = vmul.f32 %v3102, %v3213
    %v3526 = vmul.f32 %v3104, %v3316
    %v3527 = vmul.f32 %v3102, %v3420
    %v3528 = vmul.f32 %v3104, %v3524
    %v3529 = vsub.f32 0.0, %v3527
    %v3530 = vsub.f32 0.0, %v3528
    %v3531 = vmul.f32 %v3108, %v3213
    %v3532 = vmul.f32 %v3110, %v3316
    %v3533 = vmul.f32 %v3108, %v3420
    %v3534 = vmul.f32 %v3110, %v3524
    %v3535 = vmul.f32 %v3047, %v2996
    %v3536 = vmul.f32 %v3051, %v2997
    %v3537 = vmul.f32 %v3060, %v3002
    %v3538 = vmul.f32 %v3064, %v3003
    %v3539 = vsub.f32 %v3535, %v3537
    %v3540 = vsub.f32 %v3536, %v3538
    %v3541 = vmul.f32 %v3047, %v3002
    %v3542 = vmul.f32 %v3051, %v3003
    %v3543 = vmul.f32 %v3060, %v2996
    %v3544 = vmul.f32 %v3064, %v2997
    %v3545 = vadd.f32 %v3541, %v3543
    %v3546 = vadd.f32 %v3542, %v3544
    %v3547 = vmul.f32 %v3073, %v3008
    %v3548 = vmul.f32 %v3077, %v3009
    %v3549 = vmul.f32 %v3086, %v3014
    %v3550 = vmul.f32 %v3090, %v3015
    %v3551 = vsub.f32 %v3547, %v3549
    %v3552 = vsub.f32 %v3548, %v3550
    %v3553 = vmul.f32 %v3073, %v3014
    %v3554 = vmul.f32 %v3077, %v3015
    %v3555 = vmul.f32 %v3086, %v3008
    %v3556 = vmul.f32 %v3090, %v3009
    %v3557 = vadd.f32 %v3553, %v3555
    %v3558 = vadd.f32 %v3554, %v3556
    %v3559 = vadd.f32 %v3539, %v3551
    %v3560 = vadd.f32 %v3540, %v3552
    %v3561 = vadd.f32 %v3545, %v3557
    %v3562 = vadd.f32 %v3546, %v3558
    %v3563 = vmul.f32 %v3073, %v2996
    %v3564 = vmul.f32 %v3077, %v2997
    %v3565 = vmul.f32 %v3086, %v3002
    %v3566 = vmul.f32 %v3090, %v3003
    %v3567 = vsub.f32 %v3563, %v3565
    %v3568 = vsub.f32 %v3564, %v3566
    %v3569 = vmul.f32 %v3073, %v3002
    %v3570 = vmul.f32 %v3077, %v3003
    %v3571 = vmul.f32 %v3086, %v2996
    %v3572 = vmul.f32 %v3090, %v2997
    %v3573 = vadd.f32 %v3569, %v3571
    %v3574 = vadd.f32 %v3570, %v3572
    %v3575 = vmul.f32 %v3047, %v3008
    %v3576 = vmul.f32 %v3051, %v3009
    %v3577 = vmul.f32 %v3060, %v3014
    %v3578 = vmul.f32 %v3064, %v3015
    %v3579 = vsub.f32 %v3575, %v3577
    %v3580 = vsub.f32 %v3576, %v3578
    %v3581 = vmul.f32 %v3047, %v3014
    %v3582 = vmul.f32 %v3051, %v3015
    %v3583 = vmul.f32 %v3060, %v3008
    %v3584 = vmul.f32 %v3064, %v3009
    %v3585 = vadd.f32 %v3581, %v3583
    %v3586 = vadd.f32 %v3582, %v3584
    %v3587 = vadd.f32 %v3567, %v3579
    %v3588 = vadd.f32 %v3568, %v3580
    %v3589 = vadd.f32 %v3573, %v3585
    %v3590 = vadd.f32 %v3574, %v3586
    %v3591 = vmul.f32 %v3525, %v3559
    %v3592 = vmul.f32 %v3526, %v3560
    %v3593 = vmul.f32 %v3529, %v3561
    %v3594 = vmul.f32 %v3530, %v3562
    %v3595 = vsub.f32 %v3591, %v3593
    %v3596 = vsub.f32 %v3592, %v3594
    %v3597 = vmul.f32 %v3525, %v3561
    %v3598 = vmul.f32 %v3526, %v3562
    %v3599 = vmul.f32 %v3529, %v3559
    %v3600 = vmul.f32 %v3530, %v3560
    %v3601 = vadd.f32 %v3597, %v3599
    %v3602 = vadd.f32 %v3598, %v3600
    %v3603 = vmul.f32 %v3531, %v3587
    %v3604 = vmul.f32 %v3532, %v3588
    %v3605 = vmul.f32 %v3533, %v3589
    %v3606 = vmul.f32 %v3534, %v3590
    %v3607 = vsub.f32 %v3603, %v3605
    %v3608 = vsub.f32 %v3604, %v3606
    %v3609 = vmul.f32 %v3531, %v3589
    %v3610 = vmul.f32 %v3532, %v3590
    %v3611 = vmul.f32 %v3533, %v3587
    %v3612 = vmul.f32 %v3534, %v3588
    %v3613 = vadd.f32 %v3609, %v3611
    %v3614 = vadd.f32 %v3610, %v3612
    %s3615 = scalar_lea.vmem [#allocation5], 96
    %v3616 = vld [vmem:[%s3615] ss:$8 sm:$0x3]
    %v3618 = vlaneseq
    %v3619 = vshrl.u32 %v3618, 7
    %v3620 = vsub.s32 0, %v3619
    %v3621 = vrot.slane %v3616, %v3620
    %v3622 = vlaneseq
    %v3623 = vshrl.u32 %v3622, 7
    %v3624 = vsub.s32 1, %v3623
    %v3625 = vrot.slane %v3616, %v3624
    %s3628 = scalar_lea.vmem [#allocation5], 97
    %v3629 = vld [vmem:[%s3628] ss:$8 sm:$0x3]
    %v3631 = vlaneseq
    %v3632 = vshrl.u32 %v3631, 7
    %v3633 = vsub.s32 0, %v3632
    %v3634 = vrot.slane %v3629, %v3633
    %v3635 = vlaneseq
    %v3636 = vshrl.u32 %v3635, 7
    %v3637 = vsub.s32 1, %v3636
    %v3638 = vrot.slane %v3629, %v3637
    %s3641 = scalar_lea.vmem [#allocation5], 98
    %v3642 = vld [vmem:[%s3641] ss:$8 sm:$0x3]
    %v3644 = vlaneseq
    %v3645 = vshrl.u32 %v3644, 7
    %v3646 = vsub.s32 0, %v3645
    %v3647 = vrot.slane %v3642, %v3646
    %v3648 = vlaneseq
    %v3649 = vshrl.u32 %v3648, 7
    %v3650 = vsub.s32 1, %v3649
    %v3651 = vrot.slane %v3642, %v3650
    %s3654 = scalar_lea.vmem [#allocation5], 99
    %v3655 = vld [vmem:[%s3654] ss:$8 sm:$0x3]
    %v3657 = vlaneseq
    %v3658 = vshrl.u32 %v3657, 7
    %v3659 = vsub.s32 0, %v3658
    %v3660 = vrot.slane %v3655, %v3659
    %v3661 = vlaneseq
    %v3662 = vshrl.u32 %v3661, 7
    %v3663 = vsub.s32 1, %v3662
    %v3664 = vrot.slane %v3655, %v3663
    %s3667 = scalar_lea.vmem [#allocation5], 100
    %v3668 = vld [vmem:[%s3667] ss:$8 sm:$0x3]
    %v3670 = vlaneseq
    %v3671 = vshrl.u32 %v3670, 7
    %v3672 = vsub.s32 0, %v3671
    %v3673 = vrot.slane %v3668, %v3672
    %v3674 = vlaneseq
    %v3675 = vshrl.u32 %v3674, 7
    %v3676 = vsub.s32 1, %v3675
    %v3677 = vrot.slane %v3668, %v3676
    %v3680 = vmul.f32 %v3621, %v3595
    %v3681 = vmul.f32 %v3625, %v3596
    %v3682 = vmul.f32 %v3634, %v3601
    %v3683 = vmul.f32 %v3638, %v3602
    %v3684 = vsub.f32 %v3680, %v3682
    %v3685 = vsub.f32 %v3681, %v3683
    %v3686 = vmul.f32 %v3621, %v3601
    %v3687 = vmul.f32 %v3625, %v3602
    %v3688 = vmul.f32 %v3634, %v3595
    %v3689 = vmul.f32 %v3638, %v3596
    %v3690 = vadd.f32 %v3686, %v3688
    %v3691 = vadd.f32 %v3687, %v3689
    %v3692 = vmul.f32 %v3647, %v3607
    %v3693 = vmul.f32 %v3651, %v3608
    %v3694 = vmul.f32 %v3660, %v3613
    %v3695 = vmul.f32 %v3664, %v3614
    %v3696 = vsub.f32 %v3692, %v3694
    %v3697 = vsub.f32 %v3693, %v3695
    %v3698 = vmul.f32 %v3647, %v3613
    %v3699 = vmul.f32 %v3651, %v3614
    %v3700 = vmul.f32 %v3660, %v3607
    %v3701 = vmul.f32 %v3664, %v3608
    %v3702 = vadd.f32 %v3698, %v3700
    %v3703 = vadd.f32 %v3699, %v3701
    %v3704 = vadd.f32 %v3684, %v3696
    %v3705 = vadd.f32 %v3685, %v3697
    %v3706 = vadd.f32 %v3690, %v3702
    %v3707 = vadd.f32 %v3691, %v3703
    %v3708 = vmul.f32 %v3704, %v3704
    %v3709 = vmul.f32 %v3705, %v3705
    %v3710 = vmul.f32 %v3706, %v3706
    %v3711 = vmul.f32 %v3707, %v3707
    %v3712 = vadd.f32 %v3708, %v3710
    %v3713 = vadd.f32 %v3709, %v3711
    %v3714 = vrcp.pop %v3712
    %v3715 = vrcp.pop %v3713
    %v3716 = vmul.f32 %v3673, %v3714
    %v3717 = vmul.f32 %v3677, %v3715
    %3718 = vst [vmem:[#allocation7] sm:$0xff] %v3716
    %3719 = vst [vmem:[#allocation7 + $0x8] sm:$0xff] %v3717
    // Predicated region
    $region18: #{tpu_custom_call.1} parent=1 // pred_check
      _
    $region19: #{tpu_custom_call.1} parent=1 // pred_check_branch
      %3721 = sbr.rel (0) target = $region21
    $region20: #{tpu_custom_call.1} parent=1 // pred_region
      %s3723 = ssub.s32 256, 256
      %3724 = vsyncadd [#allocation4], %s3723
      %s3726 = sshll.u32 [#allocation7], 4
      %s3727 = int_to_ptr.vmem [resolvable:$true] %s3726
      %3729 = dma.vmem_to_hbm [thread:$0]  %s3727, 256, %s2, [#allocation4]
    $region21: #{tpu_custom_call.1} parent=1 // pred_fallthru
      _
    // Predicated region
    $region22: #{tpu_custom_call.1} parent=1 // pred_check
      _
    $region23: #{tpu_custom_call.1} parent=1 // pred_check_branch
      %3731 = sbr.rel (0) target = $region25
    $region24: #{tpu_custom_call.1} parent=1 // pred_region
      %3732 = dma.done [#allocation4], 256
    $region25: #{tpu_custom_call.1} parent=1 // pred_fallthru
      _
    %3733 = vsyncpa [#allocation3], 1
    %3734 = vsyncpa [#allocation6], 1
    %3735 = vsyncpa [#allocation4], 1

</llo_original>
